<compile_context>
chip_gen: v5e
topology: v5e:2x2
jax: 0.10.0
libtpu: 0.0.40
codegen_flags: <defaults>
</compile_context>

<pallas_src>
import functools

import jax
import jax.numpy as jnp
import numpy as np
from jax.experimental import pallas as pl
from jax.experimental.pallas import tpu as pltpu


# ----------------------------------------------------------------------------
# Fused BasicBlock kernel:  relu( conv3x3_2( relu( conv3x3_1(x) ) ) + x )
# In-kernel layout: (C, H*W) -- channels on sublanes, spatial on lanes.
# ----------------------------------------------------------------------------
def _basic_block_kernel(cmask_ref, x_ref, w1_ref, w2_ref, o_ref, *,
                        H, W, d, off_idx, margin):
    HW = H * W
    C = x_ref.shape[1]
    x = x_ref[0]                                          # (C, HW) bf16
    zpad = jnp.zeros((C, margin), jnp.bfloat16)

    def conv3x3(inp, w_ref, dd):
        """Zero-padded 3x3 conv, stride 1, dilation dd, f32 accumulation."""
        co = w_ref.shape[2]
        xp = jnp.concatenate([zpad, inp, zpad], axis=1)   # (C, HW + 2*margin)
        acc = jnp.zeros((co, HW), jnp.float32)
        for ki in range(3):
            di = (ki - 1) * dd
            for kj in range(3):
                dj = (kj - 1) * dd
                s = di * W + dj
                patch = xp[:, margin + s: margin + s + HW]    # static lane slice
                contrib = jnp.dot(w_ref[ki, kj], patch,
                                  preferred_element_type=jnp.float32)
                if dj != 0:  # zero columns that wrapped across a row boundary
                    contrib = contrib * cmask_ref[off_idx[dj]]
                acc = acc + contrib
        return acc

    h = jnp.maximum(conv3x3(x, w1_ref, d), 0.0).astype(jnp.bfloat16)
    out = jnp.maximum(conv3x3(h, w2_ref, 1) + x.astype(jnp.float32), 0.0)
    o_ref[0] = out.astype(o_ref.dtype)


def _basic_block_call(x, w1, w2, d, H, W):
    """x: (N, C, H*W) bf16;  w1, w2: (3, 3, Cout, Cin) f32."""
    N, C, HW = x.shape
    offs = sorted(set((-d, d, -1, 1)))
    off_idx = {o: k for k, o in enumerate(offs)}
    j = np.arange(HW) % W
    cmask = np.stack(
        [((j + o >= 0) & (j + o < W)).astype(np.float32) for o in offs]
    ).reshape(len(offs), 1, HW)
    margin = d * (W + 1)

    kernel = functools.partial(_basic_block_kernel, H=H, W=W, d=d,
                               off_idx=off_idx, margin=margin)
    return pl.pallas_call(
        kernel,
        out_shape=jax.ShapeDtypeStruct((N, C, HW), jnp.bfloat16),
        grid=(N,),
        in_specs=[
            pl.BlockSpec((len(offs), 1, HW), lambda n: (0, 0, 0)),
            pl.BlockSpec((1, C, HW), lambda n: (n, 0, 0)),
            pl.BlockSpec((3, 3, C, C), lambda n: (0, 0, 0, 0)),
            pl.BlockSpec((3, 3, C, C), lambda n: (0, 0, 0, 0)),
        ],
        out_specs=pl.BlockSpec((1, C, HW), lambda n: (n, 0, 0)),
        compiler_params=pltpu.CompilerParams(dimension_semantics=("parallel",)),
    )(jnp.asarray(cmask), x, w1.astype(jnp.bfloat16), w2.astype(jnp.bfloat16))


# ----------------------------------------------------------------------------
# Fused side-path kernel:
#   1x1 conv + ReLU -> bilinear resize (align_corners=False)
#   -> ReflectionPad2d(1) -> 3x3 conv (no bias, no act)
# ----------------------------------------------------------------------------
def _side_conv_kernel(x_ref, wr_ref, rwt_ref, wp_ref, o_ref, *,
                      H, W, Hs, Ws, h_i0, h_i1, h_lam):
    del H
    Cout = wr_ref.shape[0]
    Wp = Ws + 2                      # reflection-padded row width
    Np = (Hs + 2) * Wp               # reflection-padded flattened length

    # 1x1 conv + ReLU:  (Cout, Cin) @ (Cin, HW)
    y = jnp.dot(wr_ref[...], x_ref[0], preferred_element_type=jnp.float32)
    y = jnp.maximum(y, 0.0)                               # (Cout, HW) f32
    rwt = rwt_ref[...]                                    # (W, Ws) f32

    # Bilinear resize: 2-tap lerp along H, small (W, Ws) matrix along W.
    # ReflectionPad2d(1) rows are assembled on the fly.
    rows = []
    for ho in range(Hs):
        r0 = y[:, h_i0[ho] * W: h_i0[ho] * W + W]
        r1 = y[:, h_i1[ho] * W: h_i1[ho] * W + W]
        lam = h_lam[ho]
        rh = (1.0 - lam) * r0 + lam * r1                  # (Cout, W) f32
        piece = jnp.dot(rh, rwt, preferred_element_type=jnp.float32)  # (Cout, Ws)
        rows.append(jnp.concatenate(
            [piece[:, 1:2], piece, piece[:, Ws - 2:Ws - 1]], axis=1))  # (Cout, Wp)
    padded = jnp.concatenate([rows[1]] + rows + [rows[Hs - 2]], axis=1)  # (Cout, Np)
    padded = padded.astype(jnp.bfloat16)
    # extra zero lanes so every tap below is a plain static slice (values unused)
    ext = jnp.concatenate(
        [padded, jnp.zeros((Cout, 2 * Wp + 2), jnp.bfloat16)], axis=1)

    # 3x3 "valid" conv on the reflection-padded image (extended-width output).
    acc = jnp.zeros((Cout, Np), jnp.float32)
    for ki in range(3):
        for kj in range(3):
            s = ki * Wp + kj
            acc = acc + jnp.dot(wp_ref[ki, kj], ext[:, s: s + Np],
                                preferred_element_type=jnp.float32)

    # Valid output row i lives at lanes [i*Wp, i*Wp + Ws); drop the 2 junk lanes
    # per row (and the trailing pad rows) to emit a clean (Cout, Hs*Ws) block.
    out = jnp.concatenate([acc[:, i * Wp: i * Wp + Ws] for i in range(Hs)], axis=1)
    o_ref[0] = out.astype(o_ref.dtype)


def _side_conv_call(x, w_reduce, w_post, H, W, Hs, Ws):
    """x: (N, Cin, H*W) bf16; w_reduce: (Cout, Cin); w_post: (3,3,Cout,Cout)."""
    N, Cin, HW = x.shape
    Cout = w_reduce.shape[0]
    i0, i1, lam = _bilinear_taps(Hs, H)
    rwt = _resize_matrix(Ws, W).T.copy()                  # (W, Ws) f32

    kernel = functools.partial(
        _side_conv_kernel, H=H, W=W, Hs=Hs, Ws=Ws,
        h_i0=tuple(int(v) for v in i0),
        h_i1=tuple(int(v) for v in i1),
        h_lam=tuple(float(v) for v in lam))
    return pl.pallas_call(
        kernel,
        out_shape=jax.ShapeDtypeStruct((N, Cout, Hs * Ws), jnp.float32),
        grid=(N,),
        in_specs=[
            pl.BlockSpec((1, Cin, HW), lambda n: (n, 0, 0)),
            pl.BlockSpec((Cout, Cin), lambda n: (0, 0)),
            pl.BlockSpec((W, Ws), lambda n: (0, 0)),
            pl.BlockSpec((3, 3, Cout, Cout), lambda n: (0, 0, 0, 0)),
        ],
        out_specs=pl.BlockSpec((1, Cout, Hs * Ws), lambda n: (n, 0, 0)),
        compiler_params=pltpu.CompilerParams(dimension_semantics=("parallel",)),
    )(x, w_reduce.astype(jnp.bfloat16), jnp.asarray(rwt),
      w_post.astype(jnp.bfloat16))


# ----------------------------------------------------------------------------
# Bilinear-resize taps (PyTorch interpolate, mode='bilinear', align_corners=False)
# ----------------------------------------------------------------------------
def _bilinear_taps(out_size, in_size):
    i = np.arange(out_size, dtype=np.float64)
    src = (i + 0.5) * (in_size / out_size) - 0.5
    src = np.clip(src, 0.0, None)                # PyTorch's lower clamp
    i0 = np.minimum(np.floor(src).astype(np.int64), in_size - 1)
    i1 = np.minimum(i0 + 1, in_size - 1)
    lam = src - i0
    return i0, i1, lam


def _resize_matrix(out_size, in_size):
    i0, i1, lam = _bilinear_taps(out_size, in_size)
    M = np.zeros((out_size, in_size), np.float32)
    M[np.arange(out_size), i0] += (1.0 - lam).astype(np.float32)
    M[np.arange(out_size), i1] += lam.astype(np.float32)
    return M


# ----------------------------------------------------------------------------
# BasicBlockSideConv forward.
# ----------------------------------------------------------------------------
def init_params(key, in_channels, out_channels, num_blocks=2):
    """Weights are stored as (3, 3, Cout, Cin); w_reduce as (Cout, Cin)."""
    params = {"blocks": []}
    keys = jax.random.split(key, 2 * num_blocks + 2)
    k = 0
    for _ in range(num_blocks):
        w1 = 0.1 * jax.random.normal(keys[k], (3, 3, in_channels, in_channels),
                                     jnp.float32); k += 1
        w2 = 0.1 * jax.random.normal(keys[k], (3, 3, in_channels, in_channels),
                                     jnp.float32); k += 1
        params["blocks"].append((w1, w2))
    params["w_reduce"] = 0.1 * jax.random.normal(
        keys[k], (out_channels, in_channels), jnp.float32); k += 1
    params["w_post"] = 0.1 * jax.random.normal(
        keys[k], (3, 3, out_channels, out_channels), jnp.float32); k += 1
    return params


def basic_block_side_conv(params, x_nchw, size, dilations=None,
                          return_block_output=False):
    N, C, H, W = x_nchw.shape
    Hs, Ws = size
    num_blocks = len(params["blocks"])
    if dilations is None:
        dilations = (1,) * num_blocks

    x = x_nchw.reshape(N, C, H * W).astype(jnp.bfloat16)   # NCHW, spatial on lanes

    # self.block : sequential BasicBlocks, each fully fused in one pallas_call
    for (w1, w2), d in zip(params["blocks"], dilations):
        x = _basic_block_call(x, w1, w2, int(d), H, W)
    block_out = x

    # self.side_conv : 1x1+ReLU -> bilinear resize -> reflect-pad 3x3 conv, fused
    s = _side_conv_call(block_out, params["w_reduce"], params["w_post"],
                        H, W, Hs, Ws)
    out = s.reshape(N, -1, Hs, Ws)                          # already NCHW

    if return_block_output:
        return out, block_out.reshape(N, C, H, W).astype(jnp.float32)
    return out


# ----------------------------------------------------------------------------
# Pure-JAX reference (XLA ops), mirroring the kernels' bf16 storage points.
# ----------------------------------------------------------------------------
def _reference_forward(params, x_nchw, size, dilations):
    hp = jax.lax.Precision.HIGHEST

    def rnd(a):
        return a.astype(jnp.bfloat16).astype(jnp.float32)

    def conv3x3(inp, w_kkoi, dil):
        w = jnp.transpose(w_kkoi, (2, 3, 0, 1))             # (Co, Ci, 3, 3)
        return jax.lax.conv_general_dilated(
            inp, w, window_strides=(1, 1),
            padding=((dil, dil), (dil, dil)), rhs_dilation=(dil, dil),
            dimension_numbers=("NCHW", "OIHW", "NCHW"), precision=hp)

    x = rnd(x_nchw)
    for (w1, w2), d in zip(params["blocks"], dilations):
        h = rnd(jax.nn.relu(conv3x3(x, rnd(w1), int(d))))
        x = rnd(jax.nn.relu(conv3x3(h, rnd(w2), 1) + x))

    y = jax.nn.relu(jnp.einsum("oc,nchw->nohw", rnd(params["w_reduce"]), x,
                               precision=hp))
    Hs, Ws = size
    H, W = y.shape[2], y.shape[3]
    Rh = jnp.asarray(_resize_matrix(Hs, H))
    Rw = jnp.asarray(_resize_matrix(Ws, W))
    y = jnp.einsum("ph,nchw->ncpw", Rh, y, precision=hp)
    y = rnd(jnp.einsum("qw,ncpw->ncpq", Rw, y, precision=hp))
    y = jnp.pad(y, ((0, 0), (0, 0), (1, 1), (1, 1)), mode="reflect")
    wp = jnp.transpose(rnd(params["w_post"]), (2, 3, 0, 1))
    return jax.lax.conv_general_dilated(
        y, wp, window_strides=(1, 1), padding="VALID",
        dimension_numbers=("NCHW", "OIHW", "NCHW"), precision=hp)


if __name__ == "__main__":
    key = jax.random.PRNGKey(0)
    k_x, k_p = jax.random.split(key)

    N, C_in, H, W = 2, 4, 16, 16
    C_out = 8
    size = (32, 32)

    x = jax.random.normal(k_x, (N, C_in, H, W), jnp.float32)
    params = init_params(k_p, C_in, C_out, num_blocks=2)

    fwd = jax.jit(functools.partial(basic_block_side_conv, size=size))
    out = jax.block_until_ready(fwd(params, x))

    assert out.shape == (N, C_out, size[0], size[1]), out.shape
    assert bool(jnp.all(jnp.isfinite(out)))

    ref = _reference_forward(params, x, size, dilations=(1, 1))
    max_err = float(jnp.max(jnp.abs(out - ref)))
    assert max_err < 2e-2, f"max |kernel - reference| = {max_err}"
    print("KERNEL_OK")
</pallas_src>

<mosaic_0001>
module attributes {stable_mosaic.version = 11 : i64} {
  func.func @_basic_block_kernel(%arg0: i32, %arg1: memref<2x1x256xf32, #tpu.memory_space<vmem>>, %arg2: memref<1x4x256xbf16, #tpu.memory_space<vmem>>, %arg3: memref<3x3x4x4xbf16, #tpu.memory_space<vmem>>, %arg4: memref<3x3x4x4xbf16, #tpu.memory_space<vmem>>, %arg5: memref<1x4x256xbf16, #tpu.memory_space<vmem>>) attributes {dimension_semantics = [#tpu.dimension_semantics<parallel>], iteration_bounds = array<i64: 2>, scalar_prefetch = 0 : i64, scratch_operands = 0 : i64, tpu.core_type = #tpu.core_type<tc>, window_params = [{pipeline_mode = #tpu.pipeline_mode<synchronous>, transform_indices = @transform_0, window_bounds = array<i64: 2, 1, 256>}, {transform_indices = @transform_1, window_bounds = array<i64: 1, 4, 256>}, {pipeline_mode = #tpu.pipeline_mode<synchronous>, transform_indices = @transform_2, window_bounds = array<i64: 3, 3, 4, 4>}, {pipeline_mode = #tpu.pipeline_mode<synchronous>, transform_indices = @transform_3, window_bounds = array<i64: 3, 3, 4, 4>}, {transform_indices = @transform_4, window_bounds = array<i64: 1, 4, 256>}]} {
    %c0 = arith.constant 0 : index
    %c0_0 = arith.constant 0 : index
    %c0_1 = arith.constant 0 : index
    %0 = vector.load %arg2[%c0, %c0_0, %c0_1] : memref<1x4x256xbf16, #tpu.memory_space<vmem>>, vector<1x4x256xbf16>
    %1 = vector.shape_cast %0 : vector<1x4x256xbf16> to vector<4x256xbf16>
    %cst = arith.constant 0.000000e+00 : bf16
    %2 = vector.broadcast %cst : bf16 to vector<4x17xbf16>
    %3 = tpu.concatenate %2, %1, %2 in 1 : vector<4x17xbf16>, vector<4x256xbf16>, vector<4x17xbf16> -> vector<4x290xbf16>
    %cst_2 = arith.constant 0.000000e+00 : f32
    %4 = vector.broadcast %cst_2 : f32 to vector<4x256xf32>
    %5 = vector.extract_strided_slice %3 {offsets = [0, 0], sizes = [4, 256], strides = [1, 1]} : vector<4x290xbf16> to vector<4x256xbf16>
    %c0_3 = arith.constant 0 : index
    %c0_4 = arith.constant 0 : index
    %c0_5 = arith.constant 0 : index
    %c0_6 = arith.constant 0 : index
    %6 = vector.load %arg3[%c0_3, %c0_4, %c0_5, %c0_6] : memref<3x3x4x4xbf16, #tpu.memory_space<vmem>>, vector<1x1x4x4xbf16>
    %7 = vector.shape_cast %6 : vector<1x1x4x4xbf16> to vector<4x4xbf16>
    %cst_7 = arith.constant dense<0.000000e+00> : vector<4x256xf32>
    %8 = tpu.matmul %7, %5, %cst_7 {dimension_numbers = #tpu.dot_dimension_numbers<[1], [0], [0], [1], [0, 0, 1, 1], [], []>} : vector<4x4xbf16>, vector<4x256xbf16>, vector<4x256xf32> -> vector<4x256xf32>
    %c0_8 = arith.constant 0 : index
    %c0_9 = arith.constant 0 : index
    %c0_10 = arith.constant 0 : index
    %9 = vector.load %arg1[%c0_8, %c0_9, %c0_10] : memref<2x1x256xf32, #tpu.memory_space<vmem>>, vector<1x1x256xf32>
    %10 = vector.shape_cast %9 : vector<1x1x256xf32> to vector<1x256xf32>
    %11 = vector.broadcast %10 : vector<1x256xf32> to vector<4x256xf32>
    %12 = arith.mulf %8, %11 : vector<4x256xf32>
    %13 = arith.addf %4, %12 : vector<4x256xf32>
    %14 = vector.extract_strided_slice %3 {offsets = [0, 1], sizes = [4, 256], strides = [1, 1]} : vector<4x290xbf16> to vector<4x256xbf16>
    %c0_11 = arith.constant 0 : index
    %c1 = arith.constant 1 : index
    %c0_12 = arith.constant 0 : index
    %c0_13 = arith.constant 0 : index
    %15 = vector.load %arg3[%c0_11, %c1, %c0_12, %c0_13] : memref<3x3x4x4xbf16, #tpu.memory_space<vmem>>, vector<1x1x4x4xbf16>
    %16 = vector.shape_cast %15 : vector<1x1x4x4xbf16> to vector<4x4xbf16>
    %cst_14 = arith.constant dense<0.000000e+00> : vector<4x256xf32>
    %17 = tpu.matmul %16, %14, %cst_14 {dimension_numbers = #tpu.dot_dimension_numbers<[1], [0], [0], [1], [0, 0, 1, 1], [], []>} : vector<4x4xbf16>, vector<4x256xbf16>, vector<4x256xf32> -> vector<4x256xf32>
    %18 = arith.addf %13, %17 : vector<4x256xf32>
    %19 = vector.extract_strided_slice %3 {offsets = [0, 2], sizes = [4, 256], strides = [1, 1]} : vector<4x290xbf16> to vector<4x256xbf16>
    %c0_15 = arith.constant 0 : index
    %c2 = arith.constant 2 : index
    %c0_16 = arith.constant 0 : index
    %c0_17 = arith.constant 0 : index
    %20 = vector.load %arg3[%c0_15, %c2, %c0_16, %c0_17] : memref<3x3x4x4xbf16, #tpu.memory_space<vmem>>, vector<1x1x4x4xbf16>
    %21 = vector.shape_cast %20 : vector<1x1x4x4xbf16> to vector<4x4xbf16>
    %cst_18 = arith.constant dense<0.000000e+00> : vector<4x256xf32>
    %22 = tpu.matmul %21, %19, %cst_18 {dimension_numbers = #tpu.dot_dimension_numbers<[1], [0], [0], [1], [0, 0, 1, 1], [], []>} : vector<4x4xbf16>, vector<4x256xbf16>, vector<4x256xf32> -> vector<4x256xf32>
    %c1_19 = arith.constant 1 : index
    %c0_20 = arith.constant 0 : index
    %c0_21 = arith.constant 0 : index
    %23 = vector.load %arg1[%c1_19, %c0_20, %c0_21] : memref<2x1x256xf32, #tpu.memory_space<vmem>>, vector<1x1x256xf32>
    %24 = vector.shape_cast %23 : vector<1x1x256xf32> to vector<1x256xf32>
    %25 = vector.broadcast %24 : vector<1x256xf32> to vector<4x256xf32>
    %26 = arith.mulf %22, %25 : vector<4x256xf32>
    %27 = arith.addf %18, %26 : vector<4x256xf32>
    %28 = vector.extract_strided_slice %3 {offsets = [0, 16], sizes = [4, 256], strides = [1, 1]} : vector<4x290xbf16> to vector<4x256xbf16>
    %c1_22 = arith.constant 1 : index
    %c0_23 = arith.constant 0 : index
    %c0_24 = arith.constant 0 : index
    %c0_25 = arith.constant 0 : index
    %29 = vector.load %arg3[%c1_22, %c0_23, %c0_24, %c0_25] : memref<3x3x4x4xbf16, #tpu.memory_space<vmem>>, vector<1x1x4x4xbf16>
    %30 = vector.shape_cast %29 : vector<1x1x4x4xbf16> to vector<4x4xbf16>
    %cst_26 = arith.constant dense<0.000000e+00> : vector<4x256xf32>
    %31 = tpu.matmul %30, %28, %cst_26 {dimension_numbers = #tpu.dot_dimension_numbers<[1], [0], [0], [1], [0, 0, 1, 1], [], []>} : vector<4x4xbf16>, vector<4x256xbf16>, vector<4x256xf32> -> vector<4x256xf32>
    %c0_27 = arith.constant 0 : index
    %c0_28 = arith.constant 0 : index
    %c0_29 = arith.constant 0 : index
    %32 = vector.load %arg1[%c0_27, %c0_28, %c0_29] : memref<2x1x256xf32, #tpu.memory_space<vmem>>, vector<1x1x256xf32>
    %33 = vector.shape_cast %32 : vector<1x1x256xf32> to vector<1x256xf32>
    %34 = vector.broadcast %33 : vector<1x256xf32> to vector<4x256xf32>
    %35 = arith.mulf %31, %34 : vector<4x256xf32>
    %36 = arith.addf %27, %35 : vector<4x256xf32>
    %37 = vector.extract_strided_slice %3 {offsets = [0, 17], sizes = [4, 256], strides = [1, 1]} : vector<4x290xbf16> to vector<4x256xbf16>
    %c1_30 = arith.constant 1 : index
    %c1_31 = arith.constant 1 : index
    %c0_32 = arith.constant 0 : index
    %c0_33 = arith.constant 0 : index
    %38 = vector.load %arg3[%c1_30, %c1_31, %c0_32, %c0_33] : memref<3x3x4x4xbf16, #tpu.memory_space<vmem>>, vector<1x1x4x4xbf16>
    %39 = vector.shape_cast %38 : vector<1x1x4x4xbf16> to vector<4x4xbf16>
    %cst_34 = arith.constant dense<0.000000e+00> : vector<4x256xf32>
    %40 = tpu.matmul %39, %37, %cst_34 {dimension_numbers = #tpu.dot_dimension_numbers<[1], [0], [0], [1], [0, 0, 1, 1], [], []>} : vector<4x4xbf16>, vector<4x256xbf16>, vector<4x256xf32> -> vector<4x256xf32>
    %41 = arith.addf %36, %40 : vector<4x256xf32>
    %42 = vector.extract_strided_slice %3 {offsets = [0, 18], sizes = [4, 256], strides = [1, 1]} : vector<4x290xbf16> to vector<4x256xbf16>
    %c1_35 = arith.constant 1 : index
    %c2_36 = arith.constant 2 : index
    %c0_37 = arith.constant 0 : index
    %c0_38 = arith.constant 0 : index
    %43 = vector.load %arg3[%c1_35, %c2_36, %c0_37, %c0_38] : memref<3x3x4x4xbf16, #tpu.memory_space<vmem>>, vector<1x1x4x4xbf16>
    %44 = vector.shape_cast %43 : vector<1x1x4x4xbf16> to vector<4x4xbf16>
    %cst_39 = arith.constant dense<0.000000e+00> : vector<4x256xf32>
    %45 = tpu.matmul %44, %42, %cst_39 {dimension_numbers = #tpu.dot_dimension_numbers<[1], [0], [0], [1], [0, 0, 1, 1], [], []>} : vector<4x4xbf16>, vector<4x256xbf16>, vector<4x256xf32> -> vector<4x256xf32>
    %c1_40 = arith.constant 1 : index
    %c0_41 = arith.constant 0 : index
    %c0_42 = arith.constant 0 : index
    %46 = vector.load %arg1[%c1_40, %c0_41, %c0_42] : memref<2x1x256xf32, #tpu.memory_space<vmem>>, vector<1x1x256xf32>
    %47 = vector.shape_cast %46 : vector<1x1x256xf32> to vector<1x256xf32>
    %48 = vector.broadcast %47 : vector<1x256xf32> to vector<4x256xf32>
    %49 = arith.mulf %45, %48 : vector<4x256xf32>
    %50 = arith.addf %41, %49 : vector<4x256xf32>
    %51 = vector.extract_strided_slice %3 {offsets = [0, 32], sizes = [4, 256], strides = [1, 1]} : vector<4x290xbf16> to vector<4x256xbf16>
    %c2_43 = arith.constant 2 : index
    %c0_44 = arith.constant 0 : index
    %c0_45 = arith.constant 0 : index
    %c0_46 = arith.constant 0 : index
    %52 = vector.load %arg3[%c2_43, %c0_44, %c0_45, %c0_46] : memref<3x3x4x4xbf16, #tpu.memory_space<vmem>>, vector<1x1x4x4xbf16>
    %53 = vector.shape_cast %52 : vector<1x1x4x4xbf16> to vector<4x4xbf16>
    %cst_47 = arith.constant dense<0.000000e+00> : vector<4x256xf32>
    %54 = tpu.matmul %53, %51, %cst_47 {dimension_numbers = #tpu.dot_dimension_numbers<[1], [0], [0], [1], [0, 0, 1, 1], [], []>} : vector<4x4xbf16>, vector<4x256xbf16>, vector<4x256xf32> -> vector<4x256xf32>
    %c0_48 = arith.constant 0 : index
    %c0_49 = arith.constant 0 : index
    %c0_50 = arith.constant 0 : index
    %55 = vector.load %arg1[%c0_48, %c0_49, %c0_50] : memref<2x1x256xf32, #tpu.memory_space<vmem>>, vector<1x1x256xf32>
    %56 = vector.shape_cast %55 : vector<1x1x256xf32> to vector<1x256xf32>
    %57 = vector.broadcast %56 : vector<1x256xf32> to vector<4x256xf32>
    %58 = arith.mulf %54, %57 : vector<4x256xf32>
    %59 = arith.addf %50, %58 : vector<4x256xf32>
    %60 = vector.extract_strided_slice %3 {offsets = [0, 33], sizes = [4, 256], strides = [1, 1]} : vector<4x290xbf16> to vector<4x256xbf16>
    %c2_51 = arith.constant 2 : index
    %c1_52 = arith.constant 1 : index
    %c0_53 = arith.constant 0 : index
    %c0_54 = arith.constant 0 : index
    %61 = vector.load %arg3[%c2_51, %c1_52, %c0_53, %c0_54] : memref<3x3x4x4xbf16, #tpu.memory_space<vmem>>, vector<1x1x4x4xbf16>
    %62 = vector.shape_cast %61 : vector<1x1x4x4xbf16> to vector<4x4xbf16>
    %cst_55 = arith.constant dense<0.000000e+00> : vector<4x256xf32>
    %63 = tpu.matmul %62, %60, %cst_55 {dimension_numbers = #tpu.dot_dimension_numbers<[1], [0], [0], [1], [0, 0, 1, 1], [], []>} : vector<4x4xbf16>, vector<4x256xbf16>, vector<4x256xf32> -> vector<4x256xf32>
    %64 = arith.addf %59, %63 : vector<4x256xf32>
    %65 = vector.extract_strided_slice %3 {offsets = [0, 34], sizes = [4, 256], strides = [1, 1]} : vector<4x290xbf16> to vector<4x256xbf16>
    %c2_56 = arith.constant 2 : index
    %c2_57 = arith.constant 2 : index
    %c0_58 = arith.constant 0 : index
    %c0_59 = arith.constant 0 : index
    %66 = vector.load %arg3[%c2_56, %c2_57, %c0_58, %c0_59] : memref<3x3x4x4xbf16, #tpu.memory_space<vmem>>, vector<1x1x4x4xbf16>
    %67 = vector.shape_cast %66 : vector<1x1x4x4xbf16> to vector<4x4xbf16>
    %cst_60 = arith.constant dense<0.000000e+00> : vector<4x256xf32>
    %68 = tpu.matmul %67, %65, %cst_60 {dimension_numbers = #tpu.dot_dimension_numbers<[1], [0], [0], [1], [0, 0, 1, 1], [], []>} : vector<4x4xbf16>, vector<4x256xbf16>, vector<4x256xf32> -> vector<4x256xf32>
    %c1_61 = arith.constant 1 : index
    %c0_62 = arith.constant 0 : index
    %c0_63 = arith.constant 0 : index
    %69 = vector.load %arg1[%c1_61, %c0_62, %c0_63] : memref<2x1x256xf32, #tpu.memory_space<vmem>>, vector<1x1x256xf32>
    %70 = vector.shape_cast %69 : vector<1x1x256xf32> to vector<1x256xf32>
    %71 = vector.broadcast %70 : vector<1x256xf32> to vector<4x256xf32>
    %72 = arith.mulf %68, %71 : vector<4x256xf32>
    %73 = arith.addf %64, %72 : vector<4x256xf32>
    %cst_64 = arith.constant 0.000000e+00 : f32
    %74 = vector.broadcast %cst_64 : f32 to vector<4x256xf32>
    %75 = arith.maximumf %73, %74 : vector<4x256xf32>
    %76 = arith.truncf %75 : vector<4x256xf32> to vector<4x256xbf16>
    %77 = tpu.concatenate %2, %76, %2 in 1 : vector<4x17xbf16>, vector<4x256xbf16>, vector<4x17xbf16> -> vector<4x290xbf16>
    %cst_65 = arith.constant 0.000000e+00 : f32
    %78 = vector.broadcast %cst_65 : f32 to vector<4x256xf32>
    %79 = vector.extract_strided_slice %77 {offsets = [0, 0], sizes = [4, 256], strides = [1, 1]} : vector<4x290xbf16> to vector<4x256xbf16>
    %c0_66 = arith.constant 0 : index
    %c0_67 = arith.constant 0 : index
    %c0_68 = arith.constant 0 : index
    %c0_69 = arith.constant 0 : index
    %80 = vector.load %arg4[%c0_66, %c0_67, %c0_68, %c0_69] : memref<3x3x4x4xbf16, #tpu.memory_space<vmem>>, vector<1x1x4x4xbf16>
    %81 = vector.shape_cast %80 : vector<1x1x4x4xbf16> to vector<4x4xbf16>
    %cst_70 = arith.constant dense<0.000000e+00> : vector<4x256xf32>
    %82 = tpu.matmul %81, %79, %cst_70 {dimension_numbers = #tpu.dot_dimension_numbers<[1], [0], [0], [1], [0, 0, 1, 1], [], []>} : vector<4x4xbf16>, vector<4x256xbf16>, vector<4x256xf32> -> vector<4x256xf32>
    %c0_71 = arith.constant 0 : index
    %c0_72 = arith.constant 0 : index
    %c0_73 = arith.constant 0 : index
    %83 = vector.load %arg1[%c0_71, %c0_72, %c0_73] : memref<2x1x256xf32, #tpu.memory_space<vmem>>, vector<1x1x256xf32>
    %84 = vector.shape_cast %83 : vector<1x1x256xf32> to vector<1x256xf32>
    %85 = vector.broadcast %84 : vector<1x256xf32> to vector<4x256xf32>
    %86 = arith.mulf %82, %85 : vector<4x256xf32>
    %87 = arith.addf %78, %86 : vector<4x256xf32>
    %88 = vector.extract_strided_slice %77 {offsets = [0, 1], sizes = [4, 256], strides = [1, 1]} : vector<4x290xbf16> to vector<4x256xbf16>
    %c0_74 = arith.constant 0 : index
    %c1_75 = arith.constant 1 : index
    %c0_76 = arith.constant 0 : index
    %c0_77 = arith.constant 0 : index
    %89 = vector.load %arg4[%c0_74, %c1_75, %c0_76, %c0_77] : memref<3x3x4x4xbf16, #tpu.memory_space<vmem>>, vector<1x1x4x4xbf16>
    %90 = vector.shape_cast %89 : vector<1x1x4x4xbf16> to vector<4x4xbf16>
    %cst_78 = arith.constant dense<0.000000e+00> : vector<4x256xf32>
    %91 = tpu.matmul %90, %88, %cst_78 {dimension_numbers = #tpu.dot_dimension_numbers<[1], [0], [0], [1], [0, 0, 1, 1], [], []>} : vector<4x4xbf16>, vector<4x256xbf16>, vector<4x256xf32> -> vector<4x256xf32>
    %92 = arith.addf %87, %91 : vector<4x256xf32>
    %93 = vector.extract_strided_slice %77 {offsets = [0, 2], sizes = [4, 256], strides = [1, 1]} : vector<4x290xbf16> to vector<4x256xbf16>
    %c0_79 = arith.constant 0 : index
    %c2_80 = arith.constant 2 : index
    %c0_81 = arith.constant 0 : index
    %c0_82 = arith.constant 0 : index
    %94 = vector.load %arg4[%c0_79, %c2_80, %c0_81, %c0_82] : memref<3x3x4x4xbf16, #tpu.memory_space<vmem>>, vector<1x1x4x4xbf16>
    %95 = vector.shape_cast %94 : vector<1x1x4x4xbf16> to vector<4x4xbf16>
    %cst_83 = arith.constant dense<0.000000e+00> : vector<4x256xf32>
    %96 = tpu.matmul %95, %93, %cst_83 {dimension_numbers = #tpu.dot_dimension_numbers<[1], [0], [0], [1], [0, 0, 1, 1], [], []>} : vector<4x4xbf16>, vector<4x256xbf16>, vector<4x256xf32> -> vector<4x256xf32>
    %c1_84 = arith.constant 1 : index
    %c0_85 = arith.constant 0 : index
    %c0_86 = arith.constant 0 : index
    %97 = vector.load %arg1[%c1_84, %c0_85, %c0_86] : memref<2x1x256xf32, #tpu.memory_space<vmem>>, vector<1x1x256xf32>
    %98 = vector.shape_cast %97 : vector<1x1x256xf32> to vector<1x256xf32>
    %99 = vector.broadcast %98 : vector<1x256xf32> to vector<4x256xf32>
    %100 = arith.mulf %96, %99 : vector<4x256xf32>
    %101 = arith.addf %92, %100 : vector<4x256xf32>
    %102 = vector.extract_strided_slice %77 {offsets = [0, 16], sizes = [4, 256], strides = [1, 1]} : vector<4x290xbf16> to vector<4x256xbf16>
    %c1_87 = arith.constant 1 : index
    %c0_88 = arith.constant 0 : index
    %c0_89 = arith.constant 0 : index
    %c0_90 = arith.constant 0 : index
    %103 = vector.load %arg4[%c1_87, %c0_88, %c0_89, %c0_90] : memref<3x3x4x4xbf16, #tpu.memory_space<vmem>>, vector<1x1x4x4xbf16>
    %104 = vector.shape_cast %103 : vector<1x1x4x4xbf16> to vector<4x4xbf16>
    %cst_91 = arith.constant dense<0.000000e+00> : vector<4x256xf32>
    %105 = tpu.matmul %104, %102, %cst_91 {dimension_numbers = #tpu.dot_dimension_numbers<[1], [0], [0], [1], [0, 0, 1, 1], [], []>} : vector<4x4xbf16>, vector<4x256xbf16>, vector<4x256xf32> -> vector<4x256xf32>
    %c0_92 = arith.constant 0 : index
    %c0_93 = arith.constant 0 : index
    %c0_94 = arith.constant 0 : index
    %106 = vector.load %arg1[%c0_92, %c0_93, %c0_94] : memref<2x1x256xf32, #tpu.memory_space<vmem>>, vector<1x1x256xf32>
    %107 = vector.shape_cast %106 : vector<1x1x256xf32> to vector<1x256xf32>
    %108 = vector.broadcast %107 : vector<1x256xf32> to vector<4x256xf32>
    %109 = arith.mulf %105, %108 : vector<4x256xf32>
    %110 = arith.addf %101, %109 : vector<4x256xf32>
    %111 = vector.extract_strided_slice %77 {offsets = [0, 17], sizes = [4, 256], strides = [1, 1]} : vector<4x290xbf16> to vector<4x256xbf16>
    %c1_95 = arith.constant 1 : index
    %c1_96 = arith.constant 1 : index
    %c0_97 = arith.constant 0 : index
    %c0_98 = arith.constant 0 : index
    %112 = vector.load %arg4[%c1_95, %c1_96, %c0_97, %c0_98] : memref<3x3x4x4xbf16, #tpu.memory_space<vmem>>, vector<1x1x4x4xbf16>
    %113 = vector.shape_cast %112 : vector<1x1x4x4xbf16> to vector<4x4xbf16>
    %cst_99 = arith.constant dense<0.000000e+00> : vector<4x256xf32>
    %114 = tpu.matmul %113, %111, %cst_99 {dimension_numbers = #tpu.dot_dimension_numbers<[1], [0], [0], [1], [0, 0, 1, 1], [], []>} : vector<4x4xbf16>, vector<4x256xbf16>, vector<4x256xf32> -> vector<4x256xf32>
    %115 = arith.addf %110, %114 : vector<4x256xf32>
    %116 = vector.extract_strided_slice %77 {offsets = [0, 18], sizes = [4, 256], strides = [1, 1]} : vector<4x290xbf16> to vector<4x256xbf16>
    %c1_100 = arith.constant 1 : index
    %c2_101 = arith.constant 2 : index
    %c0_102 = arith.constant 0 : index
    %c0_103 = arith.constant 0 : index
    %117 = vector.load %arg4[%c1_100, %c2_101, %c0_102, %c0_103] : memref<3x3x4x4xbf16, #tpu.memory_space<vmem>>, vector<1x1x4x4xbf16>
    %118 = vector.shape_cast %117 : vector<1x1x4x4xbf16> to vector<4x4xbf16>
    %cst_104 = arith.constant dense<0.000000e+00> : vector<4x256xf32>
    %119 = tpu.matmul %118, %116, %cst_104 {dimension_numbers = #tpu.dot_dimension_numbers<[1], [0], [0], [1], [0, 0, 1, 1], [], []>} : vector<4x4xbf16>, vector<4x256xbf16>, vector<4x256xf32> -> vector<4x256xf32>
    %c1_105 = arith.constant 1 : index
    %c0_106 = arith.constant 0 : index
    %c0_107 = arith.constant 0 : index
    %120 = vector.load %arg1[%c1_105, %c0_106, %c0_107] : memref<2x1x256xf32, #tpu.memory_space<vmem>>, vector<1x1x256xf32>
    %121 = vector.shape_cast %120 : vector<1x1x256xf32> to vector<1x256xf32>
    %122 = vector.broadcast %121 : vector<1x256xf32> to vector<4x256xf32>
    %123 = arith.mulf %119, %122 : vector<4x256xf32>
    %124 = arith.addf %115, %123 : vector<4x256xf32>
    %125 = vector.extract_strided_slice %77 {offsets = [0, 32], sizes = [4, 256], strides = [1, 1]} : vector<4x290xbf16> to vector<4x256xbf16>
    %c2_108 = arith.constant 2 : index
    %c0_109 = arith.constant 0 : index
    %c0_110 = arith.constant 0 : index
    %c0_111 = arith.constant 0 : index
    %126 = vector.load %arg4[%c2_108, %c0_109, %c0_110, %c0_111] : memref<3x3x4x4xbf16, #tpu.memory_space<vmem>>, vector<1x1x4x4xbf16>
    %127 = vector.shape_cast %126 : vector<1x1x4x4xbf16> to vector<4x4xbf16>
    %cst_112 = arith.constant dense<0.000000e+00> : vector<4x256xf32>
    %128 = tpu.matmul %127, %125, %cst_112 {dimension_numbers = #tpu.dot_dimension_numbers<[1], [0], [0], [1], [0, 0, 1, 1], [], []>} : vector<4x4xbf16>, vector<4x256xbf16>, vector<4x256xf32> -> vector<4x256xf32>
    %c0_113 = arith.constant 0 : index
    %c0_114 = arith.constant 0 : index
    %c0_115 = arith.constant 0 : index
    %129 = vector.load %arg1[%c0_113, %c0_114, %c0_115] : memref<2x1x256xf32, #tpu.memory_space<vmem>>, vector<1x1x256xf32>
    %130 = vector.shape_cast %129 : vector<1x1x256xf32> to vector<1x256xf32>
    %131 = vector.broadcast %130 : vector<1x256xf32> to vector<4x256xf32>
    %132 = arith.mulf %128, %131 : vector<4x256xf32>
    %133 = arith.addf %124, %132 : vector<4x256xf32>
    %134 = vector.extract_strided_slice %77 {offsets = [0, 33], sizes = [4, 256], strides = [1, 1]} : vector<4x290xbf16> to vector<4x256xbf16>
    %c2_116 = arith.constant 2 : index
    %c1_117 = arith.constant 1 : index
    %c0_118 = arith.constant 0 : index
    %c0_119 = arith.constant 0 : index
    %135 = vector.load %arg4[%c2_116, %c1_117, %c0_118, %c0_119] : memref<3x3x4x4xbf16, #tpu.memory_space<vmem>>, vector<1x1x4x4xbf16>
    %136 = vector.shape_cast %135 : vector<1x1x4x4xbf16> to vector<4x4xbf16>
    %cst_120 = arith.constant dense<0.000000e+00> : vector<4x256xf32>
    %137 = tpu.matmul %136, %134, %cst_120 {dimension_numbers = #tpu.dot_dimension_numbers<[1], [0], [0], [1], [0, 0, 1, 1], [], []>} : vector<4x4xbf16>, vector<4x256xbf16>, vector<4x256xf32> -> vector<4x256xf32>
    %138 = arith.addf %133, %137 : vector<4x256xf32>
    %139 = vector.extract_strided_slice %77 {offsets = [0, 34], sizes = [4, 256], strides = [1, 1]} : vector<4x290xbf16> to vector<4x256xbf16>
    %c2_121 = arith.constant 2 : index
    %c2_122 = arith.constant 2 : index
    %c0_123 = arith.constant 0 : index
    %c0_124 = arith.constant 0 : index
    %140 = vector.load %arg4[%c2_121, %c2_122, %c0_123, %c0_124] : memref<3x3x4x4xbf16, #tpu.memory_space<vmem>>, vector<1x1x4x4xbf16>
    %141 = vector.shape_cast %140 : vector<1x1x4x4xbf16> to vector<4x4xbf16>
    %cst_125 = arith.constant dense<0.000000e+00> : vector<4x256xf32>
    %142 = tpu.matmul %141, %139, %cst_125 {dimension_numbers = #tpu.dot_dimension_numbers<[1], [0], [0], [1], [0, 0, 1, 1], [], []>} : vector<4x4xbf16>, vector<4x256xbf16>, vector<4x256xf32> -> vector<4x256xf32>
    %c1_126 = arith.constant 1 : index
    %c0_127 = arith.constant 0 : index
    %c0_128 = arith.constant 0 : index
    %143 = vector.load %arg1[%c1_126, %c0_127, %c0_128] : memref<2x1x256xf32, #tpu.memory_space<vmem>>, vector<1x1x256xf32>
    %144 = vector.shape_cast %143 : vector<1x1x256xf32> to vector<1x256xf32>
    %145 = vector.broadcast %144 : vector<1x256xf32> to vector<4x256xf32>
    %146 = arith.mulf %142, %145 : vector<4x256xf32>
    %147 = arith.addf %138, %146 : vector<4x256xf32>
    %148 = arith.extf %1 : vector<4x256xbf16> to vector<4x256xf32>
    %149 = arith.addf %147, %148 : vector<4x256xf32>
    %cst_129 = arith.constant 0.000000e+00 : f32
    %150 = vector.broadcast %cst_129 : f32 to vector<4x256xf32>
    %151 = arith.maximumf %149, %150 : vector<4x256xf32>
    %152 = arith.truncf %151 : vector<4x256xf32> to vector<4x256xbf16>
    %c0_130 = arith.constant 0 : index
    %c0_131 = arith.constant 0 : index
    %c0_132 = arith.constant 0 : index
    %153 = vector.load %arg5[%c0_130, %c0_131, %c0_132] : memref<1x4x256xbf16, #tpu.memory_space<vmem>>, vector<1x4x256xbf16>
    %154 = vector.shape_cast %153 : vector<1x4x256xbf16> to vector<4x256xbf16>
    %155 = vector.shape_cast %152 : vector<4x256xbf16> to vector<1x4x256xbf16>
    tpu.vector_store %arg5[%c0_130, %c0_131, %c0_132], %155 {strides = array<i32>} : memref<1x4x256xbf16, #tpu.memory_space<vmem>>, vector<1x4x256xbf16>,
    return
  }
  func.func @transform_0(%arg0: i32) -> (i32, i32, i32) {
    %c0_i32 = arith.constant 0 : i32
    %c0_i32_0 = arith.constant 0 : i32
    %c0_i32_1 = arith.constant 0 : i32
    %c0_i32_2 = arith.constant 0 : i32
    return %c0_i32, %c0_i32_0, %c0_i32_1 : i32, i32, i32
  }
  func.func @transform_1(%arg0: i32) -> (i32, i32, i32) {
    %c0_i32 = arith.constant 0 : i32
    %c0_i32_0 = arith.constant 0 : i32
    %c0_i32_1 = arith.constant 0 : i32
    return %arg0, %c0_i32, %c0_i32_0 : i32, i32, i32
  }
  func.func @transform_2(%arg0: i32) -> (i32, i32, i32, i32) {
    %c0_i32 = arith.constant 0 : i32
    %c0_i32_0 = arith.constant 0 : i32
    %c0_i32_1 = arith.constant 0 : i32
    %c0_i32_2 = arith.constant 0 : i32
    %c0_i32_3 = arith.constant 0 : i32
    return %c0_i32, %c0_i32_0, %c0_i32_1, %c0_i32_2 : i32, i32, i32, i32
  }
  func.func @transform_3(%arg0: i32) -> (i32, i32, i32, i32) {
    %c0_i32 = arith.constant 0 : i32
    %c0_i32_0 = arith.constant 0 : i32
    %c0_i32_1 = arith.constant 0 : i32
    %c0_i32_2 = arith.constant 0 : i32
    %c0_i32_3 = arith.constant 0 : i32
    return %c0_i32, %c0_i32_0, %c0_i32_1, %c0_i32_2 : i32, i32, i32, i32
  }
  func.func @transform_4(%arg0: i32) -> (i32, i32, i32) {
    %c0_i32 = arith.constant 0 : i32
    %c0_i32_0 = arith.constant 0 : i32
    %c0_i32_1 = arith.constant 0 : i32
    return %arg0, %c0_i32, %c0_i32_0 : i32, i32, i32
  }
}

module attributes {stable_mosaic.version = 11 : i64} {
  func.func @_side_conv_kernel(%arg0: i32, %arg1: memref<1x4x256xbf16, #tpu.memory_space<vmem>>, %arg2: memref<8x4xbf16, #tpu.memory_space<vmem>>, %arg3: memref<16x32xf32, #tpu.memory_space<vmem>>, %arg4: memref<3x3x8x8xbf16, #tpu.memory_space<vmem>>, %arg5: memref<1x8x1024xf32, #tpu.memory_space<vmem>>) attributes {dimension_semantics = [#tpu.dimension_semantics<parallel>], iteration_bounds = array<i64: 2>, scalar_prefetch = 0 : i64, scratch_operands = 0 : i64, tpu.core_type = #tpu.core_type<tc>, window_params = [{transform_indices = @transform_0, window_bounds = array<i64: 1, 4, 256>}, {pipeline_mode = #tpu.pipeline_mode<synchronous>, transform_indices = @transform_1, window_bounds = array<i64: 8, 4>}, {pipeline_mode = #tpu.pipeline_mode<synchronous>, transform_indices = @transform_2, window_bounds = array<i64: 16, 32>}, {pipeline_mode = #tpu.pipeline_mode<synchronous>, transform_indices = @transform_3, window_bounds = array<i64: 3, 3, 8, 8>}, {transform_indices = @transform_4, window_bounds = array<i64: 1, 8, 1024>}]} {
    %c0 = arith.constant 0 : index
    %c0_0 = arith.constant 0 : index
    %0 = vector.load %arg2[%c0, %c0_0] : memref<8x4xbf16, #tpu.memory_space<vmem>>, vector<8x4xbf16>
    %c0_1 = arith.constant 0 : index
    %c0_2 = arith.constant 0 : index
    %c0_3 = arith.constant 0 : index
    %1 = vector.load %arg1[%c0_1, %c0_2, %c0_3] : memref<1x4x256xbf16, #tpu.memory_space<vmem>>, vector<1x4x256xbf16>
    %2 = vector.shape_cast %1 : vector<1x4x256xbf16> to vector<4x256xbf16>
    %cst = arith.constant dense<0.000000e+00> : vector<8x256xf32>
    %3 = tpu.matmul %0, %2, %cst {dimension_numbers = #tpu.dot_dimension_numbers<[1], [0], [0], [1], [0, 0, 1, 1], [], []>} : vector<8x4xbf16>, vector<4x256xbf16>, vector<8x256xf32> -> vector<8x256xf32>
    %cst_4 = arith.constant 0.000000e+00 : f32
    %4 = vector.broadcast %cst_4 : f32 to vector<8x256xf32>
    %5 = arith.maximumf %3, %4 : vector<8x256xf32>
    %c0_5 = arith.constant 0 : index
    %c0_6 = arith.constant 0 : index
    %6 = vector.load %arg3[%c0_5, %c0_6] : memref<16x32xf32, #tpu.memory_space<vmem>>, vector<16x32xf32>
    %7 = vector.extract_strided_slice %5 {offsets = [0, 0], sizes = [8, 16], strides = [1, 1]} : vector<8x256xf32> to vector<8x16xf32>
    %8 = vector.extract_strided_slice %5 {offsets = [0, 16], sizes = [8, 16], strides = [1, 1]} : vector<8x256xf32> to vector<8x16xf32>
    %cst_7 = arith.constant 1.000000e+00 : f32
    %9 = vector.broadcast %cst_7 : f32 to vector<8x16xf32>
    %10 = arith.mulf %9, %7 : vector<8x16xf32>
    %cst_8 = arith.constant 0.000000e+00 : f32
    %11 = vector.broadcast %cst_8 : f32 to vector<8x16xf32>
    %12 = arith.mulf %11, %8 : vector<8x16xf32>
    %13 = arith.addf %10, %12 : vector<8x16xf32>
    %cst_9 = arith.constant dense<0.000000e+00> : vector<8x32xf32>
    %14 = tpu.matmul %13, %6, %cst_9 {dimension_numbers = #tpu.dot_dimension_numbers<[1], [0], [0], [1], [0, 0, 1, 1], [], []>} : vector<8x16xf32>, vector<16x32xf32>, vector<8x32xf32> -> vector<8x32xf32>
    %15 = vector.extract_strided_slice %14 {offsets = [0, 1], sizes = [8, 1], strides = [1, 1]} : vector<8x32xf32> to vector<8x1xf32>
    %16 = vector.extract_strided_slice %14 {offsets = [0, 30], sizes = [8, 1], strides = [1, 1]} : vector<8x32xf32> to vector<8x1xf32>
    %17 = tpu.concatenate %15, %14, %16 in 1 : vector<8x1xf32>, vector<8x32xf32>, vector<8x1xf32> -> vector<8x34xf32>
    %18 = vector.extract_strided_slice %5 {offsets = [0, 0], sizes = [8, 16], strides = [1, 1]} : vector<8x256xf32> to vector<8x16xf32>
    %19 = vector.extract_strided_slice %5 {offsets = [0, 16], sizes = [8, 16], strides = [1, 1]} : vector<8x256xf32> to vector<8x16xf32>
    %cst_10 = arith.constant 7.500000e-01 : f32
    %20 = vector.broadcast %cst_10 : f32 to vector<8x16xf32>
    %21 = arith.mulf %20, %18 : vector<8x16xf32>
    %cst_11 = arith.constant 2.500000e-01 : f32
    %22 = vector.broadcast %cst_11 : f32 to vector<8x16xf32>
    %23 = arith.mulf %22, %19 : vector<8x16xf32>
    %24 = arith.addf %21, %23 : vector<8x16xf32>
    %cst_12 = arith.constant dense<0.000000e+00> : vector<8x32xf32>
    %25 = tpu.matmul %24, %6, %cst_12 {dimension_numbers = #tpu.dot_dimension_numbers<[1], [0], [0], [1], [0, 0, 1, 1], [], []>} : vector<8x16xf32>, vector<16x32xf32>, vector<8x32xf32> -> vector<8x32xf32>
    %26 = vector.extract_strided_slice %25 {offsets = [0, 1], sizes = [8, 1], strides = [1, 1]} : vector<8x32xf32> to vector<8x1xf32>
    %27 = vector.extract_strided_slice %25 {offsets = [0, 30], sizes = [8, 1], strides = [1, 1]} : vector<8x32xf32> to vector<8x1xf32>
    %28 = tpu.concatenate %26, %25, %27 in 1 : vector<8x1xf32>, vector<8x32xf32>, vector<8x1xf32> -> vector<8x34xf32>
    %29 = vector.extract_strided_slice %5 {offsets = [0, 0], sizes = [8, 16], strides = [1, 1]} : vector<8x256xf32> to vector<8x16xf32>
    %30 = vector.extract_strided_slice %5 {offsets = [0, 16], sizes = [8, 16], strides = [1, 1]} : vector<8x256xf32> to vector<8x16xf32>
    %cst_13 = arith.constant 2.500000e-01 : f32
    %31 = vector.broadcast %cst_13 : f32 to vector<8x16xf32>
    %32 = arith.mulf %31, %29 : vector<8x16xf32>
    %cst_14 = arith.constant 7.500000e-01 : f32
    %33 = vector.broadcast %cst_14 : f32 to vector<8x16xf32>
    %34 = arith.mulf %33, %30 : vector<8x16xf32>
    %35 = arith.addf %32, %34 : vector<8x16xf32>
    %cst_15 = arith.constant dense<0.000000e+00> : vector<8x32xf32>
    %36 = tpu.matmul %35, %6, %cst_15 {dimension_numbers = #tpu.dot_dimension_numbers<[1], [0], [0], [1], [0, 0, 1, 1], [], []>} : vector<8x16xf32>, vector<16x32xf32>, vector<8x32xf32> -> vector<8x32xf32>
    %37 = vector.extract_strided_slice %36 {offsets = [0, 1], sizes = [8, 1], strides = [1, 1]} : vector<8x32xf32> to vector<8x1xf32>
    %38 = vector.extract_strided_slice %36 {offsets = [0, 30], sizes = [8, 1], strides = [1, 1]} : vector<8x32xf32> to vector<8x1xf32>
    %39 = tpu.concatenate %37, %36, %38 in 1 : vector<8x1xf32>, vector<8x32xf32>, vector<8x1xf32> -> vector<8x34xf32>
    %40 = vector.extract_strided_slice %5 {offsets = [0, 16], sizes = [8, 16], strides = [1, 1]} : vector<8x256xf32> to vector<8x16xf32>
    %41 = vector.extract_strided_slice %5 {offsets = [0, 32], sizes = [8, 16], strides = [1, 1]} : vector<8x256xf32> to vector<8x16xf32>
    %cst_16 = arith.constant 7.500000e-01 : f32
    %42 = vector.broadcast %cst_16 : f32 to vector<8x16xf32>
    %43 = arith.mulf %42, %40 : vector<8x16xf32>
    %cst_17 = arith.constant 2.500000e-01 : f32
    %44 = vector.broadcast %cst_17 : f32 to vector<8x16xf32>
    %45 = arith.mulf %44, %41 : vector<8x16xf32>
    %46 = arith.addf %43, %45 : vector<8x16xf32>
    %cst_18 = arith.constant dense<0.000000e+00> : vector<8x32xf32>
    %47 = tpu.matmul %46, %6, %cst_18 {dimension_numbers = #tpu.dot_dimension_numbers<[1], [0], [0], [1], [0, 0, 1, 1], [], []>} : vector<8x16xf32>, vector<16x32xf32>, vector<8x32xf32> -> vector<8x32xf32>
    %48 = vector.extract_strided_slice %47 {offsets = [0, 1], sizes = [8, 1], strides = [1, 1]} : vector<8x32xf32> to vector<8x1xf32>
    %49 = vector.extract_strided_slice %47 {offsets = [0, 30], sizes = [8, 1], strides = [1, 1]} : vector<8x32xf32> to vector<8x1xf32>
    %50 = tpu.concatenate %48, %47, %49 in 1 : vector<8x1xf32>, vector<8x32xf32>, vector<8x1xf32> -> vector<8x34xf32>
    %51 = vector.extract_strided_slice %5 {offsets = [0, 16], sizes = [8, 16], strides = [1, 1]} : vector<8x256xf32> to vector<8x16xf32>
    %52 = vector.extract_strided_slice %5 {offsets = [0, 32], sizes = [8, 16], strides = [1, 1]} : vector<8x256xf32> to vector<8x16xf32>
    %cst_19 = arith.constant 2.500000e-01 : f32
    %53 = vector.broadcast %cst_19 : f32 to vector<8x16xf32>
    %54 = arith.mulf %53, %51 : vector<8x16xf32>
    %cst_20 = arith.constant 7.500000e-01 : f32
    %55 = vector.broadcast %cst_20 : f32 to vector<8x16xf32>
    %56 = arith.mulf %55, %52 : vector<8x16xf32>
    %57 = arith.addf %54, %56 : vector<8x16xf32>
    %cst_21 = arith.constant dense<0.000000e+00> : vector<8x32xf32>
    %58 = tpu.matmul %57, %6, %cst_21 {dimension_numbers = #tpu.dot_dimension_numbers<[1], [0], [0], [1], [0, 0, 1, 1], [], []>} : vector<8x16xf32>, vector<16x32xf32>, vector<8x32xf32> -> vector<8x32xf32>
    %59 = vector.extract_strided_slice %58 {offsets = [0, 1], sizes = [8, 1], strides = [1, 1]} : vector<8x32xf32> to vector<8x1xf32>
    %60 = vector.extract_strided_slice %58 {offsets = [0, 30], sizes = [8, 1], strides = [1, 1]} : vector<8x32xf32> to vector<8x1xf32>
    %61 = tpu.concatenate %59, %58, %60 in 1 : vector<8x1xf32>, vector<8x32xf32>, vector<8x1xf32> -> vector<8x34xf32>
    %62 = vector.extract_strided_slice %5 {offsets = [0, 32], sizes = [8, 16], strides = [1, 1]} : vector<8x256xf32> to vector<8x16xf32>
    %63 = vector.extract_strided_slice %5 {offsets = [0, 48], sizes = [8, 16], strides = [1, 1]} : vector<8x256xf32> to vector<8x16xf32>
    %cst_22 = arith.constant 7.500000e-01 : f32
    %64 = vector.broadcast %cst_22 : f32 to vector<8x16xf32>
    %65 = arith.mulf %64, %62 : vector<8x16xf32>
    %cst_23 = arith.constant 2.500000e-01 : f32
    %66 = vector.broadcast %cst_23 : f32 to vector<8x16xf32>
    %67 = arith.mulf %66, %63 : vector<8x16xf32>
    %68 = arith.addf %65, %67 : vector<8x16xf32>
    %cst_24 = arith.constant dense<0.000000e+00> : vector<8x32xf32>
    %69 = tpu.matmul %68, %6, %cst_24 {dimension_numbers = #tpu.dot_dimension_numbers<[1], [0], [0], [1], [0, 0, 1, 1], [], []>} : vector<8x16xf32>, vector<16x32xf32>, vector<8x32xf32> -> vector<8x32xf32>
    %70 = vector.extract_strided_slice %69 {offsets = [0, 1], sizes = [8, 1], strides = [1, 1]} : vector<8x32xf32> to vector<8x1xf32>
    %71 = vector.extract_strided_slice %69 {offsets = [0, 30], sizes = [8, 1], strides = [1, 1]} : vector<8x32xf32> to vector<8x1xf32>
    %72 = tpu.concatenate %70, %69, %71 in 1 : vector<8x1xf32>, vector<8x32xf32>, vector<8x1xf32> -> vector<8x34xf32>
    %73 = vector.extract_strided_slice %5 {offsets = [0, 32], sizes = [8, 16], strides = [1, 1]} : vector<8x256xf32> to vector<8x16xf32>
    %74 = vector.extract_strided_slice %5 {offsets = [0, 48], sizes = [8, 16], strides = [1, 1]} : vector<8x256xf32> to vector<8x16xf32>
    %cst_25 = arith.constant 2.500000e-01 : f32
    %75 = vector.broadcast %cst_25 : f32 to vector<8x16xf32>
    %76 = arith.mulf %75, %73 : vector<8x16xf32>
    %cst_26 = arith.constant 7.500000e-01 : f32
    %77 = vector.broadcast %cst_26 : f32 to vector<8x16xf32>
    %78 = arith.mulf %77, %74 : vector<8x16xf32>
    %79 = arith.addf %76, %78 : vector<8x16xf32>
    %cst_27 = arith.constant dense<0.000000e+00> : vector<8x32xf32>
    %80 = tpu.matmul %79, %6, %cst_27 {dimension_numbers = #tpu.dot_dimension_numbers<[1], [0], [0], [1], [0, 0, 1, 1], [], []>} : vector<8x16xf32>, vector<16x32xf32>, vector<8x32xf32> -> vector<8x32xf32>
    %81 = vector.extract_strided_slice %80 {offsets = [0, 1], sizes = [8, 1], strides = [1, 1]} : vector<8x32xf32> to vector<8x1xf32>
    %82 = vector.extract_strided_slice %80 {offsets = [0, 30], sizes = [8, 1], strides = [1, 1]} : vector<8x32xf32> to vector<8x1xf32>
    %83 = tpu.concatenate %81, %80, %82 in 1 : vector<8x1xf32>, vector<8x32xf32>, vector<8x1xf32> -> vector<8x34xf32>
    %84 = vector.extract_strided_slice %5 {offsets = [0, 48], sizes = [8, 16], strides = [1, 1]} : vector<8x256xf32> to vector<8x16xf32>
    %85 = vector.extract_strided_slice %5 {offsets = [0, 64], sizes = [8, 16], strides = [1, 1]} : vector<8x256xf32> to vector<8x16xf32>
    %cst_28 = arith.constant 7.500000e-01 : f32
    %86 = vector.broadcast %cst_28 : f32 to vector<8x16xf32>
    %87 = arith.mulf %86, %84 : vector<8x16xf32>
    %cst_29 = arith.constant 2.500000e-01 : f32
    %88 = vector.broadcast %cst_29 : f32 to vector<8x16xf32>
    %89 = arith.mulf %88, %85 : vector<8x16xf32>
    %90 = arith.addf %87, %89 : vector<8x16xf32>
    %cst_30 = arith.constant dense<0.000000e+00> : vector<8x32xf32>
    %91 = tpu.matmul %90, %6, %cst_30 {dimension_numbers = #tpu.dot_dimension_numbers<[1], [0], [0], [1], [0, 0, 1, 1], [], []>} : vector<8x16xf32>, vector<16x32xf32>, vector<8x32xf32> -> vector<8x32xf32>
    %92 = vector.extract_strided_slice %91 {offsets = [0, 1], sizes = [8, 1], strides = [1, 1]} : vector<8x32xf32> to vector<8x1xf32>
    %93 = vector.extract_strided_slice %91 {offsets = [0, 30], sizes = [8, 1], strides = [1, 1]} : vector<8x32xf32> to vector<8x1xf32>
    %94 = tpu.concatenate %92, %91, %93 in 1 : vector<8x1xf32>, vector<8x32xf32>, vector<8x1xf32> -> vector<8x34xf32>
    %95 = vector.extract_strided_slice %5 {offsets = [0, 48], sizes = [8, 16], strides = [1, 1]} : vector<8x256xf32> to vector<8x16xf32>
    %96 = vector.extract_strided_slice %5 {offsets = [0, 64], sizes = [8, 16], strides = [1, 1]} : vector<8x256xf32> to vector<8x16xf32>
    %cst_31 = arith.constant 2.500000e-01 : f32
    %97 = vector.broadcast %cst_31 : f32 to vector<8x16xf32>
    %98 = arith.mulf %97, %95 : vector<8x16xf32>
    %cst_32 = arith.constant 7.500000e-01 : f32
    %99 = vector.broadcast %cst_32 : f32 to vector<8x16xf32>
    %100 = arith.mulf %99, %96 : vector<8x16xf32>
    %101 = arith.addf %98, %100 : vector<8x16xf32>
    %cst_33 = arith.constant dense<0.000000e+00> : vector<8x32xf32>
    %102 = tpu.matmul %101, %6, %cst_33 {dimension_numbers = #tpu.dot_dimension_numbers<[1], [0], [0], [1], [0, 0, 1, 1], [], []>} : vector<8x16xf32>, vector<16x32xf32>, vector<8x32xf32> -> vector<8x32xf32>
    %103 = vector.extract_strided_slice %102 {offsets = [0, 1], sizes = [8, 1], strides = [1, 1]} : vector<8x32xf32> to vector<8x1xf32>
    %104 = vector.extract_strided_slice %102 {offsets = [0, 30], sizes = [8, 1], strides = [1, 1]} : vector<8x32xf32> to vector<8x1xf32>
    %105 = tpu.concatenate %103, %102, %104 in 1 : vector<8x1xf32>, vector<8x32xf32>, vector<8x1xf32> -> vector<8x34xf32>
    %106 = vector.extract_strided_slice %5 {offsets = [0, 64], sizes = [8, 16], strides = [1, 1]} : vector<8x256xf32> to vector<8x16xf32>
    %107 = vector.extract_strided_slice %5 {offsets = [0, 80], sizes = [8, 16], strides = [1, 1]} : vector<8x256xf32> to vector<8x16xf32>
    %cst_34 = arith.constant 7.500000e-01 : f32
    %108 = vector.broadcast %cst_34 : f32 to vector<8x16xf32>
    %109 = arith.mulf %108, %106 : vector<8x16xf32>
    %cst_35 = arith.constant 2.500000e-01 : f32
    %110 = vector.broadcast %cst_35 : f32 to vector<8x16xf32>
    %111 = arith.mulf %110, %107 : vector<8x16xf32>
    %112 = arith.addf %109, %111 : vector<8x16xf32>
    %cst_36 = arith.constant dense<0.000000e+00> : vector<8x32xf32>
    %113 = tpu.matmul %112, %6, %cst_36 {dimension_numbers = #tpu.dot_dimension_numbers<[1], [0], [0], [1], [0, 0, 1, 1], [], []>} : vector<8x16xf32>, vector<16x32xf32>, vector<8x32xf32> -> vector<8x32xf32>
    %114 = vector.extract_strided_slice %113 {offsets = [0, 1], sizes = [8, 1], strides = [1, 1]} : vector<8x32xf32> to vector<8x1xf32>
    %115 = vector.extract_strided_slice %113 {offsets = [0, 30], sizes = [8, 1], strides = [1, 1]} : vector<8x32xf32> to vector<8x1xf32>
    %116 = tpu.concatenate %114, %113, %115 in 1 : vector<8x1xf32>, vector<8x32xf32>, vector<8x1xf32> -> vector<8x34xf32>
    %117 = vector.extract_strided_slice %5 {offsets = [0, 64], sizes = [8, 16], strides = [1, 1]} : vector<8x256xf32> to vector<8x16xf32>
    %118 = vector.extract_strided_slice %5 {offsets = [0, 80], sizes = [8, 16], strides = [1, 1]} : vector<8x256xf32> to vector<8x16xf32>
    %cst_37 = arith.constant 2.500000e-01 : f32
    %119 = vector.broadcast %cst_37 : f32 to vector<8x16xf32>
    %120 = arith.mulf %119, %117 : vector<8x16xf32>
    %cst_38 = arith.constant 7.500000e-01 : f32
    %121 = vector.broadcast %cst_38 : f32 to vector<8x16xf32>
    %122 = arith.mulf %121, %118 : vector<8x16xf32>
    %123 = arith.addf %120, %122 : vector<8x16xf32>
    %cst_39 = arith.constant dense<0.000000e+00> : vector<8x32xf32>
    %124 = tpu.matmul %123, %6, %cst_39 {dimension_numbers = #tpu.dot_dimension_numbers<[1], [0], [0], [1], [0, 0, 1, 1], [], []>} : vector<8x16xf32>, vector<16x32xf32>, vector<8x32xf32> -> vector<8x32xf32>
    %125 = vector.extract_strided_slice %124 {offsets = [0, 1], sizes = [8, 1], strides = [1, 1]} : vector<8x32xf32> to vector<8x1xf32>
    %126 = vector.extract_strided_slice %124 {offsets = [0, 30], sizes = [8, 1], strides = [1, 1]} : vector<8x32xf32> to vector<8x1xf32>
    %127 = tpu.concatenate %125, %124, %126 in 1 : vector<8x1xf32>, vector<8x32xf32>, vector<8x1xf32> -> vector<8x34xf32>
    %128 = vector.extract_strided_slice %5 {offsets = [0, 80], sizes = [8, 16], strides = [1, 1]} : vector<8x256xf32> to vector<8x16xf32>
    %129 = vector.extract_strided_slice %5 {offsets = [0, 96], sizes = [8, 16], strides = [1, 1]} : vector<8x256xf32> to vector<8x16xf32>
    %cst_40 = arith.constant 7.500000e-01 : f32
    %130 = vector.broadcast %cst_40 : f32 to vector<8x16xf32>
    %131 = arith.mulf %130, %128 : vector<8x16xf32>
    %cst_41 = arith.constant 2.500000e-01 : f32
    %132 = vector.broadcast %cst_41 : f32 to vector<8x16xf32>
    %133 = arith.mulf %132, %129 : vector<8x16xf32>
    %134 = arith.addf %131, %133 : vector<8x16xf32>
    %cst_42 = arith.constant dense<0.000000e+00> : vector<8x32xf32>
    %135 = tpu.matmul %134, %6, %cst_42 {dimension_numbers = #tpu.dot_dimension_numbers<[1], [0], [0], [1], [0, 0, 1, 1], [], []>} : vector<8x16xf32>, vector<16x32xf32>, vector<8x32xf32> -> vector<8x32xf32>
    %136 = vector.extract_strided_slice %135 {offsets = [0, 1], sizes = [8, 1], strides = [1, 1]} : vector<8x32xf32> to vector<8x1xf32>
    %137 = vector.extract_strided_slice %135 {offsets = [0, 30], sizes = [8, 1], strides = [1, 1]} : vector<8x32xf32> to vector<8x1xf32>
    %138 = tpu.concatenate %136, %135, %137 in 1 : vector<8x1xf32>, vector<8x32xf32>, vector<8x1xf32> -> vector<8x34xf32>
    %139 = vector.extract_strided_slice %5 {offsets = [0, 80], sizes = [8, 16], strides = [1, 1]} : vector<8x256xf32> to vector<8x16xf32>
    %140 = vector.extract_strided_slice %5 {offsets = [0, 96], sizes = [8, 16], strides = [1, 1]} : vector<8x256xf32> to vector<8x16xf32>
    %cst_43 = arith.constant 2.500000e-01 : f32
    %141 = vector.broadcast %cst_43 : f32 to vector<8x16xf32>
    %142 = arith.mulf %141, %139 : vector<8x16xf32>
    %cst_44 = arith.constant 7.500000e-01 : f32
    %143 = vector.broadcast %cst_44 : f32 to vector<8x16xf32>
    %144 = arith.mulf %143, %140 : vector<8x16xf32>
    %145 = arith.addf %142, %144 : vector<8x16xf32>
    %cst_45 = arith.constant dense<0.000000e+00> : vector<8x32xf32>
    %146 = tpu.matmul %145, %6, %cst_45 {dimension_numbers = #tpu.dot_dimension_numbers<[1], [0], [0], [1], [0, 0, 1, 1], [], []>} : vector<8x16xf32>, vector<16x32xf32>, vector<8x32xf32> -> vector<8x32xf32>
    %147 = vector.extract_strided_slice %146 {offsets = [0, 1], sizes = [8, 1], strides = [1, 1]} : vector<8x32xf32> to vector<8x1xf32>
    %148 = vector.extract_strided_slice %146 {offsets = [0, 30], sizes = [8, 1], strides = [1, 1]} : vector<8x32xf32> to vector<8x1xf32>
    %149 = tpu.concatenate %147, %146, %148 in 1 : vector<8x1xf32>, vector<8x32xf32>, vector<8x1xf32> -> vector<8x34xf32>
    %150 = vector.extract_strided_slice %5 {offsets = [0, 96], sizes = [8, 16], strides = [1, 1]} : vector<8x256xf32> to vector<8x16xf32>
    %151 = vector.extract_strided_slice %5 {offsets = [0, 112], sizes = [8, 16], strides = [1, 1]} : vector<8x256xf32> to vector<8x16xf32>
    %cst_46 = arith.constant 7.500000e-01 : f32
    %152 = vector.broadcast %cst_46 : f32 to vector<8x16xf32>
    %153 = arith.mulf %152, %150 : vector<8x16xf32>
    %cst_47 = arith.constant 2.500000e-01 : f32
    %154 = vector.broadcast %cst_47 : f32 to vector<8x16xf32>
    %155 = arith.mulf %154, %151 : vector<8x16xf32>
    %156 = arith.addf %153, %155 : vector<8x16xf32>
    %cst_48 = arith.constant dense<0.000000e+00> : vector<8x32xf32>
    %157 = tpu.matmul %156, %6, %cst_48 {dimension_numbers = #tpu.dot_dimension_numbers<[1], [0], [0], [1], [0, 0, 1, 1], [], []>} : vector<8x16xf32>, vector<16x32xf32>, vector<8x32xf32> -> vector<8x32xf32>
    %158 = vector.extract_strided_slice %157 {offsets = [0, 1], sizes = [8, 1], strides = [1, 1]} : vector<8x32xf32> to vector<8x1xf32>
    %159 = vector.extract_strided_slice %157 {offsets = [0, 30], sizes = [8, 1], strides = [1, 1]} : vector<8x32xf32> to vector<8x1xf32>
    %160 = tpu.concatenate %158, %157, %159 in 1 : vector<8x1xf32>, vector<8x32xf32>, vector<8x1xf32> -> vector<8x34xf32>
    %161 = vector.extract_strided_slice %5 {offsets = [0, 96], sizes = [8, 16], strides = [1, 1]} : vector<8x256xf32> to vector<8x16xf32>
    %162 = vector.extract_strided_slice %5 {offsets = [0, 112], sizes = [8, 16], strides = [1, 1]} : vector<8x256xf32> to vector<8x16xf32>
    %cst_49 = arith.constant 2.500000e-01 : f32
    %163 = vector.broadcast %cst_49 : f32 to vector<8x16xf32>
    %164 = arith.mulf %163, %161 : vector<8x16xf32>
    %cst_50 = arith.constant 7.500000e-01 : f32
    %165 = vector.broadcast %cst_50 : f32 to vector<8x16xf32>
    %166 = arith.mulf %165, %162 : vector<8x16xf32>
    %167 = arith.addf %164, %166 : vector<8x16xf32>
    %cst_51 = arith.constant dense<0.000000e+00> : vector<8x32xf32>
    %168 = tpu.matmul %167, %6, %cst_51 {dimension_numbers = #tpu.dot_dimension_numbers<[1], [0], [0], [1], [0, 0, 1, 1], [], []>} : vector<8x16xf32>, vector<16x32xf32>, vector<8x32xf32> -> vector<8x32xf32>
    %169 = vector.extract_strided_slice %168 {offsets = [0, 1], sizes = [8, 1], strides = [1, 1]} : vector<8x32xf32> to vector<8x1xf32>
    %170 = vector.extract_strided_slice %168 {offsets = [0, 30], sizes = [8, 1], strides = [1, 1]} : vector<8x32xf32> to vector<8x1xf32>
    %171 = tpu.concatenate %169, %168, %170 in 1 : vector<8x1xf32>, vector<8x32xf32>, vector<8x1xf32> -> vector<8x34xf32>
    %172 = vector.extract_strided_slice %5 {offsets = [0, 112], sizes = [8, 16], strides = [1, 1]} : vector<8x256xf32> to vector<8x16xf32>
    %173 = vector.extract_strided_slice %5 {offsets = [0, 128], sizes = [8, 16], strides = [1, 1]} : vector<8x256xf32> to vector<8x16xf32>
    %cst_52 = arith.constant 7.500000e-01 : f32
    %174 = vector.broadcast %cst_52 : f32 to vector<8x16xf32>
    %175 = arith.mulf %174, %172 : vector<8x16xf32>
    %cst_53 = arith.constant 2.500000e-01 : f32
    %176 = vector.broadcast %cst_53 : f32 to vector<8x16xf32>
    %177 = arith.mulf %176, %173 : vector<8x16xf32>
    %178 = arith.addf %175, %177 : vector<8x16xf32>
    %cst_54 = arith.constant dense<0.000000e+00> : vector<8x32xf32>
    %179 = tpu.matmul %178, %6, %cst_54 {dimension_numbers = #tpu.dot_dimension_numbers<[1], [0], [0], [1], [0, 0, 1, 1], [], []>} : vector<8x16xf32>, vector<16x32xf32>, vector<8x32xf32> -> vector<8x32xf32>
    %180 = vector.extract_strided_slice %179 {offsets = [0, 1], sizes = [8, 1], strides = [1, 1]} : vector<8x32xf32> to vector<8x1xf32>
    %181 = vector.extract_strided_slice %179 {offsets = [0, 30], sizes = [8, 1], strides = [1, 1]} : vector<8x32xf32> to vector<8x1xf32>
    %182 = tpu.concatenate %180, %179, %181 in 1 : vector<8x1xf32>, vector<8x32xf32>, vector<8x1xf32> -> vector<8x34xf32>
    %183 = vector.extract_strided_slice %5 {offsets = [0, 112], sizes = [8, 16], strides = [1, 1]} : vector<8x256xf32> to vector<8x16xf32>
    %184 = vector.extract_strided_slice %5 {offsets = [0, 128], sizes = [8, 16], strides = [1, 1]} : vector<8x256xf32> to vector<8x16xf32>
    %cst_55 = arith.constant 2.500000e-01 : f32
    %185 = vector.broadcast %cst_55 : f32 to vector<8x16xf32>
    %186 = arith.mulf %185, %183 : vector<8x16xf32>
    %cst_56 = arith.constant 7.500000e-01 : f32
    %187 = vector.broadcast %cst_56 : f32 to vector<8x16xf32>
    %188 = arith.mulf %187, %184 : vector<8x16xf32>
    %189 = arith.addf %186, %188 : vector<8x16xf32>
    %cst_57 = arith.constant dense<0.000000e+00> : vector<8x32xf32>
    %190 = tpu.matmul %189, %6, %cst_57 {dimension_numbers = #tpu.dot_dimension_numbers<[1], [0], [0], [1], [0, 0, 1, 1], [], []>} : vector<8x16xf32>, vector<16x32xf32>, vector<8x32xf32> -> vector<8x32xf32>
    %191 = vector.extract_strided_slice %190 {offsets = [0, 1], sizes = [8, 1], strides = [1, 1]} : vector<8x32xf32> to vector<8x1xf32>
    %192 = vector.extract_strided_slice %190 {offsets = [0, 30], sizes = [8, 1], strides = [1, 1]} : vector<8x32xf32> to vector<8x1xf32>
    %193 = tpu.concatenate %191, %190, %192 in 1 : vector<8x1xf32>, vector<8x32xf32>, vector<8x1xf32> -> vector<8x34xf32>
    %194 = vector.extract_strided_slice %5 {offsets = [0, 128], sizes = [8, 16], strides = [1, 1]} : vector<8x256xf32> to vector<8x16xf32>
    %195 = vector.extract_strided_slice %5 {offsets = [0, 144], sizes = [8, 16], strides = [1, 1]} : vector<8x256xf32> to vector<8x16xf32>
    %cst_58 = arith.constant 7.500000e-01 : f32
    %196 = vector.broadcast %cst_58 : f32 to vector<8x16xf32>
    %197 = arith.mulf %196, %194 : vector<8x16xf32>
    %cst_59 = arith.constant 2.500000e-01 : f32
    %198 = vector.broadcast %cst_59 : f32 to vector<8x16xf32>
    %199 = arith.mulf %198, %195 : vector<8x16xf32>
    %200 = arith.addf %197, %199 : vector<8x16xf32>
    %cst_60 = arith.constant dense<0.000000e+00> : vector<8x32xf32>
    %201 = tpu.matmul %200, %6, %cst_60 {dimension_numbers = #tpu.dot_dimension_numbers<[1], [0], [0], [1], [0, 0, 1, 1], [], []>} : vector<8x16xf32>, vector<16x32xf32>, vector<8x32xf32> -> vector<8x32xf32>
    %202 = vector.extract_strided_slice %201 {offsets = [0, 1], sizes = [8, 1], strides = [1, 1]} : vector<8x32xf32> to vector<8x1xf32>
    %203 = vector.extract_strided_slice %201 {offsets = [0, 30], sizes = [8, 1], strides = [1, 1]} : vector<8x32xf32> to vector<8x1xf32>
    %204 = tpu.concatenate %202, %201, %203 in 1 : vector<8x1xf32>, vector<8x32xf32>, vector<8x1xf32> -> vector<8x34xf32>
    %205 = vector.extract_strided_slice %5 {offsets = [0, 128], sizes = [8, 16], strides = [1, 1]} : vector<8x256xf32> to vector<8x16xf32>
    %206 = vector.extract_strided_slice %5 {offsets = [0, 144], sizes = [8, 16], strides = [1, 1]} : vector<8x256xf32> to vector<8x16xf32>
    %cst_61 = arith.constant 2.500000e-01 : f32
    %207 = vector.broadcast %cst_61 : f32 to vector<8x16xf32>
    %208 = arith.mulf %207, %205 : vector<8x16xf32>
    %cst_62 = arith.constant 7.500000e-01 : f32
    %209 = vector.broadcast %cst_62 : f32 to vector<8x16xf32>
    %210 = arith.mulf %209, %206 : vector<8x16xf32>
    %211 = arith.addf %208, %210 : vector<8x16xf32>
    %cst_63 = arith.constant dense<0.000000e+00> : vector<8x32xf32>
    %212 = tpu.matmul %211, %6, %cst_63 {dimension_numbers = #tpu.dot_dimension_numbers<[1], [0], [0], [1], [0, 0, 1, 1], [], []>} : vector<8x16xf32>, vector<16x32xf32>, vector<8x32xf32> -> vector<8x32xf32>
    %213 = vector.extract_strided_slice %212 {offsets = [0, 1], sizes = [8, 1], strides = [1, 1]} : vector<8x32xf32> to vector<8x1xf32>
    %214 = vector.extract_strided_slice %212 {offsets = [0, 30], sizes = [8, 1], strides = [1, 1]} : vector<8x32xf32> to vector<8x1xf32>
    %215 = tpu.concatenate %213, %212, %214 in 1 : vector<8x1xf32>, vector<8x32xf32>, vector<8x1xf32> -> vector<8x34xf32>
    %216 = vector.extract_strided_slice %5 {offsets = [0, 144], sizes = [8, 16], strides = [1, 1]} : vector<8x256xf32> to vector<8x16xf32>
    %217 = vector.extract_strided_slice %5 {offsets = [0, 160], sizes = [8, 16], strides = [1, 1]} : vector<8x256xf32> to vector<8x16xf32>
    %cst_64 = arith.constant 7.500000e-01 : f32
    %218 = vector.broadcast %cst_64 : f32 to vector<8x16xf32>
    %219 = arith.mulf %218, %216 : vector<8x16xf32>
    %cst_65 = arith.constant 2.500000e-01 : f32
    %220 = vector.broadcast %cst_65 : f32 to vector<8x16xf32>
    %221 = arith.mulf %220, %217 : vector<8x16xf32>
    %222 = arith.addf %219, %221 : vector<8x16xf32>
    %cst_66 = arith.constant dense<0.000000e+00> : vector<8x32xf32>
    %223 = tpu.matmul %222, %6, %cst_66 {dimension_numbers = #tpu.dot_dimension_numbers<[1], [0], [0], [1], [0, 0, 1, 1], [], []>} : vector<8x16xf32>, vector<16x32xf32>, vector<8x32xf32> -> vector<8x32xf32>
    %224 = vector.extract_strided_slice %223 {offsets = [0, 1], sizes = [8, 1], strides = [1, 1]} : vector<8x32xf32> to vector<8x1xf32>
    %225 = vector.extract_strided_slice %223 {offsets = [0, 30], sizes = [8, 1], strides = [1, 1]} : vector<8x32xf32> to vector<8x1xf32>
    %226 = tpu.concatenate %224, %223, %225 in 1 : vector<8x1xf32>, vector<8x32xf32>, vector<8x1xf32> -> vector<8x34xf32>
    %227 = vector.extract_strided_slice %5 {offsets = [0, 144], sizes = [8, 16], strides = [1, 1]} : vector<8x256xf32> to vector<8x16xf32>
    %228 = vector.extract_strided_slice %5 {offsets = [0, 160], sizes = [8, 16], strides = [1, 1]} : vector<8x256xf32> to vector<8x16xf32>
    %cst_67 = arith.constant 2.500000e-01 : f32
    %229 = vector.broadcast %cst_67 : f32 to vector<8x16xf32>
    %230 = arith.mulf %229, %227 : vector<8x16xf32>
    %cst_68 = arith.constant 7.500000e-01 : f32
    %231 = vector.broadcast %cst_68 : f32 to vector<8x16xf32>
    %232 = arith.mulf %231, %228 : vector<8x16xf32>
    %233 = arith.addf %230, %232 : vector<8x16xf32>
    %cst_69 = arith.constant dense<0.000000e+00> : vector<8x32xf32>
    %234 = tpu.matmul %233, %6, %cst_69 {dimension_numbers = #tpu.dot_dimension_numbers<[1], [0], [0], [1], [0, 0, 1, 1], [], []>} : vector<8x16xf32>, vector<16x32xf32>, vector<8x32xf32> -> vector<8x32xf32>
    %235 = vector.extract_strided_slice %234 {offsets = [0, 1], sizes = [8, 1], strides = [1, 1]} : vector<8x32xf32> to vector<8x1xf32>
    %236 = vector.extract_strided_slice %234 {offsets = [0, 30], sizes = [8, 1], strides = [1, 1]} : vector<8x32xf32> to vector<8x1xf32>
    %237 = tpu.concatenate %235, %234, %236 in 1 : vector<8x1xf32>, vector<8x32xf32>, vector<8x1xf32> -> vector<8x34xf32>
    %238 = vector.extract_strided_slice %5 {offsets = [0, 160], sizes = [8, 16], strides = [1, 1]} : vector<8x256xf32> to vector<8x16xf32>
    %239 = vector.extract_strided_slice %5 {offsets = [0, 176], sizes = [8, 16], strides = [1, 1]} : vector<8x256xf32> to vector<8x16xf32>
    %cst_70 = arith.constant 7.500000e-01 : f32
    %240 = vector.broadcast %cst_70 : f32 to vector<8x16xf32>
    %241 = arith.mulf %240, %238 : vector<8x16xf32>
    %cst_71 = arith.constant 2.500000e-01 : f32
    %242 = vector.broadcast %cst_71 : f32 to vector<8x16xf32>
    %243 = arith.mulf %242, %239 : vector<8x16xf32>
    %244 = arith.addf %241, %243 : vector<8x16xf32>
    %cst_72 = arith.constant dense<0.000000e+00> : vector<8x32xf32>
    %245 = tpu.matmul %244, %6, %cst_72 {dimension_numbers = #tpu.dot_dimension_numbers<[1], [0], [0], [1], [0, 0, 1, 1], [], []>} : vector<8x16xf32>, vector<16x32xf32>, vector<8x32xf32> -> vector<8x32xf32>
    %246 = vector.extract_strided_slice %245 {offsets = [0, 1], sizes = [8, 1], strides = [1, 1]} : vector<8x32xf32> to vector<8x1xf32>
    %247 = vector.extract_strided_slice %245 {offsets = [0, 30], sizes = [8, 1], strides = [1, 1]} : vector<8x32xf32> to vector<8x1xf32>
    %248 = tpu.concatenate %246, %245, %247 in 1 : vector<8x1xf32>, vector<8x32xf32>, vector<8x1xf32> -> vector<8x34xf32>
    %249 = vector.extract_strided_slice %5 {offsets = [0, 160], sizes = [8, 16], strides = [1, 1]} : vector<8x256xf32> to vector<8x16xf32>
    %250 = vector.extract_strided_slice %5 {offsets = [0, 176], sizes = [8, 16], strides = [1, 1]} : vector<8x256xf32> to vector<8x16xf32>
    %cst_73 = arith.constant 2.500000e-01 : f32
    %251 = vector.broadcast %cst_73 : f32 to vector<8x16xf32>
    %252 = arith.mulf %251, %249 : vector<8x16xf32>
    %cst_74 = arith.constant 7.500000e-01 : f32
    %253 = vector.broadcast %cst_74 : f32 to vector<8x16xf32>
    %254 = arith.mulf %253, %250 : vector<8x16xf32>
    %255 = arith.addf %252, %254 : vector<8x16xf32>
    %cst_75 = arith.constant dense<0.000000e+00> : vector<8x32xf32>
    %256 = tpu.matmul %255, %6, %cst_75 {dimension_numbers = #tpu.dot_dimension_numbers<[1], [0], [0], [1], [0, 0, 1, 1], [], []>} : vector<8x16xf32>, vector<16x32xf32>, vector<8x32xf32> -> vector<8x32xf32>
    %257 = vector.extract_strided_slice %256 {offsets = [0, 1], sizes = [8, 1], strides = [1, 1]} : vector<8x32xf32> to vector<8x1xf32>
    %258 = vector.extract_strided_slice %256 {offsets = [0, 30], sizes = [8, 1], strides = [1, 1]} : vector<8x32xf32> to vector<8x1xf32>
    %259 = tpu.concatenate %257, %256, %258 in 1 : vector<8x1xf32>, vector<8x32xf32>, vector<8x1xf32> -> vector<8x34xf32>
    %260 = vector.extract_strided_slice %5 {offsets = [0, 176], sizes = [8, 16], strides = [1, 1]} : vector<8x256xf32> to vector<8x16xf32>
    %261 = vector.extract_strided_slice %5 {offsets = [0, 192], sizes = [8, 16], strides = [1, 1]} : vector<8x256xf32> to vector<8x16xf32>
    %cst_76 = arith.constant 7.500000e-01 : f32
    %262 = vector.broadcast %cst_76 : f32 to vector<8x16xf32>
    %263 = arith.mulf %262, %260 : vector<8x16xf32>
    %cst_77 = arith.constant 2.500000e-01 : f32
    %264 = vector.broadcast %cst_77 : f32 to vector<8x16xf32>
    %265 = arith.mulf %264, %261 : vector<8x16xf32>
    %266 = arith.addf %263, %265 : vector<8x16xf32>
    %cst_78 = arith.constant dense<0.000000e+00> : vector<8x32xf32>
    %267 = tpu.matmul %266, %6, %cst_78 {dimension_numbers = #tpu.dot_dimension_numbers<[1], [0], [0], [1], [0, 0, 1, 1], [], []>} : vector<8x16xf32>, vector<16x32xf32>, vector<8x32xf32> -> vector<8x32xf32>
    %268 = vector.extract_strided_slice %267 {offsets = [0, 1], sizes = [8, 1], strides = [1, 1]} : vector<8x32xf32> to vector<8x1xf32>
    %269 = vector.extract_strided_slice %267 {offsets = [0, 30], sizes = [8, 1], strides = [1, 1]} : vector<8x32xf32> to vector<8x1xf32>
    %270 = tpu.concatenate %268, %267, %269 in 1 : vector<8x1xf32>, vector<8x32xf32>, vector<8x1xf32> -> vector<8x34xf32>
    %271 = vector.extract_strided_slice %5 {offsets = [0, 176], sizes = [8, 16], strides = [1, 1]} : vector<8x256xf32> to vector<8x16xf32>
    %272 = vector.extract_strided_slice %5 {offsets = [0, 192], sizes = [8, 16], strides = [1, 1]} : vector<8x256xf32> to vector<8x16xf32>
    %cst_79 = arith.constant 2.500000e-01 : f32
    %273 = vector.broadcast %cst_79 : f32 to vector<8x16xf32>
    %274 = arith.mulf %273, %271 : vector<8x16xf32>
    %cst_80 = arith.constant 7.500000e-01 : f32
    %275 = vector.broadcast %cst_80 : f32 to vector<8x16xf32>
    %276 = arith.mulf %275, %272 : vector<8x16xf32>
    %277 = arith.addf %274, %276 : vector<8x16xf32>
    %cst_81 = arith.constant dense<0.000000e+00> : vector<8x32xf32>
    %278 = tpu.matmul %277, %6, %cst_81 {dimension_numbers = #tpu.dot_dimension_numbers<[1], [0], [0], [1], [0, 0, 1, 1], [], []>} : vector<8x16xf32>, vector<16x32xf32>, vector<8x32xf32> -> vector<8x32xf32>
    %279 = vector.extract_strided_slice %278 {offsets = [0, 1], sizes = [8, 1], strides = [1, 1]} : vector<8x32xf32> to vector<8x1xf32>
    %280 = vector.extract_strided_slice %278 {offsets = [0, 30], sizes = [8, 1], strides = [1, 1]} : vector<8x32xf32> to vector<8x1xf32>
    %281 = tpu.concatenate %279, %278, %280 in 1 : vector<8x1xf32>, vector<8x32xf32>, vector<8x1xf32> -> vector<8x34xf32>
    %282 = vector.extract_strided_slice %5 {offsets = [0, 192], sizes = [8, 16], strides = [1, 1]} : vector<8x256xf32> to vector<8x16xf32>
    %283 = vector.extract_strided_slice %5 {offsets = [0, 208], sizes = [8, 16], strides = [1, 1]} : vector<8x256xf32> to vector<8x16xf32>
    %cst_82 = arith.constant 7.500000e-01 : f32
    %284 = vector.broadcast %cst_82 : f32 to vector<8x16xf32>
    %285 = arith.mulf %284, %282 : vector<8x16xf32>
    %cst_83 = arith.constant 2.500000e-01 : f32
    %286 = vector.broadcast %cst_83 : f32 to vector<8x16xf32>
    %287 = arith.mulf %286, %283 : vector<8x16xf32>
    %288 = arith.addf %285, %287 : vector<8x16xf32>
    %cst_84 = arith.constant dense<0.000000e+00> : vector<8x32xf32>
    %289 = tpu.matmul %288, %6, %cst_84 {dimension_numbers = #tpu.dot_dimension_numbers<[1], [0], [0], [1], [0, 0, 1, 1], [], []>} : vector<8x16xf32>, vector<16x32xf32>, vector<8x32xf32> -> vector<8x32xf32>
    %290 = vector.extract_strided_slice %289 {offsets = [0, 1], sizes = [8, 1], strides = [1, 1]} : vector<8x32xf32> to vector<8x1xf32>
    %291 = vector.extract_strided_slice %289 {offsets = [0, 30], sizes = [8, 1], strides = [1, 1]} : vector<8x32xf32> to vector<8x1xf32>
    %292 = tpu.concatenate %290, %289, %291 in 1 : vector<8x1xf32>, vector<8x32xf32>, vector<8x1xf32> -> vector<8x34xf32>
    %293 = vector.extract_strided_slice %5 {offsets = [0, 192], sizes = [8, 16], strides = [1, 1]} : vector<8x256xf32> to vector<8x16xf32>
    %294 = vector.extract_strided_slice %5 {offsets = [0, 208], sizes = [8, 16], strides = [1, 1]} : vector<8x256xf32> to vector<8x16xf32>
    %cst_85 = arith.constant 2.500000e-01 : f32
    %295 = vector.broadcast %cst_85 : f32 to vector<8x16xf32>
    %296 = arith.mulf %295, %293 : vector<8x16xf32>
    %cst_86 = arith.constant 7.500000e-01 : f32
    %297 = vector.broadcast %cst_86 : f32 to vector<8x16xf32>
    %298 = arith.mulf %297, %294 : vector<8x16xf32>
    %299 = arith.addf %296, %298 : vector<8x16xf32>
    %cst_87 = arith.constant dense<0.000000e+00> : vector<8x32xf32>
    %300 = tpu.matmul %299, %6, %cst_87 {dimension_numbers = #tpu.dot_dimension_numbers<[1], [0], [0], [1], [0, 0, 1, 1], [], []>} : vector<8x16xf32>, vector<16x32xf32>, vector<8x32xf32> -> vector<8x32xf32>
    %301 = vector.extract_strided_slice %300 {offsets = [0, 1], sizes = [8, 1], strides = [1, 1]} : vector<8x32xf32> to vector<8x1xf32>
    %302 = vector.extract_strided_slice %300 {offsets = [0, 30], sizes = [8, 1], strides = [1, 1]} : vector<8x32xf32> to vector<8x1xf32>
    %303 = tpu.concatenate %301, %300, %302 in 1 : vector<8x1xf32>, vector<8x32xf32>, vector<8x1xf32> -> vector<8x34xf32>
    %304 = vector.extract_strided_slice %5 {offsets = [0, 208], sizes = [8, 16], strides = [1, 1]} : vector<8x256xf32> to vector<8x16xf32>
    %305 = vector.extract_strided_slice %5 {offsets = [0, 224], sizes = [8, 16], strides = [1, 1]} : vector<8x256xf32> to vector<8x16xf32>
    %cst_88 = arith.constant 7.500000e-01 : f32
    %306 = vector.broadcast %cst_88 : f32 to vector<8x16xf32>
    %307 = arith.mulf %306, %304 : vector<8x16xf32>
    %cst_89 = arith.constant 2.500000e-01 : f32
    %308 = vector.broadcast %cst_89 : f32 to vector<8x16xf32>
    %309 = arith.mulf %308, %305 : vector<8x16xf32>
    %310 = arith.addf %307, %309 : vector<8x16xf32>
    %cst_90 = arith.constant dense<0.000000e+00> : vector<8x32xf32>
    %311 = tpu.matmul %310, %6, %cst_90 {dimension_numbers = #tpu.dot_dimension_numbers<[1], [0], [0], [1], [0, 0, 1, 1], [], []>} : vector<8x16xf32>, vector<16x32xf32>, vector<8x32xf32> -> vector<8x32xf32>
    %312 = vector.extract_strided_slice %311 {offsets = [0, 1], sizes = [8, 1], strides = [1, 1]} : vector<8x32xf32> to vector<8x1xf32>
    %313 = vector.extract_strided_slice %311 {offsets = [0, 30], sizes = [8, 1], strides = [1, 1]} : vector<8x32xf32> to vector<8x1xf32>
    %314 = tpu.concatenate %312, %311, %313 in 1 : vector<8x1xf32>, vector<8x32xf32>, vector<8x1xf32> -> vector<8x34xf32>
    %315 = vector.extract_strided_slice %5 {offsets = [0, 208], sizes = [8, 16], strides = [1, 1]} : vector<8x256xf32> to vector<8x16xf32>
    %316 = vector.extract_strided_slice %5 {offsets = [0, 224], sizes = [8, 16], strides = [1, 1]} : vector<8x256xf32> to vector<8x16xf32>
    %cst_91 = arith.constant 2.500000e-01 : f32
    %317 = vector.broadcast %cst_91 : f32 to vector<8x16xf32>
    %318 = arith.mulf %317, %315 : vector<8x16xf32>
    %cst_92 = arith.constant 7.500000e-01 : f32
    %319 = vector.broadcast %cst_92 : f32 to vector<8x16xf32>
    %320 = arith.mulf %319, %316 : vector<8x16xf32>
    %321 = arith.addf %318, %320 : vector<8x16xf32>
    %cst_93 = arith.constant dense<0.000000e+00> : vector<8x32xf32>
    %322 = tpu.matmul %321, %6, %cst_93 {dimension_numbers = #tpu.dot_dimension_numbers<[1], [0], [0], [1], [0, 0, 1, 1], [], []>} : vector<8x16xf32>, vector<16x32xf32>, vector<8x32xf32> -> vector<8x32xf32>
    %323 = vector.extract_strided_slice %322 {offsets = [0, 1], sizes = [8, 1], strides = [1, 1]} : vector<8x32xf32> to vector<8x1xf32>
    %324 = vector.extract_strided_slice %322 {offsets = [0, 30], sizes = [8, 1], strides = [1, 1]} : vector<8x32xf32> to vector<8x1xf32>
    %325 = tpu.concatenate %323, %322, %324 in 1 : vector<8x1xf32>, vector<8x32xf32>, vector<8x1xf32> -> vector<8x34xf32>
    %326 = vector.extract_strided_slice %5 {offsets = [0, 224], sizes = [8, 16], strides = [1, 1]} : vector<8x256xf32> to vector<8x16xf32>
    %327 = vector.extract_strided_slice %5 {offsets = [0, 240], sizes = [8, 16], strides = [1, 1]} : vector<8x256xf32> to vector<8x16xf32>
    %cst_94 = arith.constant 7.500000e-01 : f32
    %328 = vector.broadcast %cst_94 : f32 to vector<8x16xf32>
    %329 = arith.mulf %328, %326 : vector<8x16xf32>
    %cst_95 = arith.constant 2.500000e-01 : f32
    %330 = vector.broadcast %cst_95 : f32 to vector<8x16xf32>
    %331 = arith.mulf %330, %327 : vector<8x16xf32>
    %332 = arith.addf %329, %331 : vector<8x16xf32>
    %cst_96 = arith.constant dense<0.000000e+00> : vector<8x32xf32>
    %333 = tpu.matmul %332, %6, %cst_96 {dimension_numbers = #tpu.dot_dimension_numbers<[1], [0], [0], [1], [0, 0, 1, 1], [], []>} : vector<8x16xf32>, vector<16x32xf32>, vector<8x32xf32> -> vector<8x32xf32>
    %334 = vector.extract_strided_slice %333 {offsets = [0, 1], sizes = [8, 1], strides = [1, 1]} : vector<8x32xf32> to vector<8x1xf32>
    %335 = vector.extract_strided_slice %333 {offsets = [0, 30], sizes = [8, 1], strides = [1, 1]} : vector<8x32xf32> to vector<8x1xf32>
    %336 = tpu.concatenate %334, %333, %335 in 1 : vector<8x1xf32>, vector<8x32xf32>, vector<8x1xf32> -> vector<8x34xf32>
    %337 = vector.extract_strided_slice %5 {offsets = [0, 224], sizes = [8, 16], strides = [1, 1]} : vector<8x256xf32> to vector<8x16xf32>
    %338 = vector.extract_strided_slice %5 {offsets = [0, 240], sizes = [8, 16], strides = [1, 1]} : vector<8x256xf32> to vector<8x16xf32>
    %cst_97 = arith.constant 2.500000e-01 : f32
    %339 = vector.broadcast %cst_97 : f32 to vector<8x16xf32>
    %340 = arith.mulf %339, %337 : vector<8x16xf32>
    %cst_98 = arith.constant 7.500000e-01 : f32
    %341 = vector.broadcast %cst_98 : f32 to vector<8x16xf32>
    %342 = arith.mulf %341, %338 : vector<8x16xf32>
    %343 = arith.addf %340, %342 : vector<8x16xf32>
    %cst_99 = arith.constant dense<0.000000e+00> : vector<8x32xf32>
    %344 = tpu.matmul %343, %6, %cst_99 {dimension_numbers = #tpu.dot_dimension_numbers<[1], [0], [0], [1], [0, 0, 1, 1], [], []>} : vector<8x16xf32>, vector<16x32xf32>, vector<8x32xf32> -> vector<8x32xf32>
    %345 = vector.extract_strided_slice %344 {offsets = [0, 1], sizes = [8, 1], strides = [1, 1]} : vector<8x32xf32> to vector<8x1xf32>
    %346 = vector.extract_strided_slice %344 {offsets = [0, 30], sizes = [8, 1], strides = [1, 1]} : vector<8x32xf32> to vector<8x1xf32>
    %347 = tpu.concatenate %345, %344, %346 in 1 : vector<8x1xf32>, vector<8x32xf32>, vector<8x1xf32> -> vector<8x34xf32>
    %348 = vector.extract_strided_slice %5 {offsets = [0, 240], sizes = [8, 16], strides = [1, 1]} : vector<8x256xf32> to vector<8x16xf32>
    %349 = vector.extract_strided_slice %5 {offsets = [0, 240], sizes = [8, 16], strides = [1, 1]} : vector<8x256xf32> to vector<8x16xf32>
    %cst_100 = arith.constant 7.500000e-01 : f32
    %350 = vector.broadcast %cst_100 : f32 to vector<8x16xf32>
    %351 = arith.mulf %350, %348 : vector<8x16xf32>
    %cst_101 = arith.constant 2.500000e-01 : f32
    %352 = vector.broadcast %cst_101 : f32 to vector<8x16xf32>
    %353 = arith.mulf %352, %349 : vector<8x16xf32>
    %354 = arith.addf %351, %353 : vector<8x16xf32>
    %cst_102 = arith.constant dense<0.000000e+00> : vector<8x32xf32>
    %355 = tpu.matmul %354, %6, %cst_102 {dimension_numbers = #tpu.dot_dimension_numbers<[1], [0], [0], [1], [0, 0, 1, 1], [], []>} : vector<8x16xf32>, vector<16x32xf32>, vector<8x32xf32> -> vector<8x32xf32>
    %356 = vector.extract_strided_slice %355 {offsets = [0, 1], sizes = [8, 1], strides = [1, 1]} : vector<8x32xf32> to vector<8x1xf32>
    %357 = vector.extract_strided_slice %355 {offsets = [0, 30], sizes = [8, 1], strides = [1, 1]} : vector<8x32xf32> to vector<8x1xf32>
    %358 = tpu.concatenate %356, %355, %357 in 1 : vector<8x1xf32>, vector<8x32xf32>, vector<8x1xf32> -> vector<8x34xf32>
    %359 = tpu.concatenate %28, %17, %28, %39, %50, %61, %72, %83, %94, %105, %116, %127, %138, %149, %160, %171 in 1 : vector<8x34xf32>, vector<8x34xf32>, vector<8x34xf32>, vector<8x34xf32>, vector<8x34xf32>, vector<8x34xf32>, vector<8x34xf32>, vector<8x34xf32>, vector<8x34xf32>, vector<8x34xf32>, vector<8x34xf32>, vector<8x34xf32>, vector<8x34xf32>, vector<8x34xf32>, vector<8x34xf32>, vector<8x34xf32> -> vector<8x544xf32>
    %360 = tpu.concatenate %182, %193, %204, %215, %226, %237, %248, %259, %270, %281, %292, %303, %314, %325, %336, %347 in 1 : vector<8x34xf32>, vector<8x34xf32>, vector<8x34xf32>, vector<8x34xf32>, vector<8x34xf32>, vector<8x34xf32>, vector<8x34xf32>, vector<8x34xf32>, vector<8x34xf32>, vector<8x34xf32>, vector<8x34xf32>, vector<8x34xf32>, vector<8x34xf32>, vector<8x34xf32>, vector<8x34xf32>, vector<8x34xf32> -> vector<8x544xf32>
    %361 = tpu.concatenate %358, %347 in 1 : vector<8x34xf32>, vector<8x34xf32> -> vector<8x68xf32>
    %362 = tpu.concatenate %359, %360, %361 in 1 : vector<8x544xf32>, vector<8x544xf32>, vector<8x68xf32> -> vector<8x1156xf32>
    %363 = arith.truncf %362 : vector<8x1156xf32> to vector<8x1156xbf16>
    %cst_103 = arith.constant 0.000000e+00 : bf16
    %364 = vector.broadcast %cst_103 : bf16 to vector<8x70xbf16>
    %365 = tpu.concatenate %363, %364 in 1 : vector<8x1156xbf16>, vector<8x70xbf16> -> vector<8x1226xbf16>
    %cst_104 = arith.constant 0.000000e+00 : f32
    %366 = vector.broadcast %cst_104 : f32 to vector<8x1156xf32>
    %c0_105 = arith.constant 0 : index
    %c0_106 = arith.constant 0 : index
    %c0_107 = arith.constant 0 : index
    %c0_108 = arith.constant 0 : index
    %367 = vector.load %arg4[%c0_105, %c0_106, %c0_107, %c0_108] : memref<3x3x8x8xbf16, #tpu.memory_space<vmem>>, vector<1x1x8x8xbf16>
    %368 = vector.shape_cast %367 : vector<1x1x8x8xbf16> to vector<8x8xbf16>
    %369 = vector.extract_strided_slice %365 {offsets = [0, 0], sizes = [8, 1156], strides = [1, 1]} : vector<8x1226xbf16> to vector<8x1156xbf16>
    %cst_109 = arith.constant dense<0.000000e+00> : vector<8x1156xf32>
    %370 = tpu.matmul %368, %369, %cst_109 {dimension_numbers = #tpu.dot_dimension_numbers<[1], [0], [0], [1], [0, 0, 1, 1], [], []>} : vector<8x8xbf16>, vector<8x1156xbf16>, vector<8x1156xf32> -> vector<8x1156xf32>
    %371 = arith.addf %366, %370 : vector<8x1156xf32>
    %c0_110 = arith.constant 0 : index
    %c1 = arith.constant 1 : index
    %c0_111 = arith.constant 0 : index
    %c0_112 = arith.constant 0 : index
    %372 = vector.load %arg4[%c0_110, %c1, %c0_111, %c0_112] : memref<3x3x8x8xbf16, #tpu.memory_space<vmem>>, vector<1x1x8x8xbf16>
    %373 = vector.shape_cast %372 : vector<1x1x8x8xbf16> to vector<8x8xbf16>
    %374 = vector.extract_strided_slice %365 {offsets = [0, 1], sizes = [8, 1156], strides = [1, 1]} : vector<8x1226xbf16> to vector<8x1156xbf16>
    %cst_113 = arith.constant dense<0.000000e+00> : vector<8x1156xf32>
    %375 = tpu.matmul %373, %374, %cst_113 {dimension_numbers = #tpu.dot_dimension_numbers<[1], [0], [0], [1], [0, 0, 1, 1], [], []>} : vector<8x8xbf16>, vector<8x1156xbf16>, vector<8x1156xf32> -> vector<8x1156xf32>
    %376 = arith.addf %371, %375 : vector<8x1156xf32>
    %c0_114 = arith.constant 0 : index
    %c2 = arith.constant 2 : index
    %c0_115 = arith.constant 0 : index
    %c0_116 = arith.constant 0 : index
    %377 = vector.load %arg4[%c0_114, %c2, %c0_115, %c0_116] : memref<3x3x8x8xbf16, #tpu.memory_space<vmem>>, vector<1x1x8x8xbf16>
    %378 = vector.shape_cast %377 : vector<1x1x8x8xbf16> to vector<8x8xbf16>
    %379 = vector.extract_strided_slice %365 {offsets = [0, 2], sizes = [8, 1156], strides = [1, 1]} : vector<8x1226xbf16> to vector<8x1156xbf16>
    %cst_117 = arith.constant dense<0.000000e+00> : vector<8x1156xf32>
    %380 = tpu.matmul %378, %379, %cst_117 {dimension_numbers = #tpu.dot_dimension_numbers<[1], [0], [0], [1], [0, 0, 1, 1], [], []>} : vector<8x8xbf16>, vector<8x1156xbf16>, vector<8x1156xf32> -> vector<8x1156xf32>
    %381 = arith.addf %376, %380 : vector<8x1156xf32>
    %c1_118 = arith.constant 1 : index
    %c0_119 = arith.constant 0 : index
    %c0_120 = arith.constant 0 : index
    %c0_121 = arith.constant 0 : index
    %382 = vector.load %arg4[%c1_118, %c0_119, %c0_120, %c0_121] : memref<3x3x8x8xbf16, #tpu.memory_space<vmem>>, vector<1x1x8x8xbf16>
    %383 = vector.shape_cast %382 : vector<1x1x8x8xbf16> to vector<8x8xbf16>
    %384 = vector.extract_strided_slice %365 {offsets = [0, 34], sizes = [8, 1156], strides = [1, 1]} : vector<8x1226xbf16> to vector<8x1156xbf16>
    %cst_122 = arith.constant dense<0.000000e+00> : vector<8x1156xf32>
    %385 = tpu.matmul %383, %384, %cst_122 {dimension_numbers = #tpu.dot_dimension_numbers<[1], [0], [0], [1], [0, 0, 1, 1], [], []>} : vector<8x8xbf16>, vector<8x1156xbf16>, vector<8x1156xf32> -> vector<8x1156xf32>
    %386 = arith.addf %381, %385 : vector<8x1156xf32>
    %c1_123 = arith.constant 1 : index
    %c1_124 = arith.constant 1 : index
    %c0_125 = arith.constant 0 : index
    %c0_126 = arith.constant 0 : index
    %387 = vector.load %arg4[%c1_123, %c1_124, %c0_125, %c0_126] : memref<3x3x8x8xbf16, #tpu.memory_space<vmem>>, vector<1x1x8x8xbf16>
    %388 = vector.shape_cast %387 : vector<1x1x8x8xbf16> to vector<8x8xbf16>
    %389 = vector.extract_strided_slice %365 {offsets = [0, 35], sizes = [8, 1156], strides = [1, 1]} : vector<8x1226xbf16> to vector<8x1156xbf16>
    %cst_127 = arith.constant dense<0.000000e+00> : vector<8x1156xf32>
    %390 = tpu.matmul %388, %389, %cst_127 {dimension_numbers = #tpu.dot_dimension_numbers<[1], [0], [0], [1], [0, 0, 1, 1], [], []>} : vector<8x8xbf16>, vector<8x1156xbf16>, vector<8x1156xf32> -> vector<8x1156xf32>
    %391 = arith.addf %386, %390 : vector<8x1156xf32>
    %c1_128 = arith.constant 1 : index
    %c2_129 = arith.constant 2 : index
    %c0_130 = arith.constant 0 : index
    %c0_131 = arith.constant 0 : index
    %392 = vector.load %arg4[%c1_128, %c2_129, %c0_130, %c0_131] : memref<3x3x8x8xbf16, #tpu.memory_space<vmem>>, vector<1x1x8x8xbf16>
    %393 = vector.shape_cast %392 : vector<1x1x8x8xbf16> to vector<8x8xbf16>
    %394 = vector.extract_strided_slice %365 {offsets = [0, 36], sizes = [8, 1156], strides = [1, 1]} : vector<8x1226xbf16> to vector<8x1156xbf16>
    %cst_132 = arith.constant dense<0.000000e+00> : vector<8x1156xf32>
    %395 = tpu.matmul %393, %394, %cst_132 {dimension_numbers = #tpu.dot_dimension_numbers<[1], [0], [0], [1], [0, 0, 1, 1], [], []>} : vector<8x8xbf16>, vector<8x1156xbf16>, vector<8x1156xf32> -> vector<8x1156xf32>
    %396 = arith.addf %391, %395 : vector<8x1156xf32>
    %c2_133 = arith.constant 2 : index
    %c0_134 = arith.constant 0 : index
    %c0_135 = arith.constant 0 : index
    %c0_136 = arith.constant 0 : index
    %397 = vector.load %arg4[%c2_133, %c0_134, %c0_135, %c0_136] : memref<3x3x8x8xbf16, #tpu.memory_space<vmem>>, vector<1x1x8x8xbf16>
    %398 = vector.shape_cast %397 : vector<1x1x8x8xbf16> to vector<8x8xbf16>
    %399 = vector.extract_strided_slice %365 {offsets = [0, 68], sizes = [8, 1156], strides = [1, 1]} : vector<8x1226xbf16> to vector<8x1156xbf16>
    %cst_137 = arith.constant dense<0.000000e+00> : vector<8x1156xf32>
    %400 = tpu.matmul %398, %399, %cst_137 {dimension_numbers = #tpu.dot_dimension_numbers<[1], [0], [0], [1], [0, 0, 1, 1], [], []>} : vector<8x8xbf16>, vector<8x1156xbf16>, vector<8x1156xf32> -> vector<8x1156xf32>
    %401 = arith.addf %396, %400 : vector<8x1156xf32>
    %c2_138 = arith.constant 2 : index
    %c1_139 = arith.constant 1 : index
    %c0_140 = arith.constant 0 : index
    %c0_141 = arith.constant 0 : index
    %402 = vector.load %arg4[%c2_138, %c1_139, %c0_140, %c0_141] : memref<3x3x8x8xbf16, #tpu.memory_space<vmem>>, vector<1x1x8x8xbf16>
    %403 = vector.shape_cast %402 : vector<1x1x8x8xbf16> to vector<8x8xbf16>
    %404 = vector.extract_strided_slice %365 {offsets = [0, 69], sizes = [8, 1156], strides = [1, 1]} : vector<8x1226xbf16> to vector<8x1156xbf16>
    %cst_142 = arith.constant dense<0.000000e+00> : vector<8x1156xf32>
    %405 = tpu.matmul %403, %404, %cst_142 {dimension_numbers = #tpu.dot_dimension_numbers<[1], [0], [0], [1], [0, 0, 1, 1], [], []>} : vector<8x8xbf16>, vector<8x1156xbf16>, vector<8x1156xf32> -> vector<8x1156xf32>
    %406 = arith.addf %401, %405 : vector<8x1156xf32>
    %c2_143 = arith.constant 2 : index
    %c2_144 = arith.constant 2 : index
    %c0_145 = arith.constant 0 : index
    %c0_146 = arith.constant 0 : index
    %407 = vector.load %arg4[%c2_143, %c2_144, %c0_145, %c0_146] : memref<3x3x8x8xbf16, #tpu.memory_space<vmem>>, vector<1x1x8x8xbf16>
    %408 = vector.shape_cast %407 : vector<1x1x8x8xbf16> to vector<8x8xbf16>
    %409 = vector.extract_strided_slice %365 {offsets = [0, 70], sizes = [8, 1156], strides = [1, 1]} : vector<8x1226xbf16> to vector<8x1156xbf16>
    %cst_147 = arith.constant dense<0.000000e+00> : vector<8x1156xf32>
    %410 = tpu.matmul %408, %409, %cst_147 {dimension_numbers = #tpu.dot_dimension_numbers<[1], [0], [0], [1], [0, 0, 1, 1], [], []>} : vector<8x8xbf16>, vector<8x1156xbf16>, vector<8x1156xf32> -> vector<8x1156xf32>
    %411 = arith.addf %406, %410 : vector<8x1156xf32>
    %412 = vector.extract_strided_slice %411 {offsets = [0, 0], sizes = [8, 32], strides = [1, 1]} : vector<8x1156xf32> to vector<8x32xf32>
    %413 = vector.extract_strided_slice %411 {offsets = [0, 34], sizes = [8, 32], strides = [1, 1]} : vector<8x1156xf32> to vector<8x32xf32>
    %414 = vector.extract_strided_slice %411 {offsets = [0, 68], sizes = [8, 32], strides = [1, 1]} : vector<8x1156xf32> to vector<8x32xf32>
    %415 = vector.extract_strided_slice %411 {offsets = [0, 102], sizes = [8, 32], strides = [1, 1]} : vector<8x1156xf32> to vector<8x32xf32>
    %416 = vector.extract_strided_slice %411 {offsets = [0, 136], sizes = [8, 32], strides = [1, 1]} : vector<8x1156xf32> to vector<8x32xf32>
    %417 = vector.extract_strided_slice %411 {offsets = [0, 170], sizes = [8, 32], strides = [1, 1]} : vector<8x1156xf32> to vector<8x32xf32>
    %418 = vector.extract_strided_slice %411 {offsets = [0, 204], sizes = [8, 32], strides = [1, 1]} : vector<8x1156xf32> to vector<8x32xf32>
    %419 = vector.extract_strided_slice %411 {offsets = [0, 238], sizes = [8, 32], strides = [1, 1]} : vector<8x1156xf32> to vector<8x32xf32>
    %420 = vector.extract_strided_slice %411 {offsets = [0, 272], sizes = [8, 32], strides = [1, 1]} : vector<8x1156xf32> to vector<8x32xf32>
    %421 = vector.extract_strided_slice %411 {offsets = [0, 306], sizes = [8, 32], strides = [1, 1]} : vector<8x1156xf32> to vector<8x32xf32>
    %422 = vector.extract_strided_slice %411 {offsets = [0, 340], sizes = [8, 32], strides = [1, 1]} : vector<8x1156xf32> to vector<8x32xf32>
    %423 = vector.extract_strided_slice %411 {offsets = [0, 374], sizes = [8, 32], strides = [1, 1]} : vector<8x1156xf32> to vector<8x32xf32>
    %424 = vector.extract_strided_slice %411 {offsets = [0, 408], sizes = [8, 32], strides = [1, 1]} : vector<8x1156xf32> to vector<8x32xf32>
    %425 = vector.extract_strided_slice %411 {offsets = [0, 442], sizes = [8, 32], strides = [1, 1]} : vector<8x1156xf32> to vector<8x32xf32>
    %426 = vector.extract_strided_slice %411 {offsets = [0, 476], sizes = [8, 32], strides = [1, 1]} : vector<8x1156xf32> to vector<8x32xf32>
    %427 = vector.extract_strided_slice %411 {offsets = [0, 510], sizes = [8, 32], strides = [1, 1]} : vector<8x1156xf32> to vector<8x32xf32>
    %428 = vector.extract_strided_slice %411 {offsets = [0, 544], sizes = [8, 32], strides = [1, 1]} : vector<8x1156xf32> to vector<8x32xf32>
    %429 = vector.extract_strided_slice %411 {offsets = [0, 578], sizes = [8, 32], strides = [1, 1]} : vector<8x1156xf32> to vector<8x32xf32>
    %430 = vector.extract_strided_slice %411 {offsets = [0, 612], sizes = [8, 32], strides = [1, 1]} : vector<8x1156xf32> to vector<8x32xf32>
    %431 = vector.extract_strided_slice %411 {offsets = [0, 646], sizes = [8, 32], strides = [1, 1]} : vector<8x1156xf32> to vector<8x32xf32>
    %432 = vector.extract_strided_slice %411 {offsets = [0, 680], sizes = [8, 32], strides = [1, 1]} : vector<8x1156xf32> to vector<8x32xf32>
    %433 = vector.extract_strided_slice %411 {offsets = [0, 714], sizes = [8, 32], strides = [1, 1]} : vector<8x1156xf32> to vector<8x32xf32>
    %434 = vector.extract_strided_slice %411 {offsets = [0, 748], sizes = [8, 32], strides = [1, 1]} : vector<8x1156xf32> to vector<8x32xf32>
    %435 = vector.extract_strided_slice %411 {offsets = [0, 782], sizes = [8, 32], strides = [1, 1]} : vector<8x1156xf32> to vector<8x32xf32>
    %436 = vector.extract_strided_slice %411 {offsets = [0, 816], sizes = [8, 32], strides = [1, 1]} : vector<8x1156xf32> to vector<8x32xf32>
    %437 = vector.extract_strided_slice %411 {offsets = [0, 850], sizes = [8, 32], strides = [1, 1]} : vector<8x1156xf32> to vector<8x32xf32>
    %438 = vector.extract_strided_slice %411 {offsets = [0, 884], sizes = [8, 32], strides = [1, 1]} : vector<8x1156xf32> to vector<8x32xf32>
    %439 = vector.extract_strided_slice %411 {offsets = [0, 918], sizes = [8, 32], strides = [1, 1]} : vector<8x1156xf32> to vector<8x32xf32>
    %440 = vector.extract_strided_slice %411 {offsets = [0, 952], sizes = [8, 32], strides = [1, 1]} : vector<8x1156xf32> to vector<8x32xf32>
    %441 = vector.extract_strided_slice %411 {offsets = [0, 986], sizes = [8, 32], strides = [1, 1]} : vector<8x1156xf32> to vector<8x32xf32>
    %442 = vector.extract_strided_slice %411 {offsets = [0, 1020], sizes = [8, 32], strides = [1, 1]} : vector<8x1156xf32> to vector<8x32xf32>
    %443 = vector.extract_strided_slice %411 {offsets = [0, 1054], sizes = [8, 32], strides = [1, 1]} : vector<8x1156xf32> to vector<8x32xf32>
    %444 = tpu.concatenate %412, %413, %414, %415, %416, %417, %418, %419, %420, %421, %422, %423, %424, %425, %426, %427 in 1 : vector<8x32xf32>, vector<8x32xf32>, vector<8x32xf32>, vector<8x32xf32>, vector<8x32xf32>, vector<8x32xf32>, vector<8x32xf32>, vector<8x32xf32>, vector<8x32xf32>, vector<8x32xf32>, vector<8x32xf32>, vector<8x32xf32>, vector<8x32xf32>, vector<8x32xf32>, vector<8x32xf32>, vector<8x32xf32> -> vector<8x512xf32>
    %445 = tpu.concatenate %428, %429, %430, %431, %432, %433, %434, %435, %436, %437, %438, %439, %440, %441, %442, %443 in 1 : vector<8x32xf32>, vector<8x32xf32>, vector<8x32xf32>, vector<8x32xf32>, vector<8x32xf32>, vector<8x32xf32>, vector<8x32xf32>, vector<8x32xf32>, vector<8x32xf32>, vector<8x32xf32>, vector<8x32xf32>, vector<8x32xf32>, vector<8x32xf32>, vector<8x32xf32>, vector<8x32xf32>, vector<8x32xf32> -> vector<8x512xf32>
    %446 = tpu.concatenate %444, %445 in 1 : vector<8x512xf32>, vector<8x512xf32> -> vector<8x1024xf32>
    %c0_148 = arith.constant 0 : index
    %c0_149 = arith.constant 0 : index
    %c0_150 = arith.constant 0 : index
    %447 = vector.load %arg5[%c0_148, %c0_149, %c0_150] : memref<1x8x1024xf32, #tpu.memory_space<vmem>>, vector<1x8x1024xf32>
    %448 = vector.shape_cast %447 : vector<1x8x1024xf32> to vector<8x1024xf32>
    %449 = vector.shape_cast %446 : vector<8x1024xf32> to vector<1x8x1024xf32>
    tpu.vector_store %arg5[%c0_148, %c0_149, %c0_150], %449 {strides = array<i32>} : memref<1x8x1024xf32, #tpu.memory_space<vmem>>, vector<1x8x1024xf32>,
    return
  }
  func.func @transform_0(%arg0: i32) -> (i32, i32, i32) {
    %c0_i32 = arith.constant 0 : i32
    %c0_i32_0 = arith.constant 0 : i32
    %c0_i32_1 = arith.constant 0 : i32
    return %arg0, %c0_i32, %c0_i32_0 : i32, i32, i32
  }
  func.func @transform_1(%arg0: i32) -> (i32, i32) {
    %c0_i32 = arith.constant 0 : i32
    %c0_i32_0 = arith.constant 0 : i32
    %c0_i32_1 = arith.constant 0 : i32
    return %c0_i32, %c0_i32_0 : i32, i32
  }
  func.func @transform_2(%arg0: i32) -> (i32, i32) {
    %c0_i32 = arith.constant 0 : i32
    %c0_i32_0 = arith.constant 0 : i32
    %c0_i32_1 = arith.constant 0 : i32
    return %c0_i32, %c0_i32_0 : i32, i32
  }
  func.func @transform_3(%arg0: i32) -> (i32, i32, i32, i32) {
    %c0_i32 = arith.constant 0 : i32
    %c0_i32_0 = arith.constant 0 : i32
    %c0_i32_1 = arith.constant 0 : i32
    %c0_i32_2 = arith.constant 0 : i32
    %c0_i32_3 = arith.constant 0 : i32
    return %c0_i32, %c0_i32_0, %c0_i32_1, %c0_i32_2 : i32, i32, i32, i32
  }
  func.func @transform_4(%arg0: i32) -> (i32, i32, i32) {
    %c0_i32 = arith.constant 0 : i32
    %c0_i32_0 = arith.constant 0 : i32
    %c0_i32_1 = arith.constant 0 : i32
    return %arg0, %c0_i32, %c0_i32_0 : i32, i32, i32
  }
}

</mosaic_0001>

<llo_original>
// kernel: basic_block_side_conv.3
$region0: #{basic_block_side_conv.3}
  #allocation0 [shape = 'u32[]', space=smem, size = 0x4, offset = 0x4, fixed_abs, tag = 'smem constant byte address 0x4 - core index']
  #allocation1 [shape = 'u32[72,128]{1,0:T(1,128)}', space=vmem, size = 0x9000, scoped, tag = 'internal scratch']
  %s0 = inlined_call_operand.vmem [shape: f32[2,1,256], index: 0, kind: input, shape index: {}]
  %s1 = inlined_call_operand.vmem [shape: bf16[2,4,256], index: 1, kind: input, shape index: {}]
  %s2 = inlined_call_operand.vmem [shape: bf16[3,3,4,4], index: 2, kind: input, shape index: {}]
  %s3 = inlined_call_operand.vmem [shape: bf16[3,3,4,4], index: 3, kind: input, shape index: {}]
  %s4 = inlined_call_operand.vmem [shape: bf16[2,4,256], index: 4, kind: output, shape index: {}]
  %s5 = sld [smem:[#allocation0]]
  $region49: #{basic_block_side_conv.3} parent=0
    _
  %s7 = ssub.s32 1, %s5
  %s8 = scalar_select 0, %s7, %s5
  loop: start=0, step=1, limit=4
  $region2: #{basic_block_side_conv.3} parent=0 // loop_pre_header
    _
  $region3: #{basic_block_side_conv.3} parent=0 // loop_header
    %s10 = sphi 0, %s14
    %p11 = scmp.ge.s32.totalorder %s10, 4
    %s18 = sphi 0, %s18
    %s20 = sphi 0, %s18
    %s21 = sphi 0, %s20
    %s35 = sphi 0, %s21
    %s41 = sphi 0, %s43
    %s44 = sphi 0, %s41
    %s45 = sphi 0, %s44
    %s61 = sphi 0, %s45
    %s65 = sphi 0, %s65
    %s67 = sphi 0, %s65
    %s68 = sphi 0, %s67
    %s82 = sphi 0, %s68
    %s86 = sphi 0, %s86
    %s88 = sphi 0, %s86
    %s89 = sphi 0, %s88
    %s103 = sphi 0, %s89
    %s109 = sphi 0, %s111
    %s112 = sphi 0, %s109
    %s113 = sphi 0, %s112
    %s129 = sphi 0, %s113
  $region4: #{basic_block_side_conv.3} parent=0 // loop_header_branch
    %13 = sbr.rel (%p11) target = $region8
  $region5: #{basic_block_side_conv.3} parent=0 // loop_body
    %s15 = ssub.s32 %s10, 1
    %s16 = ssub.s32 %s10, 2
    %s17 = sadd.s32 %s10, 1
    %s19 = sadd.s32 %s18, 1
    %p22 = scmp.eq.s32.totalorder %s10, 1
    %p23 = scmp.ne.s32.totalorder %s18, %s20
    %p24 = scmp.eq.s32.totalorder %s10, 0
    %p25 = por %p23, %p24
    %p26 = scmp.ne.s32.totalorder %s18, %s20
    %p27 = scmp.eq.s32.totalorder %s15, 1
    %p28 = por %p26, %p27
    %p29 = scmp.ne.s32.totalorder %s20, %s21
    %p30 = scmp.eq.s32.totalorder %s15, 0
    %p31 = por %p29, %p30
    %p32 = scmp.ne.s32.totalorder %s20, %s21
    %p33 = scmp.eq.s32.totalorder %s16, 1
    %p34 = por %p32, %p33
    %p36 = scmp.ne.s32.totalorder %s21, %s35
    %p37 = scmp.eq.s32.totalorder %s16, 0
    %p38 = por %p36, %p37
    %s39 = ssub.s32 %s10, %s17
    %p40 = scmp.eq.s32.totalorder %s39, 0
    %s42 = sadd.s32 %s41, 1
    %s43 = scalar_select %p40, %s41, %s42
    %p46 = pneg %p40
    %p47 = scmp.eq.s32.totalorder %s10, 1
    %p48 = por %p46, %p47
    %p49 = scmp.ne.s32.totalorder %s41, %s44
    %p50 = scmp.eq.s32.totalorder %s10, 0
    %p51 = por %p49, %p50
    %p52 = scmp.ne.s32.totalorder %s41, %s44
    %p53 = scmp.eq.s32.totalorder %s15, 1
    %p54 = por %p52, %p53
    %p55 = scmp.ne.s32.totalorder %s44, %s45
    %p56 = scmp.eq.s32.totalorder %s15, 0
    %p57 = por %p55, %p56
    %p58 = scmp.ne.s32.totalorder %s44, %s45
    %p59 = scmp.eq.s32.totalorder %s16, 1
    %p60 = por %p58, %p59
    %p62 = scmp.ne.s32.totalorder %s45, %s61
    %p63 = scmp.eq.s32.totalorder %s16, 0
    %p64 = por %p62, %p63
    %s66 = sadd.s32 %s65, 1
    %p69 = scmp.eq.s32.totalorder %s10, 1
    %p70 = scmp.ne.s32.totalorder %s65, %s67
    %p71 = scmp.eq.s32.totalorder %s10, 0
    %p72 = por %p70, %p71
    %p73 = scmp.ne.s32.totalorder %s65, %s67
    %p74 = scmp.eq.s32.totalorder %s15, 1
    %p75 = por %p73, %p74
    %p76 = scmp.ne.s32.totalorder %s67, %s68
    %p77 = scmp.eq.s32.totalorder %s15, 0
    %p78 = por %p76, %p77
    %p79 = scmp.ne.s32.totalorder %s67, %s68
    %p80 = scmp.eq.s32.totalorder %s16, 1
    %p81 = por %p79, %p80
    %p83 = scmp.ne.s32.totalorder %s68, %s82
    %p84 = scmp.eq.s32.totalorder %s16, 0
    %p85 = por %p83, %p84
    %s87 = sadd.s32 %s86, 1
    %p90 = scmp.eq.s32.totalorder %s10, 1
    %p91 = scmp.ne.s32.totalorder %s86, %s88
    %p92 = scmp.eq.s32.totalorder %s10, 0
    %p93 = por %p91, %p92
    %p94 = scmp.ne.s32.totalorder %s86, %s88
    %p95 = scmp.eq.s32.totalorder %s15, 1
    %p96 = por %p94, %p95
    %p97 = scmp.ne.s32.totalorder %s88, %s89
    %p98 = scmp.eq.s32.totalorder %s15, 0
    %p99 = por %p97, %p98
    %p100 = scmp.ne.s32.totalorder %s88, %s89
    %p101 = scmp.eq.s32.totalorder %s16, 1
    %p102 = por %p100, %p101
    %p104 = scmp.ne.s32.totalorder %s89, %s103
    %p105 = scmp.eq.s32.totalorder %s16, 0
    %p106 = por %p104, %p105
    %s107 = ssub.s32 %s10, %s17
    %p108 = scmp.eq.s32.totalorder %s107, 0
    %s110 = sadd.s32 %s109, 1
    %s111 = scalar_select %p108, %s109, %s110
    %p114 = pneg %p108
    %p115 = scmp.eq.s32.totalorder %s10, 1
    %p116 = por %p114, %p115
    %p117 = scmp.ne.s32.totalorder %s109, %s112
    %p118 = scmp.eq.s32.totalorder %s10, 0
    %p119 = por %p117, %p118
    %p120 = scmp.ne.s32.totalorder %s109, %s112
    %p121 = scmp.eq.s32.totalorder %s15, 1
    %p122 = por %p120, %p121
    %p123 = scmp.ne.s32.totalorder %s112, %s113
    %p124 = scmp.eq.s32.totalorder %s15, 0
    %p125 = por %p123, %p124
    %p126 = scmp.ne.s32.totalorder %s112, %s113
    %p127 = scmp.eq.s32.totalorder %s16, 1
    %p128 = por %p126, %p127
    %p130 = scmp.ne.s32.totalorder %s113, %s129
    %p131 = scmp.eq.s32.totalorder %s16, 0
    %p132 = por %p130, %p131
    %p133 = scmp.le.s32.totalorder 1, %s10
    %p134 = scmp.lt.s32.totalorder %s10, 3
    %p135 = pnand %p133, %p134
    %p136 = pneg %p135
    // Predicated region
    $region9: #{basic_block_side_conv.3} parent=5 // pred_check
      _
    $region10: #{basic_block_side_conv.3} parent=5 // pred_check_branch
      %138 = sbr.rel (%p135) target = $region12
    $region11: #{basic_block_side_conv.3} parent=5 // pred_region
      %s139 = ssub.s32 %s10, 1
      // Predicated region
      $region13: #{basic_block_side_conv.3} parent=11 // pred_check
        %p140 = pneg %p31
      $region14: #{basic_block_side_conv.3} parent=11 // pred_check_branch
        %142 = sbr.rel (%p140) target = $region16
      $region15: #{basic_block_side_conv.3} parent=11 // pred_region
        _
      $region16: #{basic_block_side_conv.3} parent=11 // pred_fallthru
        _
      // Predicated region
      $region17: #{basic_block_side_conv.3} parent=11 // pred_check
        %p143 = pneg %p78
      $region18: #{basic_block_side_conv.3} parent=11 // pred_check_branch
        %145 = sbr.rel (%p143) target = $region20
      $region19: #{basic_block_side_conv.3} parent=11 // pred_region
        _
      $region20: #{basic_block_side_conv.3} parent=11 // pred_fallthru
        _
      // Predicated region
      $region21: #{basic_block_side_conv.3} parent=11 // pred_check
        %p146 = pneg %p99
      $region22: #{basic_block_side_conv.3} parent=11 // pred_check_branch
        %148 = sbr.rel (%p146) target = $region24
      $region23: #{basic_block_side_conv.3} parent=11 // pred_region
        _
      $region24: #{basic_block_side_conv.3} parent=11 // pred_fallthru
        _
    $region12: #{basic_block_side_conv.3} parent=5 // pred_fallthru
      _
    %p149 = scmp.lt.s32.totalorder %s10, 2
    // Predicated region
    $region25: #{basic_block_side_conv.3} parent=5 // pred_check
      %p150 = pneg %p149
    $region26: #{basic_block_side_conv.3} parent=5 // pred_check_branch
      %152 = sbr.rel (%p150) target = $region28
    $region27: #{basic_block_side_conv.3} parent=5 // pred_region
      // Predicated region
      $region29: #{basic_block_side_conv.3} parent=27 // pred_check
        %p153 = pneg %p51
      $region30: #{basic_block_side_conv.3} parent=27 // pred_check_branch
        %155 = sbr.rel (%p153) target = $region32
      $region31: #{basic_block_side_conv.3} parent=27 // pred_region
        %p156 = scmp.lt.s32.totalorder %s10, 1
        %s157 = scalar_select %p156, %s10, 1
        %s158 = smul.addr %s157, 2
        %s159 = smul.addr %s158, 2
        %s160 = scalar_lea.vmem %s1, %s159
      $region32: #{basic_block_side_conv.3} parent=27 // pred_fallthru
        _
    $region28: #{basic_block_side_conv.3} parent=5 // pred_fallthru
      _
    %p161 = scmp.le.s32.totalorder 1, %s10
    %p162 = scmp.lt.s32.totalorder %s10, 3
    %p163 = pnand %p161, %p162
    %p164 = pneg %p163
    // Predicated region
    $region33: #{basic_block_side_conv.3} parent=5 // pred_check
      _
    $region34: #{basic_block_side_conv.3} parent=5 // pred_check_branch
      %166 = sbr.rel (%p163) target = $region36
    $region35: #{basic_block_side_conv.3} parent=5 // pred_region
      %s167 = ssub.s32 %s10, 1
      %p168 = pneg %p31
      %p169 = pneg %p28
      %p170 = scmp.lt.s32.totalorder %s15, 1
      %s171 = scalar_select %p170, %s15, 1
      %s172 = smul.addr %s171, 2
      %s173 = smul.addr %s172, 2
      %s174 = scalar_lea.vmem %s1, %s173
      %p175 = pneg %p57
      %p176 = pneg %p54
      %p177 = pneg %p78
      %p178 = pneg %p75
      %p179 = pneg %p99
      %p180 = pneg %p96
      %p181 = pneg %p125
      %p182 = pneg %p122
      %p183 = scmp.lt.s32.totalorder %s15, 1
      %s184 = scalar_select %p183, %s15, 1
      %s185 = smul.addr %s184, 2
      %s186 = smul.addr %s185, 2
      %s187 = scalar_lea.vmem %s4, %s186
      %p188 = scmp.lt.s32.totalorder %s15, 1
      %s189 = scalar_select %p188, %s15, 1
      %s190 = smul.addr %s189, 2
      %s191 = smul.addr %s190, 2
      %s192 = scalar_lea.vmem %s1, %s191
      %p193 = scmp.lt.s32.totalorder %s15, 1
      %s194 = scalar_select %p193, %s15, 1
      %s195 = smul.addr %s194, 2
      %s196 = smul.addr %s195, 2
      %s197 = scalar_lea.vmem %s4, %s196
      %v199 = vld [vmem:[%s192] sm:$0xf]
      %201 = vst [vmem:[#allocation1] ss:$4 sm:$0xff] %v199
      %v202 = vld.sshfl [vmem:[#allocation1] sm:$0xff pattern:$0x73625140]
      %v204 = vld.sshfl [vmem:[#allocation1 + $0x8] sm:$0xff pattern:$0x73625140]
      %206 = vrot.lane.b32.xlu0 %v202, 17
      %v207 = vpop.permute.xlu0 %206
      %208 = vrot.lane.b32.xlu0 %v204, 17
      %v209 = vpop.permute.xlu0 %208
      %vm210 = vcmask 138240
      %v211 = vsel %vm210, %v207, %v209
      %vm212 = vcmask 138240
      %v215 = vsel %vm212, 0, %v207
      %v217 = vsel %vm212, %v209, 0
      %v218 = vld [vmem:[%s2] sm:$0x3]
      %vm219 = vcmask 31744
      %v221 = vsel %vm219, %v218, 0
      %vm223 = vcmask 1041408
      %v224 = vsel %vm223, %v215, 0
      %v227 = vsel %vm223, %v211, 0
      %229 = vmatpush.bf16.msra.mxu0 0
      %230 = vmatpush.bf16.msra.mxu0 0
      %231 = vmatpush.bf16.msra.mxu0 0
      %232 = vmatpush.bf16.msra.mxu0 0
      %233 = vmatpush.bf16.msra.mxu0 0
      %234 = vmatpush.bf16.msra.mxu0 0
      %235 = vmatpush.bf16.msra.mxu0 0
      %236 = vmatpush.bf16.msra.mxu0 %v224
      %237 = vmatmul.bf16.gmra.mxu0 %v221
      %v238 = vpop.f32.mrf.mxu0
      %v239 = vadd.f32 0.0, %v238
      %v240 = vpop.f32.mrf.mxu0
      %241 = vdwg.mxu0
      %242 = vmatpush.bf16.msra.mxu0 0
      %243 = vmatpush.bf16.msra.mxu0 0
      %244 = vmatpush.bf16.msra.mxu0 0
      %245 = vmatpush.bf16.msra.mxu0 0
      %246 = vmatpush.bf16.msra.mxu0 0
      %247 = vmatpush.bf16.msra.mxu0 0
      %248 = vmatpush.bf16.msra.mxu0 0
      %249 = vmatpush.bf16.msra.mxu0 %v227
      %250 = vmatmul.bf16.gmra.mxu0 %v221
      %v251 = vpop.f32.mrf.mxu0
      %v252 = vadd.f32 0.0, %v251
      %v253 = vpop.f32.mrf.mxu0
      %254 = vdwg.mxu0
      %v255 = vld [vmem:[%s0] sm:$0x3]
      %v257 = vperm.slane %v255, 0
      %v258 = vperm.slane %v255, 1
      %v261 = vmul.f32 %v239, %v257
      %v262 = vmul.f32 %v252, %v258
      %v263 = vadd.f32 %v261, 0.0
      %v264 = vadd.f32 %v262, 0.0
      %s265 = scalar_lea.vmem %s2, 2
      %v266 = vld [vmem:[%s265] sm:$0x3]
      %269 = vrot.lane.b32.xlu0 %v215, 127
      %v270 = vpop.permute.xlu0 %269
      %271 = vrot.lane.b32.xlu0 %v211, 127
      %v272 = vpop.permute.xlu0 %271
      %273 = vrot.lane.b32.xlu0 %v217, 127
      %v274 = vpop.permute.xlu0 %273
      %vm275 = vcmask 1039360
      %v276 = vsel %vm275, %v270, %v272
      %v277 = vsel %vm275, %v272, %v274
      %v279 = vsel %vm219, %v266, 0
      %v282 = vsel %vm223, %v276, 0
      %v285 = vsel %vm223, %v277, 0
      %287 = vmatpush.bf16.msra.mxu0 0
      %288 = vmatpush.bf16.msra.mxu0 0
      %289 = vmatpush.bf16.msra.mxu0 0
      %290 = vmatpush.bf16.msra.mxu0 0
      %291 = vmatpush.bf16.msra.mxu0 0
      %292 = vmatpush.bf16.msra.mxu0 0
      %293 = vmatpush.bf16.msra.mxu0 0
      %294 = vmatpush.bf16.msra.mxu0 %v282
      %295 = vmatmul.bf16.gmra.mxu0 %v279
      %v296 = vpop.f32.mrf.mxu0
      %v297 = vadd.f32 0.0, %v296
      %v298 = vpop.f32.mrf.mxu0
      %299 = vdwg.mxu0
      %300 = vmatpush.bf16.msra.mxu0 0
      %301 = vmatpush.bf16.msra.mxu0 0
      %302 = vmatpush.bf16.msra.mxu0 0
      %303 = vmatpush.bf16.msra.mxu0 0
      %304 = vmatpush.bf16.msra.mxu0 0
      %305 = vmatpush.bf16.msra.mxu0 0
      %306 = vmatpush.bf16.msra.mxu0 0
      %307 = vmatpush.bf16.msra.mxu0 %v285
      %308 = vmatmul.bf16.gmra.mxu0 %v279
      %v309 = vpop.f32.mrf.mxu0
      %v310 = vadd.f32 0.0, %v309
      %v311 = vpop.f32.mrf.mxu0
      %312 = vdwg.mxu0
      %v313 = vadd.f32 %v263, %v297
      %v314 = vadd.f32 %v264, %v310
      %s315 = scalar_lea.vmem %s2, 4
      %v316 = vld [vmem:[%s315] sm:$0x3]
      %317 = vrot.lane.b32.xlu0 %v215, 126
      %v318 = vpop.permute.xlu0 %317
      %319 = vrot.lane.b32.xlu0 %v211, 126
      %v320 = vpop.permute.xlu0 %319
      %321 = vrot.lane.b32.xlu0 %v217, 126
      %v322 = vpop.permute.xlu0 %321
      %vm323 = vcmask 1031168
      %v324 = vsel %vm323, %v318, %v320
      %v325 = vsel %vm323, %v320, %v322
      %v327 = vsel %vm219, %v316, 0
      %v330 = vsel %vm223, %v324, 0
      %v333 = vsel %vm223, %v325, 0
      %335 = vmatpush.bf16.msra.mxu0 0
      %336 = vmatpush.bf16.msra.mxu0 0
      %337 = vmatpush.bf16.msra.mxu0 0
      %338 = vmatpush.bf16.msra.mxu0 0
      %339 = vmatpush.bf16.msra.mxu0 0
      %340 = vmatpush.bf16.msra.mxu0 0
      %341 = vmatpush.bf16.msra.mxu0 0
      %342 = vmatpush.bf16.msra.mxu0 %v330
      %343 = vmatmul.bf16.gmra.mxu0 %v327
      %v344 = vpop.f32.mrf.mxu0
      %v345 = vadd.f32 0.0, %v344
      %v346 = vpop.f32.mrf.mxu0
      %347 = vdwg.mxu0
      %348 = vmatpush.bf16.msra.mxu0 0
      %349 = vmatpush.bf16.msra.mxu0 0
      %350 = vmatpush.bf16.msra.mxu0 0
      %351 = vmatpush.bf16.msra.mxu0 0
      %352 = vmatpush.bf16.msra.mxu0 0
      %353 = vmatpush.bf16.msra.mxu0 0
      %354 = vmatpush.bf16.msra.mxu0 0
      %355 = vmatpush.bf16.msra.mxu0 %v333
      %356 = vmatmul.bf16.gmra.mxu0 %v327
      %v357 = vpop.f32.mrf.mxu0
      %v358 = vadd.f32 0.0, %v357
      %v359 = vpop.f32.mrf.mxu0
      %360 = vdwg.mxu0
      %s361 = scalar_lea.vmem %s0, 2
      %v362 = vld [vmem:[%s361] sm:$0x3]
      %v364 = vperm.slane %v362, 0
      %v365 = vperm.slane %v362, 1
      %v368 = vmul.f32 %v345, %v364
      %v369 = vmul.f32 %v358, %v365
      %v370 = vadd.f32 %v313, %v368
      %v371 = vadd.f32 %v314, %v369
      %s372 = scalar_lea.vmem %s2, 6
      %v373 = vld [vmem:[%s372] sm:$0x3]
      %374 = vrot.lane.b32.xlu0 %v215, 112
      %v375 = vpop.permute.xlu0 %374
      %376 = vrot.lane.b32.xlu0 %v211, 112
      %v377 = vpop.permute.xlu0 %376
      %378 = vrot.lane.b32.xlu0 %v217, 112
      %v379 = vpop.permute.xlu0 %378
      %vm380 = vcmask 916480
      %v381 = vsel %vm380, %v375, %v377
      %v382 = vsel %vm380, %v377, %v379
      %v384 = vsel %vm219, %v373, 0
      %v387 = vsel %vm223, %v381, 0
      %v390 = vsel %vm223, %v382, 0
      %392 = vmatpush.bf16.msra.mxu0 0
      %393 = vmatpush.bf16.msra.mxu0 0
      %394 = vmatpush.bf16.msra.mxu0 0
      %395 = vmatpush.bf16.msra.mxu0 0
      %396 = vmatpush.bf16.msra.mxu0 0
      %397 = vmatpush.bf16.msra.mxu0 0
      %398 = vmatpush.bf16.msra.mxu0 0
      %399 = vmatpush.bf16.msra.mxu0 %v387
      %400 = vmatmul.bf16.gmra.mxu0 %v384
      %v401 = vpop.f32.mrf.mxu0
      %v402 = vadd.f32 0.0, %v401
      %v403 = vpop.f32.mrf.mxu0
      %404 = vdwg.mxu0
      %405 = vmatpush.bf16.msra.mxu0 0
      %406 = vmatpush.bf16.msra.mxu0 0
      %407 = vmatpush.bf16.msra.mxu0 0
      %408 = vmatpush.bf16.msra.mxu0 0
      %409 = vmatpush.bf16.msra.mxu0 0
      %410 = vmatpush.bf16.msra.mxu0 0
      %411 = vmatpush.bf16.msra.mxu0 0
      %412 = vmatpush.bf16.msra.mxu0 %v390
      %413 = vmatmul.bf16.gmra.mxu0 %v384
      %v414 = vpop.f32.mrf.mxu0
      %v415 = vadd.f32 0.0, %v414
      %v416 = vpop.f32.mrf.mxu0
      %417 = vdwg.mxu0
      %v418 = vmul.f32 %v402, %v257
      %v419 = vmul.f32 %v415, %v258
      %v420 = vadd.f32 %v370, %v418
      %v421 = vadd.f32 %v371, %v419
      %s422 = scalar_lea.vmem %s2, 8
      %v423 = vld [vmem:[%s422] sm:$0x3]
      %424 = vrot.lane.b32.xlu0 %v215, 111
      %v425 = vpop.permute.xlu0 %424
      %426 = vrot.lane.b32.xlu0 %v211, 111
      %v427 = vpop.permute.xlu0 %426
      %428 = vrot.lane.b32.xlu0 %v217, 111
      %v429 = vpop.permute.xlu0 %428
      %vm430 = vcmask 908288
      %v431 = vsel %vm430, %v425, %v427
      %v432 = vsel %vm430, %v427, %v429
      %v434 = vsel %vm219, %v423, 0
      %v437 = vsel %vm223, %v431, 0
      %v440 = vsel %vm223, %v432, 0
      %442 = vmatpush.bf16.msra.mxu0 0
      %443 = vmatpush.bf16.msra.mxu0 0
      %444 = vmatpush.bf16.msra.mxu0 0
      %445 = vmatpush.bf16.msra.mxu0 0
      %446 = vmatpush.bf16.msra.mxu0 0
      %447 = vmatpush.bf16.msra.mxu0 0
      %448 = vmatpush.bf16.msra.mxu0 0
      %449 = vmatpush.bf16.msra.mxu0 %v437
      %450 = vmatmul.bf16.gmra.mxu0 %v434
      %v451 = vpop.f32.mrf.mxu0
      %v452 = vadd.f32 0.0, %v451
      %v453 = vpop.f32.mrf.mxu0
      %454 = vdwg.mxu0
      %455 = vmatpush.bf16.msra.mxu0 0
      %456 = vmatpush.bf16.msra.mxu0 0
      %457 = vmatpush.bf16.msra.mxu0 0
      %458 = vmatpush.bf16.msra.mxu0 0
      %459 = vmatpush.bf16.msra.mxu0 0
      %460 = vmatpush.bf16.msra.mxu0 0
      %461 = vmatpush.bf16.msra.mxu0 0
      %462 = vmatpush.bf16.msra.mxu0 %v440
      %463 = vmatmul.bf16.gmra.mxu0 %v434
      %v464 = vpop.f32.mrf.mxu0
      %v465 = vadd.f32 0.0, %v464
      %v466 = vpop.f32.mrf.mxu0
      %467 = vdwg.mxu0
      %v468 = vadd.f32 %v420, %v452
      %v469 = vadd.f32 %v421, %v465
      %s470 = scalar_lea.vmem %s2, 10
      %v471 = vld [vmem:[%s470] sm:$0x3]
      %472 = vrot.lane.b32.xlu0 %v215, 110
      %v473 = vpop.permute.xlu0 %472
      %474 = vrot.lane.b32.xlu0 %v211, 110
      %v475 = vpop.permute.xlu0 %474
      %476 = vrot.lane.b32.xlu0 %v217, 110
      %v477 = vpop.permute.xlu0 %476
      %vm478 = vcmask 900096
      %v479 = vsel %vm478, %v473, %v475
      %v480 = vsel %vm478, %v475, %v477
      %v482 = vsel %vm219, %v471, 0
      %v485 = vsel %vm223, %v479, 0
      %v488 = vsel %vm223, %v480, 0
      %490 = vmatpush.bf16.msra.mxu0 0
      %491 = vmatpush.bf16.msra.mxu0 0
      %492 = vmatpush.bf16.msra.mxu0 0
      %493 = vmatpush.bf16.msra.mxu0 0
      %494 = vmatpush.bf16.msra.mxu0 0
      %495 = vmatpush.bf16.msra.mxu0 0
      %496 = vmatpush.bf16.msra.mxu0 0
      %497 = vmatpush.bf16.msra.mxu0 %v485
      %498 = vmatmul.bf16.gmra.mxu0 %v482
      %v499 = vpop.f32.mrf.mxu0
      %v500 = vadd.f32 0.0, %v499
      %v501 = vpop.f32.mrf.mxu0
      %502 = vdwg.mxu0
      %503 = vmatpush.bf16.msra.mxu0 0
      %504 = vmatpush.bf16.msra.mxu0 0
      %505 = vmatpush.bf16.msra.mxu0 0
      %506 = vmatpush.bf16.msra.mxu0 0
      %507 = vmatpush.bf16.msra.mxu0 0
      %508 = vmatpush.bf16.msra.mxu0 0
      %509 = vmatpush.bf16.msra.mxu0 0
      %510 = vmatpush.bf16.msra.mxu0 %v488
      %511 = vmatmul.bf16.gmra.mxu0 %v482
      %v512 = vpop.f32.mrf.mxu0
      %v513 = vadd.f32 0.0, %v512
      %v514 = vpop.f32.mrf.mxu0
      %515 = vdwg.mxu0
      %v516 = vmul.f32 %v500, %v364
      %v517 = vmul.f32 %v513, %v365
      %v518 = vadd.f32 %v468, %v516
      %v519 = vadd.f32 %v469, %v517
      %s520 = scalar_lea.vmem %s2, 12
      %v521 = vld [vmem:[%s520] sm:$0x3]
      %522 = vrot.lane.b32.xlu0 %v215, 96
      %v523 = vpop.permute.xlu0 %522
      %524 = vrot.lane.b32.xlu0 %v211, 96
      %v525 = vpop.permute.xlu0 %524
      %526 = vrot.lane.b32.xlu0 %v217, 96
      %v527 = vpop.permute.xlu0 %526
      %vm528 = vcmask 785408
      %v529 = vsel %vm528, %v523, %v525
      %v530 = vsel %vm528, %v525, %v527
      %v532 = vsel %vm219, %v521, 0
      %v535 = vsel %vm223, %v529, 0
      %v538 = vsel %vm223, %v530, 0
      %540 = vmatpush.bf16.msra.mxu0 0
      %541 = vmatpush.bf16.msra.mxu0 0
      %542 = vmatpush.bf16.msra.mxu0 0
      %543 = vmatpush.bf16.msra.mxu0 0
      %544 = vmatpush.bf16.msra.mxu0 0
      %545 = vmatpush.bf16.msra.mxu0 0
      %546 = vmatpush.bf16.msra.mxu0 0
      %547 = vmatpush.bf16.msra.mxu0 %v535
      %548 = vmatmul.bf16.gmra.mxu0 %v532
      %v549 = vpop.f32.mrf.mxu0
      %v550 = vadd.f32 0.0, %v549
      %v551 = vpop.f32.mrf.mxu0
      %552 = vdwg.mxu0
      %553 = vmatpush.bf16.msra.mxu0 0
      %554 = vmatpush.bf16.msra.mxu0 0
      %555 = vmatpush.bf16.msra.mxu0 0
      %556 = vmatpush.bf16.msra.mxu0 0
      %557 = vmatpush.bf16.msra.mxu0 0
      %558 = vmatpush.bf16.msra.mxu0 0
      %559 = vmatpush.bf16.msra.mxu0 0
      %560 = vmatpush.bf16.msra.mxu0 %v538
      %561 = vmatmul.bf16.gmra.mxu0 %v532
      %v562 = vpop.f32.mrf.mxu0
      %v563 = vadd.f32 0.0, %v562
      %v564 = vpop.f32.mrf.mxu0
      %565 = vdwg.mxu0
      %v566 = vmul.f32 %v550, %v257
      %v567 = vmul.f32 %v563, %v258
      %v568 = vadd.f32 %v518, %v566
      %v569 = vadd.f32 %v519, %v567
      %s570 = scalar_lea.vmem %s2, 14
      %v571 = vld [vmem:[%s570] sm:$0x3]
      %572 = vrot.lane.b32.xlu0 %v215, 95
      %v573 = vpop.permute.xlu0 %572
      %574 = vrot.lane.b32.xlu0 %v211, 95
      %v575 = vpop.permute.xlu0 %574
      %576 = vrot.lane.b32.xlu0 %v217, 95
      %v577 = vpop.permute.xlu0 %576
      %vm578 = vcmask 777216
      %v579 = vsel %vm578, %v573, %v575
      %v580 = vsel %vm578, %v575, %v577
      %v582 = vsel %vm219, %v571, 0
      %v585 = vsel %vm223, %v579, 0
      %v588 = vsel %vm223, %v580, 0
      %590 = vmatpush.bf16.msra.mxu0 0
      %591 = vmatpush.bf16.msra.mxu0 0
      %592 = vmatpush.bf16.msra.mxu0 0
      %593 = vmatpush.bf16.msra.mxu0 0
      %594 = vmatpush.bf16.msra.mxu0 0
      %595 = vmatpush.bf16.msra.mxu0 0
      %596 = vmatpush.bf16.msra.mxu0 0
      %597 = vmatpush.bf16.msra.mxu0 %v585
      %598 = vmatmul.bf16.gmra.mxu0 %v582
      %v599 = vpop.f32.mrf.mxu0
      %v600 = vadd.f32 0.0, %v599
      %v601 = vpop.f32.mrf.mxu0
      %602 = vdwg.mxu0
      %603 = vmatpush.bf16.msra.mxu0 0
      %604 = vmatpush.bf16.msra.mxu0 0
      %605 = vmatpush.bf16.msra.mxu0 0
      %606 = vmatpush.bf16.msra.mxu0 0
      %607 = vmatpush.bf16.msra.mxu0 0
      %608 = vmatpush.bf16.msra.mxu0 0
      %609 = vmatpush.bf16.msra.mxu0 0
      %610 = vmatpush.bf16.msra.mxu0 %v588
      %611 = vmatmul.bf16.gmra.mxu0 %v582
      %v612 = vpop.f32.mrf.mxu0
      %v613 = vadd.f32 0.0, %v612
      %v614 = vpop.f32.mrf.mxu0
      %615 = vdwg.mxu0
      %v616 = vadd.f32 %v568, %v600
      %v617 = vadd.f32 %v569, %v613
      %s618 = scalar_lea.vmem %s2, 16
      %v619 = vld [vmem:[%s618] sm:$0x3]
      %620 = vrot.lane.b32.xlu0 %v215, 94
      %v621 = vpop.permute.xlu0 %620
      %622 = vrot.lane.b32.xlu0 %v211, 94
      %v623 = vpop.permute.xlu0 %622
      %624 = vrot.lane.b32.xlu0 %v217, 94
      %v625 = vpop.permute.xlu0 %624
      %vm626 = vcmask 769024
      %v627 = vsel %vm626, %v621, %v623
      %v628 = vsel %vm626, %v623, %v625
      %v630 = vsel %vm219, %v619, 0
      %v633 = vsel %vm223, %v627, 0
      %v636 = vsel %vm223, %v628, 0
      %638 = vmatpush.bf16.msra.mxu0 0
      %639 = vmatpush.bf16.msra.mxu0 0
      %640 = vmatpush.bf16.msra.mxu0 0
      %641 = vmatpush.bf16.msra.mxu0 0
      %642 = vmatpush.bf16.msra.mxu0 0
      %643 = vmatpush.bf16.msra.mxu0 0
      %644 = vmatpush.bf16.msra.mxu0 0
      %645 = vmatpush.bf16.msra.mxu0 %v633
      %646 = vmatmul.bf16.gmra.mxu0 %v630
      %v647 = vpop.f32.mrf.mxu0
      %v648 = vadd.f32 0.0, %v647
      %v649 = vpop.f32.mrf.mxu0
      %650 = vdwg.mxu0
      %651 = vmatpush.bf16.msra.mxu0 0
      %652 = vmatpush.bf16.msra.mxu0 0
      %653 = vmatpush.bf16.msra.mxu0 0
      %654 = vmatpush.bf16.msra.mxu0 0
      %655 = vmatpush.bf16.msra.mxu0 0
      %656 = vmatpush.bf16.msra.mxu0 0
      %657 = vmatpush.bf16.msra.mxu0 0
      %658 = vmatpush.bf16.msra.mxu0 %v636
      %659 = vmatmul.bf16.gmra.mxu0 %v630
      %v660 = vpop.f32.mrf.mxu0
      %v661 = vadd.f32 0.0, %v660
      %v662 = vpop.f32.mrf.mxu0
      %663 = vdwg.mxu0
      %v664 = vmul.f32 %v648, %v364
      %v665 = vmul.f32 %v661, %v365
      %v666 = vadd.f32 %v616, %v664
      %v667 = vadd.f32 %v617, %v665
      %v668 = vmax.f32 %v666, 0.0
      %v669 = vmax.f32 %v667, 0.0
      %v670 = vpack.c.bf16 %v669, %v668
      %v672 = vunpack.c.l.b16 %v670
      %v673 = vunpack.c.h.b16 %v670
      %v674 = vpack.c.b16 %v672, %v672
      %v675 = vpack.c.b16 %v673, %v673
      %676 = vrot.lane.b32.xlu0 %v674, 17
      %v677 = vpop.permute.xlu0 %676
      %678 = vrot.lane.b32.xlu0 %v675, 17
      %v679 = vpop.permute.xlu0 %678
      %v680 = vsel %vm210, %v677, %v679
      %v682 = vsel %vm212, 0, %v677
      %v684 = vsel %vm212, %v679, 0
      %v685 = vld [vmem:[%s3] sm:$0x3]
      %v687 = vsel %vm219, %v685, 0
      %v689 = vsel %vm223, %v682, 0
      %v692 = vsel %vm223, %v680, 0
      %694 = vmatpush.bf16.msra.mxu0 0
      %695 = vmatpush.bf16.msra.mxu0 0
      %696 = vmatpush.bf16.msra.mxu0 0
      %697 = vmatpush.bf16.msra.mxu0 0
      %698 = vmatpush.bf16.msra.mxu0 0
      %699 = vmatpush.bf16.msra.mxu0 0
      %700 = vmatpush.bf16.msra.mxu0 0
      %701 = vmatpush.bf16.msra.mxu0 %v689
      %702 = vmatmul.bf16.gmra.mxu0 %v687
      %v703 = vpop.f32.mrf.mxu0
      %v704 = vadd.f32 0.0, %v703
      %v705 = vpop.f32.mrf.mxu0
      %706 = vdwg.mxu0
      %707 = vmatpush.bf16.msra.mxu0 0
      %708 = vmatpush.bf16.msra.mxu0 0
      %709 = vmatpush.bf16.msra.mxu0 0
      %710 = vmatpush.bf16.msra.mxu0 0
      %711 = vmatpush.bf16.msra.mxu0 0
      %712 = vmatpush.bf16.msra.mxu0 0
      %713 = vmatpush.bf16.msra.mxu0 0
      %714 = vmatpush.bf16.msra.mxu0 %v692
      %715 = vmatmul.bf16.gmra.mxu0 %v687
      %v716 = vpop.f32.mrf.mxu0
      %v717 = vadd.f32 0.0, %v716
      %v718 = vpop.f32.mrf.mxu0
      %719 = vdwg.mxu0
      %v720 = vmul.f32 %v704, %v257
      %v721 = vmul.f32 %v717, %v258
      %v722 = vadd.f32 %v720, 0.0
      %v723 = vadd.f32 %v721, 0.0
      %s724 = scalar_lea.vmem %s3, 2
      %v725 = vld [vmem:[%s724] sm:$0x3]
      %728 = vrot.lane.b32.xlu0 %v682, 127
      %v729 = vpop.permute.xlu0 %728
      %730 = vrot.lane.b32.xlu0 %v680, 127
      %v731 = vpop.permute.xlu0 %730
      %732 = vrot.lane.b32.xlu0 %v684, 127
      %v733 = vpop.permute.xlu0 %732
      %v734 = vsel %vm275, %v729, %v731
      %v735 = vsel %vm275, %v731, %v733
      %v737 = vsel %vm219, %v725, 0
      %v740 = vsel %vm223, %v734, 0
      %v743 = vsel %vm223, %v735, 0
      %745 = vmatpush.bf16.msra.mxu0 0
      %746 = vmatpush.bf16.msra.mxu0 0
      %747 = vmatpush.bf16.msra.mxu0 0
      %748 = vmatpush.bf16.msra.mxu0 0
      %749 = vmatpush.bf16.msra.mxu0 0
      %750 = vmatpush.bf16.msra.mxu0 0
      %751 = vmatpush.bf16.msra.mxu0 0
      %752 = vmatpush.bf16.msra.mxu0 %v740
      %753 = vmatmul.bf16.gmra.mxu0 %v737
      %v754 = vpop.f32.mrf.mxu0
      %v755 = vadd.f32 0.0, %v754
      %v756 = vpop.f32.mrf.mxu0
      %757 = vdwg.mxu0
      %758 = vmatpush.bf16.msra.mxu0 0
      %759 = vmatpush.bf16.msra.mxu0 0
      %760 = vmatpush.bf16.msra.mxu0 0
      %761 = vmatpush.bf16.msra.mxu0 0
      %762 = vmatpush.bf16.msra.mxu0 0
      %763 = vmatpush.bf16.msra.mxu0 0
      %764 = vmatpush.bf16.msra.mxu0 0
      %765 = vmatpush.bf16.msra.mxu0 %v743
      %766 = vmatmul.bf16.gmra.mxu0 %v737
      %v767 = vpop.f32.mrf.mxu0
      %v768 = vadd.f32 0.0, %v767
      %v769 = vpop.f32.mrf.mxu0
      %770 = vdwg.mxu0
      %v771 = vadd.f32 %v722, %v755
      %v772 = vadd.f32 %v723, %v768
      %s773 = scalar_lea.vmem %s3, 4
      %v774 = vld [vmem:[%s773] sm:$0x3]
      %775 = vrot.lane.b32.xlu0 %v682, 126
      %v776 = vpop.permute.xlu0 %775
      %777 = vrot.lane.b32.xlu0 %v680, 126
      %v778 = vpop.permute.xlu0 %777
      %779 = vrot.lane.b32.xlu0 %v684, 126
      %v780 = vpop.permute.xlu0 %779
      %v781 = vsel %vm323, %v776, %v778
      %v782 = vsel %vm323, %v778, %v780
      %v784 = vsel %vm219, %v774, 0
      %v787 = vsel %vm223, %v781, 0
      %v790 = vsel %vm223, %v782, 0
      %792 = vmatpush.bf16.msra.mxu0 0
      %793 = vmatpush.bf16.msra.mxu0 0
      %794 = vmatpush.bf16.msra.mxu0 0
      %795 = vmatpush.bf16.msra.mxu0 0
      %796 = vmatpush.bf16.msra.mxu0 0
      %797 = vmatpush.bf16.msra.mxu0 0
      %798 = vmatpush.bf16.msra.mxu0 0
      %799 = vmatpush.bf16.msra.mxu0 %v787
      %800 = vmatmul.bf16.gmra.mxu0 %v784
      %v801 = vpop.f32.mrf.mxu0
      %v802 = vadd.f32 0.0, %v801
      %v803 = vpop.f32.mrf.mxu0
      %804 = vdwg.mxu0
      %805 = vmatpush.bf16.msra.mxu0 0
      %806 = vmatpush.bf16.msra.mxu0 0
      %807 = vmatpush.bf16.msra.mxu0 0
      %808 = vmatpush.bf16.msra.mxu0 0
      %809 = vmatpush.bf16.msra.mxu0 0
      %810 = vmatpush.bf16.msra.mxu0 0
      %811 = vmatpush.bf16.msra.mxu0 0
      %812 = vmatpush.bf16.msra.mxu0 %v790
      %813 = vmatmul.bf16.gmra.mxu0 %v784
      %v814 = vpop.f32.mrf.mxu0
      %v815 = vadd.f32 0.0, %v814
      %v816 = vpop.f32.mrf.mxu0
      %817 = vdwg.mxu0
      %v818 = vmul.f32 %v802, %v364
      %v819 = vmul.f32 %v815, %v365
      %v820 = vadd.f32 %v771, %v818
      %v821 = vadd.f32 %v772, %v819
      %s822 = scalar_lea.vmem %s3, 6
      %v823 = vld [vmem:[%s822] sm:$0x3]
      %824 = vrot.lane.b32.xlu0 %v682, 112
      %v825 = vpop.permute.xlu0 %824
      %826 = vrot.lane.b32.xlu0 %v680, 112
      %v827 = vpop.permute.xlu0 %826
      %828 = vrot.lane.b32.xlu0 %v684, 112
      %v829 = vpop.permute.xlu0 %828
      %v830 = vsel %vm380, %v825, %v827
      %v831 = vsel %vm380, %v827, %v829
      %v833 = vsel %vm219, %v823, 0
      %v836 = vsel %vm223, %v830, 0
      %v839 = vsel %vm223, %v831, 0
      %841 = vmatpush.bf16.msra.mxu0 0
      %842 = vmatpush.bf16.msra.mxu0 0
      %843 = vmatpush.bf16.msra.mxu0 0
      %844 = vmatpush.bf16.msra.mxu0 0
      %845 = vmatpush.bf16.msra.mxu0 0
      %846 = vmatpush.bf16.msra.mxu0 0
      %847 = vmatpush.bf16.msra.mxu0 0
      %848 = vmatpush.bf16.msra.mxu0 %v836
      %849 = vmatmul.bf16.gmra.mxu0 %v833
      %v850 = vpop.f32.mrf.mxu0
      %v851 = vadd.f32 0.0, %v850
      %v852 = vpop.f32.mrf.mxu0
      %853 = vdwg.mxu0
      %854 = vmatpush.bf16.msra.mxu0 0
      %855 = vmatpush.bf16.msra.mxu0 0
      %856 = vmatpush.bf16.msra.mxu0 0
      %857 = vmatpush.bf16.msra.mxu0 0
      %858 = vmatpush.bf16.msra.mxu0 0
      %859 = vmatpush.bf16.msra.mxu0 0
      %860 = vmatpush.bf16.msra.mxu0 0
      %861 = vmatpush.bf16.msra.mxu0 %v839
      %862 = vmatmul.bf16.gmra.mxu0 %v833
      %v863 = vpop.f32.mrf.mxu0
      %v864 = vadd.f32 0.0, %v863
      %v865 = vpop.f32.mrf.mxu0
      %866 = vdwg.mxu0
      %v867 = vmul.f32 %v851, %v257
      %v868 = vmul.f32 %v864, %v258
      %v869 = vadd.f32 %v820, %v867
      %v870 = vadd.f32 %v821, %v868
      %s871 = scalar_lea.vmem %s3, 8
      %v872 = vld [vmem:[%s871] sm:$0x3]
      %873 = vrot.lane.b32.xlu0 %v682, 111
      %v874 = vpop.permute.xlu0 %873
      %875 = vrot.lane.b32.xlu0 %v680, 111
      %v876 = vpop.permute.xlu0 %875
      %877 = vrot.lane.b32.xlu0 %v684, 111
      %v878 = vpop.permute.xlu0 %877
      %v879 = vsel %vm430, %v874, %v876
      %v880 = vsel %vm430, %v876, %v878
      %v882 = vsel %vm219, %v872, 0
      %v885 = vsel %vm223, %v879, 0
      %v888 = vsel %vm223, %v880, 0
      %890 = vmatpush.bf16.msra.mxu0 0
      %891 = vmatpush.bf16.msra.mxu0 0
      %892 = vmatpush.bf16.msra.mxu0 0
      %893 = vmatpush.bf16.msra.mxu0 0
      %894 = vmatpush.bf16.msra.mxu0 0
      %895 = vmatpush.bf16.msra.mxu0 0
      %896 = vmatpush.bf16.msra.mxu0 0
      %897 = vmatpush.bf16.msra.mxu0 %v885
      %898 = vmatmul.bf16.gmra.mxu0 %v882
      %v899 = vpop.f32.mrf.mxu0
      %v900 = vadd.f32 0.0, %v899
      %v901 = vpop.f32.mrf.mxu0
      %902 = vdwg.mxu0
      %903 = vmatpush.bf16.msra.mxu0 0
      %904 = vmatpush.bf16.msra.mxu0 0
      %905 = vmatpush.bf16.msra.mxu0 0
      %906 = vmatpush.bf16.msra.mxu0 0
      %907 = vmatpush.bf16.msra.mxu0 0
      %908 = vmatpush.bf16.msra.mxu0 0
      %909 = vmatpush.bf16.msra.mxu0 0
      %910 = vmatpush.bf16.msra.mxu0 %v888
      %911 = vmatmul.bf16.gmra.mxu0 %v882
      %v912 = vpop.f32.mrf.mxu0
      %v913 = vadd.f32 0.0, %v912
      %v914 = vpop.f32.mrf.mxu0
      %915 = vdwg.mxu0
      %v916 = vadd.f32 %v869, %v900
      %v917 = vadd.f32 %v870, %v913
      %s918 = scalar_lea.vmem %s3, 10
      %v919 = vld [vmem:[%s918] sm:$0x3]
      %920 = vrot.lane.b32.xlu0 %v682, 110
      %v921 = vpop.permute.xlu0 %920
      %922 = vrot.lane.b32.xlu0 %v680, 110
      %v923 = vpop.permute.xlu0 %922
      %924 = vrot.lane.b32.xlu0 %v684, 110
      %v925 = vpop.permute.xlu0 %924
      %v926 = vsel %vm478, %v921, %v923
      %v927 = vsel %vm478, %v923, %v925
      %v929 = vsel %vm219, %v919, 0
      %v932 = vsel %vm223, %v926, 0
      %v935 = vsel %vm223, %v927, 0
      %937 = vmatpush.bf16.msra.mxu0 0
      %938 = vmatpush.bf16.msra.mxu0 0
      %939 = vmatpush.bf16.msra.mxu0 0
      %940 = vmatpush.bf16.msra.mxu0 0
      %941 = vmatpush.bf16.msra.mxu0 0
      %942 = vmatpush.bf16.msra.mxu0 0
      %943 = vmatpush.bf16.msra.mxu0 0
      %944 = vmatpush.bf16.msra.mxu0 %v932
      %945 = vmatmul.bf16.gmra.mxu0 %v929
      %v946 = vpop.f32.mrf.mxu0
      %v947 = vadd.f32 0.0, %v946
      %v948 = vpop.f32.mrf.mxu0
      %949 = vdwg.mxu0
      %950 = vmatpush.bf16.msra.mxu0 0
      %951 = vmatpush.bf16.msra.mxu0 0
      %952 = vmatpush.bf16.msra.mxu0 0
      %953 = vmatpush.bf16.msra.mxu0 0
      %954 = vmatpush.bf16.msra.mxu0 0
      %955 = vmatpush.bf16.msra.mxu0 0
      %956 = vmatpush.bf16.msra.mxu0 0
      %957 = vmatpush.bf16.msra.mxu0 %v935
      %958 = vmatmul.bf16.gmra.mxu0 %v929
      %v959 = vpop.f32.mrf.mxu0
      %v960 = vadd.f32 0.0, %v959
      %v961 = vpop.f32.mrf.mxu0
      %962 = vdwg.mxu0
      %v963 = vmul.f32 %v947, %v364
      %v964 = vmul.f32 %v960, %v365
      %v965 = vadd.f32 %v916, %v963
      %v966 = vadd.f32 %v917, %v964
      %s967 = scalar_lea.vmem %s3, 12
      %v968 = vld [vmem:[%s967] sm:$0x3]
      %969 = vrot.lane.b32.xlu0 %v682, 96
      %v970 = vpop.permute.xlu0 %969
      %971 = vrot.lane.b32.xlu0 %v680, 96
      %v972 = vpop.permute.xlu0 %971
      %973 = vrot.lane.b32.xlu0 %v684, 96
      %v974 = vpop.permute.xlu0 %973
      %v975 = vsel %vm528, %v970, %v972
      %v976 = vsel %vm528, %v972, %v974
      %v978 = vsel %vm219, %v968, 0
      %v981 = vsel %vm223, %v975, 0
      %v984 = vsel %vm223, %v976, 0
      %986 = vmatpush.bf16.msra.mxu0 0
      %987 = vmatpush.bf16.msra.mxu0 0
      %988 = vmatpush.bf16.msra.mxu0 0
      %989 = vmatpush.bf16.msra.mxu0 0
      %990 = vmatpush.bf16.msra.mxu0 0
      %991 = vmatpush.bf16.msra.mxu0 0
      %992 = vmatpush.bf16.msra.mxu0 0
      %993 = vmatpush.bf16.msra.mxu0 %v981
      %994 = vmatmul.bf16.gmra.mxu0 %v978
      %v995 = vpop.f32.mrf.mxu0
      %v996 = vadd.f32 0.0, %v995
      %v997 = vpop.f32.mrf.mxu0
      %998 = vdwg.mxu0
      %999 = vmatpush.bf16.msra.mxu0 0
      %1000 = vmatpush.bf16.msra.mxu0 0
      %1001 = vmatpush.bf16.msra.mxu0 0
      %1002 = vmatpush.bf16.msra.mxu0 0
      %1003 = vmatpush.bf16.msra.mxu0 0
      %1004 = vmatpush.bf16.msra.mxu0 0
      %1005 = vmatpush.bf16.msra.mxu0 0
      %1006 = vmatpush.bf16.msra.mxu0 %v984
      %1007 = vmatmul.bf16.gmra.mxu0 %v978
      %v1008 = vpop.f32.mrf.mxu0
      %v1009 = vadd.f32 0.0, %v1008
      %v1010 = vpop.f32.mrf.mxu0
      %1011 = vdwg.mxu0
      %v1012 = vmul.f32 %v996, %v257
      %v1013 = vmul.f32 %v1009, %v258
      %v1014 = vadd.f32 %v965, %v1012
      %v1015 = vadd.f32 %v966, %v1013
      %s1016 = scalar_lea.vmem %s3, 14
      %v1017 = vld [vmem:[%s1016] sm:$0x3]
      %1018 = vrot.lane.b32.xlu0 %v682, 95
      %v1019 = vpop.permute.xlu0 %1018
      %1020 = vrot.lane.b32.xlu0 %v680, 95
      %v1021 = vpop.permute.xlu0 %1020
      %1022 = vrot.lane.b32.xlu0 %v684, 95
      %v1023 = vpop.permute.xlu0 %1022
      %v1024 = vsel %vm578, %v1019, %v1021
      %v1025 = vsel %vm578, %v1021, %v1023
      %v1027 = vsel %vm219, %v1017, 0
      %v1030 = vsel %vm223, %v1024, 0
      %v1033 = vsel %vm223, %v1025, 0
      %1035 = vmatpush.bf16.msra.mxu0 0
      %1036 = vmatpush.bf16.msra.mxu0 0
      %1037 = vmatpush.bf16.msra.mxu0 0
      %1038 = vmatpush.bf16.msra.mxu0 0
      %1039 = vmatpush.bf16.msra.mxu0 0
      %1040 = vmatpush.bf16.msra.mxu0 0
      %1041 = vmatpush.bf16.msra.mxu0 0
      %1042 = vmatpush.bf16.msra.mxu0 %v1030
      %1043 = vmatmul.bf16.gmra.mxu0 %v1027
      %v1044 = vpop.f32.mrf.mxu0
      %v1045 = vadd.f32 0.0, %v1044
      %v1046 = vpop.f32.mrf.mxu0
      %1047 = vdwg.mxu0
      %1048 = vmatpush.bf16.msra.mxu0 0
      %1049 = vmatpush.bf16.msra.mxu0 0
      %1050 = vmatpush.bf16.msra.mxu0 0
      %1051 = vmatpush.bf16.msra.mxu0 0
      %1052 = vmatpush.bf16.msra.mxu0 0
      %1053 = vmatpush.bf16.msra.mxu0 0
      %1054 = vmatpush.bf16.msra.mxu0 0
      %1055 = vmatpush.bf16.msra.mxu0 %v1033
      %1056 = vmatmul.bf16.gmra.mxu0 %v1027
      %v1057 = vpop.f32.mrf.mxu0
      %v1058 = vadd.f32 0.0, %v1057
      %v1059 = vpop.f32.mrf.mxu0
      %1060 = vdwg.mxu0
      %v1061 = vadd.f32 %v1014, %v1045
      %v1062 = vadd.f32 %v1015, %v1058
      %s1063 = scalar_lea.vmem %s3, 16
      %v1064 = vld [vmem:[%s1063] sm:$0x3]
      %1065 = vrot.lane.b32.xlu0 %v682, 94
      %v1066 = vpop.permute.xlu0 %1065
      %1067 = vrot.lane.b32.xlu0 %v680, 94
      %v1068 = vpop.permute.xlu0 %1067
      %1069 = vrot.lane.b32.xlu0 %v684, 94
      %v1070 = vpop.permute.xlu0 %1069
      %v1071 = vsel %vm626, %v1066, %v1068
      %v1072 = vsel %vm626, %v1068, %v1070
      %v1074 = vsel %vm219, %v1064, 0
      %v1077 = vsel %vm223, %v1071, 0
      %v1080 = vsel %vm223, %v1072, 0
      %1082 = vmatpush.bf16.msra.mxu0 0
      %1083 = vmatpush.bf16.msra.mxu0 0
      %1084 = vmatpush.bf16.msra.mxu0 0
      %1085 = vmatpush.bf16.msra.mxu0 0
      %1086 = vmatpush.bf16.msra.mxu0 0
      %1087 = vmatpush.bf16.msra.mxu0 0
      %1088 = vmatpush.bf16.msra.mxu0 0
      %1089 = vmatpush.bf16.msra.mxu0 %v1077
      %1090 = vmatmul.bf16.gmra.mxu0 %v1074
      %v1091 = vpop.f32.mrf.mxu0
      %v1092 = vadd.f32 0.0, %v1091
      %v1093 = vpop.f32.mrf.mxu0
      %1094 = vdwg.mxu0
      %1095 = vmatpush.bf16.msra.mxu0 0
      %1096 = vmatpush.bf16.msra.mxu0 0
      %1097 = vmatpush.bf16.msra.mxu0 0
      %1098 = vmatpush.bf16.msra.mxu0 0
      %1099 = vmatpush.bf16.msra.mxu0 0
      %1100 = vmatpush.bf16.msra.mxu0 0
      %1101 = vmatpush.bf16.msra.mxu0 0
      %1102 = vmatpush.bf16.msra.mxu0 %v1080
      %1103 = vmatmul.bf16.gmra.mxu0 %v1074
      %v1104 = vpop.f32.mrf.mxu0
      %v1105 = vadd.f32 0.0, %v1104
      %v1106 = vpop.f32.mrf.mxu0
      %1107 = vdwg.mxu0
      %v1108 = vmul.f32 %v1092, %v364
      %v1109 = vmul.f32 %v1105, %v365
      %v1110 = vadd.f32 %v1061, %v1108
      %v1111 = vadd.f32 %v1062, %v1109
      %v1112 = vunpack.c.l.bf16 %v199
      %1114 = vst [vmem:[#allocation1] ss:$2 sm:$0xff] %v1112
      %v1115 = vld.sshfl [vmem:[#allocation1] sm:$0xff pattern:$0x75316420]
      %v1116 = vld.sshfl [vmem:[#allocation1 + $0x8] sm:$0xff pattern:$0x75316420]
      %v1119 = vadd.f32 %v1110, %v1115
      %v1120 = vadd.f32 %v1111, %v1116
      %v1121 = vmax.f32 %v1119, 0.0
      %v1122 = vmax.f32 %v1120, 0.0
      %v1123 = vpack.c.bf16 %v1122, %v1121
      %v1125 = vrot.slane %v1123, 2
      %v1128 = vsel %vm223, %v1123, %v1125
      %1130 = vst [vmem:[%s197] sm:$0xf] %v1128
      %p1131 = scmp.lt.s32.totalorder %s15, 1
      %s1132 = scalar_select %p1131, %s15, 1
      %s1133 = smul.addr %s1132, 2
      %s1134 = smul.addr %s1133, 2
      %s1135 = scalar_lea.vmem %s4, %s1134
      // Predicated region
      $region37: #{basic_block_side_conv.3} parent=35 // pred_check
        %p1136 = pneg %p122
      $region38: #{basic_block_side_conv.3} parent=35 // pred_check_branch
        %1138 = sbr.rel (%p1136) target = $region40
      $region39: #{basic_block_side_conv.3} parent=35 // pred_region
        _
      $region40: #{basic_block_side_conv.3} parent=35 // pred_fallthru
        _
    $region36: #{basic_block_side_conv.3} parent=5 // pred_fallthru
      _
    %p1139 = scmp.le.s32.totalorder 2, %s10
    // Predicated region
    $region41: #{basic_block_side_conv.3} parent=5 // pred_check
      %p1140 = pneg %p1139
    $region42: #{basic_block_side_conv.3} parent=5 // pred_check_branch
      %1142 = sbr.rel (%p1140) target = $region44
    $region43: #{basic_block_side_conv.3} parent=5 // pred_region
      %s1143 = ssub.s32 %s10, 2
      // Predicated region
      $region45: #{basic_block_side_conv.3} parent=43 // pred_check
        %p1144 = pneg %p128
      $region46: #{basic_block_side_conv.3} parent=43 // pred_check_branch
        %1146 = sbr.rel (%p1144) target = $region48
      $region47: #{basic_block_side_conv.3} parent=43 // pred_region
        %p1147 = scmp.lt.s32.totalorder %s16, 1
        %s1148 = scalar_select %p1147, %s16, 1
        %s1149 = smul.addr %s1148, 2
        %s1150 = smul.addr %s1149, 2
        %s1151 = scalar_lea.vmem %s4, %s1150
      $region48: #{basic_block_side_conv.3} parent=43 // pred_fallthru
        _
    $region44: #{basic_block_side_conv.3} parent=5 // pred_fallthru
      _
  $region6: #{basic_block_side_conv.3} parent=0 // loop_footer
    %s14 = sadd.s32 1, %s10
  $region7: #{basic_block_side_conv.3} parent=0 // loop_footer_branch
    %9 = sbr.rel target = $region3
  $region8: #{basic_block_side_conv.3} parent=0 // loop_exit
    _

// kernel: basic_block_side_conv.5
$region0: #{basic_block_side_conv.5}
  #allocation0 [shape = 'u32[]', space=smem, size = 0x4, offset = 0x4, fixed_abs, tag = 'smem constant byte address 0x4 - core index']
  #allocation1 [shape = 'u32[72,128]{1,0:T(1,128)}', space=vmem, size = 0x9000, scoped, tag = 'internal scratch']
  %s0 = inlined_call_operand.vmem [shape: bf16[2,4,256], index: 0, kind: input, shape index: {}]
  %s1 = inlined_call_operand.vmem [shape: bf16[8,4], index: 1, kind: input, shape index: {}]
  %s2 = inlined_call_operand.vmem [shape: f32[16,32], index: 2, kind: input, shape index: {}]
  %s3 = inlined_call_operand.vmem [shape: bf16[3,3,8,8], index: 3, kind: input, shape index: {}]
  %s4 = inlined_call_operand.vmem [shape: f32[2,8,1024], index: 4, kind: output, shape index: {}]
  %s5 = sld [smem:[#allocation0]]
  $region49: #{basic_block_side_conv.5} parent=0
    _
  %s7 = ssub.s32 1, %s5
  %s8 = scalar_select 0, %s7, %s5
  loop: start=0, step=1, limit=4
  $region2: #{basic_block_side_conv.5} parent=0 // loop_pre_header
    _
  $region3: #{basic_block_side_conv.5} parent=0 // loop_header
    %s10 = sphi 0, %s14
    %p11 = scmp.ge.s32.totalorder %s10, 4
    %s20 = sphi 0, %s22
    %s23 = sphi 0, %s20
    %s24 = sphi 0, %s23
    %s40 = sphi 0, %s24
    %s44 = sphi 0, %s44
    %s46 = sphi 0, %s44
    %s47 = sphi 0, %s46
    %s61 = sphi 0, %s47
    %s65 = sphi 0, %s65
    %s67 = sphi 0, %s65
    %s68 = sphi 0, %s67
    %s82 = sphi 0, %s68
    %s86 = sphi 0, %s86
    %s88 = sphi 0, %s86
    %s89 = sphi 0, %s88
    %s103 = sphi 0, %s89
    %s109 = sphi 0, %s111
    %s112 = sphi 0, %s109
    %s113 = sphi 0, %s112
    %s129 = sphi 0, %s113
  $region4: #{basic_block_side_conv.5} parent=0 // loop_header_branch
    %13 = sbr.rel (%p11) target = $region8
  $region5: #{basic_block_side_conv.5} parent=0 // loop_body
    %s15 = ssub.s32 %s10, 1
    %s16 = ssub.s32 %s10, 2
    %s17 = sadd.s32 %s10, 1
    %s18 = ssub.s32 %s10, %s17
    %p19 = scmp.eq.s32.totalorder %s18, 0
    %s21 = sadd.s32 %s20, 1
    %s22 = scalar_select %p19, %s20, %s21
    %p25 = pneg %p19
    %p26 = scmp.eq.s32.totalorder %s10, 1
    %p27 = por %p25, %p26
    %p28 = scmp.ne.s32.totalorder %s20, %s23
    %p29 = scmp.eq.s32.totalorder %s10, 0
    %p30 = por %p28, %p29
    %p31 = scmp.ne.s32.totalorder %s20, %s23
    %p32 = scmp.eq.s32.totalorder %s15, 1
    %p33 = por %p31, %p32
    %p34 = scmp.ne.s32.totalorder %s23, %s24
    %p35 = scmp.eq.s32.totalorder %s15, 0
    %p36 = por %p34, %p35
    %p37 = scmp.ne.s32.totalorder %s23, %s24
    %p38 = scmp.eq.s32.totalorder %s16, 1
    %p39 = por %p37, %p38
    %p41 = scmp.ne.s32.totalorder %s24, %s40
    %p42 = scmp.eq.s32.totalorder %s16, 0
    %p43 = por %p41, %p42
    %s45 = sadd.s32 %s44, 1
    %p48 = scmp.eq.s32.totalorder %s10, 1
    %p49 = scmp.ne.s32.totalorder %s44, %s46
    %p50 = scmp.eq.s32.totalorder %s10, 0
    %p51 = por %p49, %p50
    %p52 = scmp.ne.s32.totalorder %s44, %s46
    %p53 = scmp.eq.s32.totalorder %s15, 1
    %p54 = por %p52, %p53
    %p55 = scmp.ne.s32.totalorder %s46, %s47
    %p56 = scmp.eq.s32.totalorder %s15, 0
    %p57 = por %p55, %p56
    %p58 = scmp.ne.s32.totalorder %s46, %s47
    %p59 = scmp.eq.s32.totalorder %s16, 1
    %p60 = por %p58, %p59
    %p62 = scmp.ne.s32.totalorder %s47, %s61
    %p63 = scmp.eq.s32.totalorder %s16, 0
    %p64 = por %p62, %p63
    %s66 = sadd.s32 %s65, 1
    %p69 = scmp.eq.s32.totalorder %s10, 1
    %p70 = scmp.ne.s32.totalorder %s65, %s67
    %p71 = scmp.eq.s32.totalorder %s10, 0
    %p72 = por %p70, %p71
    %p73 = scmp.ne.s32.totalorder %s65, %s67
    %p74 = scmp.eq.s32.totalorder %s15, 1
    %p75 = por %p73, %p74
    %p76 = scmp.ne.s32.totalorder %s67, %s68
    %p77 = scmp.eq.s32.totalorder %s15, 0
    %p78 = por %p76, %p77
    %p79 = scmp.ne.s32.totalorder %s67, %s68
    %p80 = scmp.eq.s32.totalorder %s16, 1
    %p81 = por %p79, %p80
    %p83 = scmp.ne.s32.totalorder %s68, %s82
    %p84 = scmp.eq.s32.totalorder %s16, 0
    %p85 = por %p83, %p84
    %s87 = sadd.s32 %s86, 1
    %p90 = scmp.eq.s32.totalorder %s10, 1
    %p91 = scmp.ne.s32.totalorder %s86, %s88
    %p92 = scmp.eq.s32.totalorder %s10, 0
    %p93 = por %p91, %p92
    %p94 = scmp.ne.s32.totalorder %s86, %s88
    %p95 = scmp.eq.s32.totalorder %s15, 1
    %p96 = por %p94, %p95
    %p97 = scmp.ne.s32.totalorder %s88, %s89
    %p98 = scmp.eq.s32.totalorder %s15, 0
    %p99 = por %p97, %p98
    %p100 = scmp.ne.s32.totalorder %s88, %s89
    %p101 = scmp.eq.s32.totalorder %s16, 1
    %p102 = por %p100, %p101
    %p104 = scmp.ne.s32.totalorder %s89, %s103
    %p105 = scmp.eq.s32.totalorder %s16, 0
    %p106 = por %p104, %p105
    %s107 = ssub.s32 %s10, %s17
    %p108 = scmp.eq.s32.totalorder %s107, 0
    %s110 = sadd.s32 %s109, 1
    %s111 = scalar_select %p108, %s109, %s110
    %p114 = pneg %p108
    %p115 = scmp.eq.s32.totalorder %s10, 1
    %p116 = por %p114, %p115
    %p117 = scmp.ne.s32.totalorder %s109, %s112
    %p118 = scmp.eq.s32.totalorder %s10, 0
    %p119 = por %p117, %p118
    %p120 = scmp.ne.s32.totalorder %s109, %s112
    %p121 = scmp.eq.s32.totalorder %s15, 1
    %p122 = por %p120, %p121
    %p123 = scmp.ne.s32.totalorder %s112, %s113
    %p124 = scmp.eq.s32.totalorder %s15, 0
    %p125 = por %p123, %p124
    %p126 = scmp.ne.s32.totalorder %s112, %s113
    %p127 = scmp.eq.s32.totalorder %s16, 1
    %p128 = por %p126, %p127
    %p130 = scmp.ne.s32.totalorder %s113, %s129
    %p131 = scmp.eq.s32.totalorder %s16, 0
    %p132 = por %p130, %p131
    %p133 = scmp.le.s32.totalorder 1, %s10
    %p134 = scmp.lt.s32.totalorder %s10, 3
    %p135 = pnand %p133, %p134
    %p136 = pneg %p135
    // Predicated region
    $region9: #{basic_block_side_conv.5} parent=5 // pred_check
      _
    $region10: #{basic_block_side_conv.5} parent=5 // pred_check_branch
      %138 = sbr.rel (%p135) target = $region12
    $region11: #{basic_block_side_conv.5} parent=5 // pred_region
      %s139 = ssub.s32 %s10, 1
      // Predicated region
      $region13: #{basic_block_side_conv.5} parent=11 // pred_check
        %p140 = pneg %p57
      $region14: #{basic_block_side_conv.5} parent=11 // pred_check_branch
        %142 = sbr.rel (%p140) target = $region16
      $region15: #{basic_block_side_conv.5} parent=11 // pred_region
        _
      $region16: #{basic_block_side_conv.5} parent=11 // pred_fallthru
        _
      // Predicated region
      $region17: #{basic_block_side_conv.5} parent=11 // pred_check
        %p143 = pneg %p78
      $region18: #{basic_block_side_conv.5} parent=11 // pred_check_branch
        %145 = sbr.rel (%p143) target = $region20
      $region19: #{basic_block_side_conv.5} parent=11 // pred_region
        _
      $region20: #{basic_block_side_conv.5} parent=11 // pred_fallthru
        _
      // Predicated region
      $region21: #{basic_block_side_conv.5} parent=11 // pred_check
        %p146 = pneg %p99
      $region22: #{basic_block_side_conv.5} parent=11 // pred_check_branch
        %148 = sbr.rel (%p146) target = $region24
      $region23: #{basic_block_side_conv.5} parent=11 // pred_region
        _
      $region24: #{basic_block_side_conv.5} parent=11 // pred_fallthru
        _
    $region12: #{basic_block_side_conv.5} parent=5 // pred_fallthru
      _
    %p149 = scmp.lt.s32.totalorder %s10, 2
    // Predicated region
    $region25: #{basic_block_side_conv.5} parent=5 // pred_check
      %p150 = pneg %p149
    $region26: #{basic_block_side_conv.5} parent=5 // pred_check_branch
      %152 = sbr.rel (%p150) target = $region28
    $region27: #{basic_block_side_conv.5} parent=5 // pred_region
      // Predicated region
      $region29: #{basic_block_side_conv.5} parent=27 // pred_check
        %p153 = pneg %p30
      $region30: #{basic_block_side_conv.5} parent=27 // pred_check_branch
        %155 = sbr.rel (%p153) target = $region32
      $region31: #{basic_block_side_conv.5} parent=27 // pred_region
        %p156 = scmp.lt.s32.totalorder %s10, 1
        %s157 = scalar_select %p156, %s10, 1
        %s158 = smul.addr %s157, 2
        %s159 = smul.addr %s158, 2
        %s160 = scalar_lea.vmem %s0, %s159
      $region32: #{basic_block_side_conv.5} parent=27 // pred_fallthru
        _
    $region28: #{basic_block_side_conv.5} parent=5 // pred_fallthru
      _
    %p161 = scmp.le.s32.totalorder 1, %s10
    %p162 = scmp.lt.s32.totalorder %s10, 3
    %p163 = pnand %p161, %p162
    %p164 = pneg %p163
    // Predicated region
    $region33: #{basic_block_side_conv.5} parent=5 // pred_check
      _
    $region34: #{basic_block_side_conv.5} parent=5 // pred_check_branch
      %166 = sbr.rel (%p163) target = $region36
    $region35: #{basic_block_side_conv.5} parent=5 // pred_region
      %s167 = ssub.s32 %s10, 1
      %p168 = scmp.lt.s32.totalorder %s15, 1
      %s169 = scalar_select %p168, %s15, 1
      %s170 = smul.addr %s169, 2
      %s171 = smul.addr %s170, 2
      %s172 = scalar_lea.vmem %s0, %s171
      %p173 = pneg %p36
      %p174 = pneg %p33
      %p175 = pneg %p57
      %p176 = pneg %p54
      %p177 = pneg %p78
      %p178 = pneg %p75
      %p179 = pneg %p99
      %p180 = pneg %p96
      %p181 = pneg %p125
      %p182 = pneg %p122
      %p183 = scmp.lt.s32.totalorder %s15, 1
      %s184 = scalar_select %p183, %s15, 1
      %s185 = smul.addr %s184, 8
      %s186 = smul.addr %s185, 8
      %s187 = scalar_lea.vmem %s4, %s186
      %p188 = scmp.lt.s32.totalorder %s15, 1
      %s189 = scalar_select %p188, %s15, 1
      %s190 = smul.addr %s189, 2
      %s191 = smul.addr %s190, 2
      %s192 = scalar_lea.vmem %s0, %s191
      %p193 = scmp.lt.s32.totalorder %s15, 1
      %s194 = scalar_select %p193, %s15, 1
      %s195 = smul.addr %s194, 8
      %s196 = smul.addr %s195, 8
      %s197 = scalar_lea.vmem %s4, %s196
      %v199 = vld [vmem:[%s1] sm:$0xf]
      %v200 = vld [vmem:[%s192] sm:$0xf]
      %202 = vst [vmem:[#allocation1] ss:$4 sm:$0xff] %v200
      %v203 = vld.sshfl [vmem:[#allocation1] sm:$0xff pattern:$0x73625140]
      %v204 = vld.sshfl [vmem:[#allocation1 + $0x8] sm:$0xff pattern:$0x73625140]
      %vm205 = vcmask 31744
      %v207 = vsel %vm205, %v199, 0
      %vm209 = vcmask 1041408
      %v210 = vsel %vm209, %v203, 0
      %v212 = vsel %vm209, %v204, 0
      %214 = vmatpush.bf16.msra.mxu0 0
      %215 = vmatpush.bf16.msra.mxu0 0
      %216 = vmatpush.bf16.msra.mxu0 0
      %217 = vmatpush.bf16.msra.mxu0 0
      %218 = vmatpush.bf16.msra.mxu0 0
      %219 = vmatpush.bf16.msra.mxu0 0
      %220 = vmatpush.bf16.msra.mxu0 0
      %221 = vmatpush.bf16.msra.mxu0 %v210
      %222 = vmatmul.bf16.gmra.mxu0 %v207
      %v223 = vpop.f32.mrf.mxu0
      %v224 = vadd.f32 0.0, %v223
      %v225 = vpop.f32.mrf.mxu0
      %226 = vdwg.mxu0
      %227 = vmatpush.bf16.msra.mxu0 0
      %228 = vmatpush.bf16.msra.mxu0 0
      %229 = vmatpush.bf16.msra.mxu0 0
      %230 = vmatpush.bf16.msra.mxu0 0
      %231 = vmatpush.bf16.msra.mxu0 0
      %232 = vmatpush.bf16.msra.mxu0 0
      %233 = vmatpush.bf16.msra.mxu0 0
      %234 = vmatpush.bf16.msra.mxu0 %v212
      %235 = vmatmul.bf16.gmra.mxu0 %v207
      %v236 = vpop.f32.mrf.mxu0
      %v237 = vadd.f32 0.0, %v236
      %v238 = vpop.f32.mrf.mxu0
      %239 = vdwg.mxu0
      %v240 = vmax.f32 %v224, 0.0
      %v241 = vmax.f32 %v237, 0.0
      %v242 = vld [vmem:[%s2] sm:$0xff]
      %v243 = vld [vmem:[%s2 + $0x8] sm:$0xff]
      %v244 = vmul.f32 %v240, 0.0
      %246 = vrot.lane.b32.xlu0 %v244, 112
      %v247 = vpop.permute.xlu0 %246
      %v249 = vadd.f32 %v240, %v247
      %vm250 = vcmask 130048
      %v252 = vsel %vm250, %v249, 0
      %254 = vmatpush.msra.mxu0 0.0
      %255 = vmatpush.msra.mxu0 0.0
      %256 = vmatpush.msra.mxu0 0.0
      %257 = vmatpush.msra.mxu0 0.0
      %258 = vmatpush.msra.mxu0 0.0
      %259 = vmatpush.msra.mxu0 0.0
      %260 = vmatpush.msra.mxu0 0.0
      %261 = vmatpush.msra.mxu0 0.0
      %262 = vmatpush.msra.mxu0 0.0
      %263 = vmatpush.msra.mxu0 0.0
      %264 = vmatpush.msra.mxu0 0.0
      %265 = vmatpush.msra.mxu0 0.0
      %266 = vmatpush.msra.mxu0 0.0
      %267 = vmatpush.msra.mxu0 0.0
      %268 = vmatpush.msra.mxu0 %v243
      %269 = vmatpush.msra.mxu0 %v242
      %270 = vmatmul.f32.gmra.mxu0 %v252
      %v271 = vpop.f32.mrf.mxu0
      %v272 = vadd.f32 0.0, %v271
      %273 = vdwg.mxu0
      %275 = vrot.lane.b32.xlu0 %v272, 127
      %v276 = vpop.permute.xlu0 %275
      %278 = vrot.lane.b32.xlu0 %v272, 1
      %v279 = vpop.permute.xlu0 %278
      %281 = vrot.lane.b32.xlu0 %v272, 3
      %v282 = vpop.permute.xlu0 %281
      %vm284 = vcmask 7168
      %v285 = vsel %vm284, %v276, %v279
      %vm286 = vcmask 269312
      %v287 = vsel %vm286, %v285, %v282
      %v288 = vmul.f32 %v240, 0.75
      %v289 = vmul.f32 %v240, 0.25
      %291 = vrot.lane.b32.xlu0 %v289, 112
      %v292 = vpop.permute.xlu0 %291
      %v294 = vadd.f32 %v288, %v292
      %v296 = vsel %vm250, %v294, 0
      %298 = vmatpush.msra.mxu0 0.0
      %299 = vmatpush.msra.mxu0 0.0
      %300 = vmatpush.msra.mxu0 0.0
      %301 = vmatpush.msra.mxu0 0.0
      %302 = vmatpush.msra.mxu0 0.0
      %303 = vmatpush.msra.mxu0 0.0
      %304 = vmatpush.msra.mxu0 0.0
      %305 = vmatpush.msra.mxu0 0.0
      %306 = vmatpush.msra.mxu0 0.0
      %307 = vmatpush.msra.mxu0 0.0
      %308 = vmatpush.msra.mxu0 0.0
      %309 = vmatpush.msra.mxu0 0.0
      %310 = vmatpush.msra.mxu0 0.0
      %311 = vmatpush.msra.mxu0 0.0
      %312 = vmatpush.msra.mxu0 %v243
      %313 = vmatpush.msra.mxu0 %v242
      %314 = vmatmul.f32.gmra.mxu0 %v296
      %v315 = vpop.f32.mrf.mxu0
      %v316 = vadd.f32 0.0, %v315
      %317 = vdwg.mxu0
      %319 = vrot.lane.b32.xlu0 %v316, 127
      %v320 = vpop.permute.xlu0 %319
      %322 = vrot.lane.b32.xlu0 %v316, 1
      %v323 = vpop.permute.xlu0 %322
      %325 = vrot.lane.b32.xlu0 %v316, 3
      %v326 = vpop.permute.xlu0 %325
      %v328 = vsel %vm284, %v320, %v323
      %v329 = vsel %vm286, %v328, %v326
      %331 = vrot.lane.b32.xlu0 %v288, 112
      %v332 = vpop.permute.xlu0 %331
      %v334 = vadd.f32 %v289, %v332
      %v336 = vsel %vm250, %v334, 0
      %338 = vmatpush.msra.mxu0 0.0
      %339 = vmatpush.msra.mxu0 0.0
      %340 = vmatpush.msra.mxu0 0.0
      %341 = vmatpush.msra.mxu0 0.0
      %342 = vmatpush.msra.mxu0 0.0
      %343 = vmatpush.msra.mxu0 0.0
      %344 = vmatpush.msra.mxu0 0.0
      %345 = vmatpush.msra.mxu0 0.0
      %346 = vmatpush.msra.mxu0 0.0
      %347 = vmatpush.msra.mxu0 0.0
      %348 = vmatpush.msra.mxu0 0.0
      %349 = vmatpush.msra.mxu0 0.0
      %350 = vmatpush.msra.mxu0 0.0
      %351 = vmatpush.msra.mxu0 0.0
      %352 = vmatpush.msra.mxu0 %v243
      %353 = vmatpush.msra.mxu0 %v242
      %354 = vmatmul.f32.gmra.mxu0 %v336
      %v355 = vpop.f32.mrf.mxu0
      %v356 = vadd.f32 0.0, %v355
      %357 = vdwg.mxu0
      %359 = vrot.lane.b32.xlu0 %v356, 127
      %v360 = vpop.permute.xlu0 %359
      %362 = vrot.lane.b32.xlu0 %v356, 1
      %v363 = vpop.permute.xlu0 %362
      %365 = vrot.lane.b32.xlu0 %v356, 3
      %v366 = vpop.permute.xlu0 %365
      %v368 = vsel %vm284, %v360, %v363
      %v369 = vsel %vm286, %v368, %v366
      %370 = vrot.lane.b32.xlu0 %v294, 112
      %v371 = vpop.permute.xlu0 %370
      %v372 = vsel %vm250, %v371, 0
      %374 = vmatpush.msra.mxu0 0.0
      %375 = vmatpush.msra.mxu0 0.0
      %376 = vmatpush.msra.mxu0 0.0
      %377 = vmatpush.msra.mxu0 0.0
      %378 = vmatpush.msra.mxu0 0.0
      %379 = vmatpush.msra.mxu0 0.0
      %380 = vmatpush.msra.mxu0 0.0
      %381 = vmatpush.msra.mxu0 0.0
      %382 = vmatpush.msra.mxu0 0.0
      %383 = vmatpush.msra.mxu0 0.0
      %384 = vmatpush.msra.mxu0 0.0
      %385 = vmatpush.msra.mxu0 0.0
      %386 = vmatpush.msra.mxu0 0.0
      %387 = vmatpush.msra.mxu0 0.0
      %388 = vmatpush.msra.mxu0 %v243
      %389 = vmatpush.msra.mxu0 %v242
      %390 = vmatmul.f32.gmra.mxu0 %v372
      %v391 = vpop.f32.mrf.mxu0
      %v392 = vadd.f32 0.0, %v391
      %393 = vdwg.mxu0
      %395 = vrot.lane.b32.xlu0 %v392, 127
      %v396 = vpop.permute.xlu0 %395
      %398 = vrot.lane.b32.xlu0 %v392, 1
      %v399 = vpop.permute.xlu0 %398
      %401 = vrot.lane.b32.xlu0 %v392, 3
      %v402 = vpop.permute.xlu0 %401
      %v404 = vsel %vm284, %v396, %v399
      %v405 = vsel %vm286, %v404, %v402
      %406 = vrot.lane.b32.xlu0 %v334, 112
      %v407 = vpop.permute.xlu0 %406
      %v408 = vsel %vm250, %v407, 0
      %410 = vmatpush.msra.mxu0 0.0
      %411 = vmatpush.msra.mxu0 0.0
      %412 = vmatpush.msra.mxu0 0.0
      %413 = vmatpush.msra.mxu0 0.0
      %414 = vmatpush.msra.mxu0 0.0
      %415 = vmatpush.msra.mxu0 0.0
      %416 = vmatpush.msra.mxu0 0.0
      %417 = vmatpush.msra.mxu0 0.0
      %418 = vmatpush.msra.mxu0 0.0
      %419 = vmatpush.msra.mxu0 0.0
      %420 = vmatpush.msra.mxu0 0.0
      %421 = vmatpush.msra.mxu0 0.0
      %422 = vmatpush.msra.mxu0 0.0
      %423 = vmatpush.msra.mxu0 0.0
      %424 = vmatpush.msra.mxu0 %v243
      %425 = vmatpush.msra.mxu0 %v242
      %426 = vmatmul.f32.gmra.mxu0 %v408
      %v427 = vpop.f32.mrf.mxu0
      %v428 = vadd.f32 0.0, %v427
      %429 = vdwg.mxu0
      %431 = vrot.lane.b32.xlu0 %v428, 127
      %v432 = vpop.permute.xlu0 %431
      %434 = vrot.lane.b32.xlu0 %v428, 1
      %v435 = vpop.permute.xlu0 %434
      %437 = vrot.lane.b32.xlu0 %v428, 3
      %v438 = vpop.permute.xlu0 %437
      %v440 = vsel %vm284, %v432, %v435
      %v441 = vsel %vm286, %v440, %v438
      %442 = vrot.lane.b32.xlu0 %v294, 96
      %v443 = vpop.permute.xlu0 %442
      %v444 = vsel %vm250, %v443, 0
      %446 = vmatpush.msra.mxu0 0.0
      %447 = vmatpush.msra.mxu0 0.0
      %448 = vmatpush.msra.mxu0 0.0
      %449 = vmatpush.msra.mxu0 0.0
      %450 = vmatpush.msra.mxu0 0.0
      %451 = vmatpush.msra.mxu0 0.0
      %452 = vmatpush.msra.mxu0 0.0
      %453 = vmatpush.msra.mxu0 0.0
      %454 = vmatpush.msra.mxu0 0.0
      %455 = vmatpush.msra.mxu0 0.0
      %456 = vmatpush.msra.mxu0 0.0
      %457 = vmatpush.msra.mxu0 0.0
      %458 = vmatpush.msra.mxu0 0.0
      %459 = vmatpush.msra.mxu0 0.0
      %460 = vmatpush.msra.mxu0 %v243
      %461 = vmatpush.msra.mxu0 %v242
      %462 = vmatmul.f32.gmra.mxu0 %v444
      %v463 = vpop.f32.mrf.mxu0
      %v464 = vadd.f32 0.0, %v463
      %465 = vdwg.mxu0
      %467 = vrot.lane.b32.xlu0 %v464, 127
      %v468 = vpop.permute.xlu0 %467
      %470 = vrot.lane.b32.xlu0 %v464, 1
      %v471 = vpop.permute.xlu0 %470
      %473 = vrot.lane.b32.xlu0 %v464, 3
      %v474 = vpop.permute.xlu0 %473
      %v476 = vsel %vm284, %v468, %v471
      %v477 = vsel %vm286, %v476, %v474
      %478 = vrot.lane.b32.xlu0 %v334, 96
      %v479 = vpop.permute.xlu0 %478
      %v480 = vsel %vm250, %v479, 0
      %482 = vmatpush.msra.mxu0 0.0
      %483 = vmatpush.msra.mxu0 0.0
      %484 = vmatpush.msra.mxu0 0.0
      %485 = vmatpush.msra.mxu0 0.0
      %486 = vmatpush.msra.mxu0 0.0
      %487 = vmatpush.msra.mxu0 0.0
      %488 = vmatpush.msra.mxu0 0.0
      %489 = vmatpush.msra.mxu0 0.0
      %490 = vmatpush.msra.mxu0 0.0
      %491 = vmatpush.msra.mxu0 0.0
      %492 = vmatpush.msra.mxu0 0.0
      %493 = vmatpush.msra.mxu0 0.0
      %494 = vmatpush.msra.mxu0 0.0
      %495 = vmatpush.msra.mxu0 0.0
      %496 = vmatpush.msra.mxu0 %v243
      %497 = vmatpush.msra.mxu0 %v242
      %498 = vmatmul.f32.gmra.mxu0 %v480
      %v499 = vpop.f32.mrf.mxu0
      %v500 = vadd.f32 0.0, %v499
      %501 = vdwg.mxu0
      %503 = vrot.lane.b32.xlu0 %v500, 127
      %v504 = vpop.permute.xlu0 %503
      %506 = vrot.lane.b32.xlu0 %v500, 1
      %v507 = vpop.permute.xlu0 %506
      %509 = vrot.lane.b32.xlu0 %v500, 3
      %v510 = vpop.permute.xlu0 %509
      %v512 = vsel %vm284, %v504, %v507
      %v513 = vsel %vm286, %v512, %v510
      %514 = vrot.lane.b32.xlu0 %v294, 80
      %v515 = vpop.permute.xlu0 %514
      %v516 = vsel %vm250, %v515, 0
      %518 = vmatpush.msra.mxu0 0.0
      %519 = vmatpush.msra.mxu0 0.0
      %520 = vmatpush.msra.mxu0 0.0
      %521 = vmatpush.msra.mxu0 0.0
      %522 = vmatpush.msra.mxu0 0.0
      %523 = vmatpush.msra.mxu0 0.0
      %524 = vmatpush.msra.mxu0 0.0
      %525 = vmatpush.msra.mxu0 0.0
      %526 = vmatpush.msra.mxu0 0.0
      %527 = vmatpush.msra.mxu0 0.0
      %528 = vmatpush.msra.mxu0 0.0
      %529 = vmatpush.msra.mxu0 0.0
      %530 = vmatpush.msra.mxu0 0.0
      %531 = vmatpush.msra.mxu0 0.0
      %532 = vmatpush.msra.mxu0 %v243
      %533 = vmatpush.msra.mxu0 %v242
      %534 = vmatmul.f32.gmra.mxu0 %v516
      %v535 = vpop.f32.mrf.mxu0
      %v536 = vadd.f32 0.0, %v535
      %537 = vdwg.mxu0
      %539 = vrot.lane.b32.xlu0 %v536, 127
      %v540 = vpop.permute.xlu0 %539
      %542 = vrot.lane.b32.xlu0 %v536, 1
      %v543 = vpop.permute.xlu0 %542
      %545 = vrot.lane.b32.xlu0 %v536, 3
      %v546 = vpop.permute.xlu0 %545
      %v548 = vsel %vm284, %v540, %v543
      %v549 = vsel %vm286, %v548, %v546
      %550 = vrot.lane.b32.xlu0 %v334, 80
      %v551 = vpop.permute.xlu0 %550
      %v552 = vsel %vm250, %v551, 0
      %554 = vmatpush.msra.mxu0 0.0
      %555 = vmatpush.msra.mxu0 0.0
      %556 = vmatpush.msra.mxu0 0.0
      %557 = vmatpush.msra.mxu0 0.0
      %558 = vmatpush.msra.mxu0 0.0
      %559 = vmatpush.msra.mxu0 0.0
      %560 = vmatpush.msra.mxu0 0.0
      %561 = vmatpush.msra.mxu0 0.0
      %562 = vmatpush.msra.mxu0 0.0
      %563 = vmatpush.msra.mxu0 0.0
      %564 = vmatpush.msra.mxu0 0.0
      %565 = vmatpush.msra.mxu0 0.0
      %566 = vmatpush.msra.mxu0 0.0
      %567 = vmatpush.msra.mxu0 0.0
      %568 = vmatpush.msra.mxu0 %v243
      %569 = vmatpush.msra.mxu0 %v242
      %570 = vmatmul.f32.gmra.mxu0 %v552
      %v571 = vpop.f32.mrf.mxu0
      %v572 = vadd.f32 0.0, %v571
      %573 = vdwg.mxu0
      %575 = vrot.lane.b32.xlu0 %v572, 127
      %v576 = vpop.permute.xlu0 %575
      %578 = vrot.lane.b32.xlu0 %v572, 1
      %v579 = vpop.permute.xlu0 %578
      %581 = vrot.lane.b32.xlu0 %v572, 3
      %v582 = vpop.permute.xlu0 %581
      %v584 = vsel %vm284, %v576, %v579
      %v585 = vsel %vm286, %v584, %v582
      %586 = vrot.lane.b32.xlu0 %v294, 64
      %v587 = vpop.permute.xlu0 %586
      %v588 = vsel %vm250, %v587, 0
      %590 = vmatpush.msra.mxu0 0.0
      %591 = vmatpush.msra.mxu0 0.0
      %592 = vmatpush.msra.mxu0 0.0
      %593 = vmatpush.msra.mxu0 0.0
      %594 = vmatpush.msra.mxu0 0.0
      %595 = vmatpush.msra.mxu0 0.0
      %596 = vmatpush.msra.mxu0 0.0
      %597 = vmatpush.msra.mxu0 0.0
      %598 = vmatpush.msra.mxu0 0.0
      %599 = vmatpush.msra.mxu0 0.0
      %600 = vmatpush.msra.mxu0 0.0
      %601 = vmatpush.msra.mxu0 0.0
      %602 = vmatpush.msra.mxu0 0.0
      %603 = vmatpush.msra.mxu0 0.0
      %604 = vmatpush.msra.mxu0 %v243
      %605 = vmatpush.msra.mxu0 %v242
      %606 = vmatmul.f32.gmra.mxu0 %v588
      %v607 = vpop.f32.mrf.mxu0
      %v608 = vadd.f32 0.0, %v607
      %609 = vdwg.mxu0
      %611 = vrot.lane.b32.xlu0 %v608, 127
      %v612 = vpop.permute.xlu0 %611
      %614 = vrot.lane.b32.xlu0 %v608, 1
      %v615 = vpop.permute.xlu0 %614
      %617 = vrot.lane.b32.xlu0 %v608, 3
      %v618 = vpop.permute.xlu0 %617
      %v620 = vsel %vm284, %v612, %v615
      %v621 = vsel %vm286, %v620, %v618
      %622 = vrot.lane.b32.xlu0 %v334, 64
      %v623 = vpop.permute.xlu0 %622
      %v624 = vsel %vm250, %v623, 0
      %626 = vmatpush.msra.mxu0 0.0
      %627 = vmatpush.msra.mxu0 0.0
      %628 = vmatpush.msra.mxu0 0.0
      %629 = vmatpush.msra.mxu0 0.0
      %630 = vmatpush.msra.mxu0 0.0
      %631 = vmatpush.msra.mxu0 0.0
      %632 = vmatpush.msra.mxu0 0.0
      %633 = vmatpush.msra.mxu0 0.0
      %634 = vmatpush.msra.mxu0 0.0
      %635 = vmatpush.msra.mxu0 0.0
      %636 = vmatpush.msra.mxu0 0.0
      %637 = vmatpush.msra.mxu0 0.0
      %638 = vmatpush.msra.mxu0 0.0
      %639 = vmatpush.msra.mxu0 0.0
      %640 = vmatpush.msra.mxu0 %v243
      %641 = vmatpush.msra.mxu0 %v242
      %642 = vmatmul.f32.gmra.mxu0 %v624
      %v643 = vpop.f32.mrf.mxu0
      %v644 = vadd.f32 0.0, %v643
      %645 = vdwg.mxu0
      %647 = vrot.lane.b32.xlu0 %v644, 127
      %v648 = vpop.permute.xlu0 %647
      %650 = vrot.lane.b32.xlu0 %v644, 1
      %v651 = vpop.permute.xlu0 %650
      %653 = vrot.lane.b32.xlu0 %v644, 3
      %v654 = vpop.permute.xlu0 %653
      %v656 = vsel %vm284, %v648, %v651
      %v657 = vsel %vm286, %v656, %v654
      %658 = vrot.lane.b32.xlu0 %v294, 48
      %v659 = vpop.permute.xlu0 %658
      %v660 = vsel %vm250, %v659, 0
      %662 = vmatpush.msra.mxu0 0.0
      %663 = vmatpush.msra.mxu0 0.0
      %664 = vmatpush.msra.mxu0 0.0
      %665 = vmatpush.msra.mxu0 0.0
      %666 = vmatpush.msra.mxu0 0.0
      %667 = vmatpush.msra.mxu0 0.0
      %668 = vmatpush.msra.mxu0 0.0
      %669 = vmatpush.msra.mxu0 0.0
      %670 = vmatpush.msra.mxu0 0.0
      %671 = vmatpush.msra.mxu0 0.0
      %672 = vmatpush.msra.mxu0 0.0
      %673 = vmatpush.msra.mxu0 0.0
      %674 = vmatpush.msra.mxu0 0.0
      %675 = vmatpush.msra.mxu0 0.0
      %676 = vmatpush.msra.mxu0 %v243
      %677 = vmatpush.msra.mxu0 %v242
      %678 = vmatmul.f32.gmra.mxu0 %v660
      %v679 = vpop.f32.mrf.mxu0
      %v680 = vadd.f32 0.0, %v679
      %681 = vdwg.mxu0
      %683 = vrot.lane.b32.xlu0 %v680, 127
      %v684 = vpop.permute.xlu0 %683
      %686 = vrot.lane.b32.xlu0 %v680, 1
      %v687 = vpop.permute.xlu0 %686
      %689 = vrot.lane.b32.xlu0 %v680, 3
      %v690 = vpop.permute.xlu0 %689
      %v692 = vsel %vm284, %v684, %v687
      %v693 = vsel %vm286, %v692, %v690
      %694 = vrot.lane.b32.xlu0 %v334, 48
      %v695 = vpop.permute.xlu0 %694
      %v696 = vsel %vm250, %v695, 0
      %698 = vmatpush.msra.mxu0 0.0
      %699 = vmatpush.msra.mxu0 0.0
      %700 = vmatpush.msra.mxu0 0.0
      %701 = vmatpush.msra.mxu0 0.0
      %702 = vmatpush.msra.mxu0 0.0
      %703 = vmatpush.msra.mxu0 0.0
      %704 = vmatpush.msra.mxu0 0.0
      %705 = vmatpush.msra.mxu0 0.0
      %706 = vmatpush.msra.mxu0 0.0
      %707 = vmatpush.msra.mxu0 0.0
      %708 = vmatpush.msra.mxu0 0.0
      %709 = vmatpush.msra.mxu0 0.0
      %710 = vmatpush.msra.mxu0 0.0
      %711 = vmatpush.msra.mxu0 0.0
      %712 = vmatpush.msra.mxu0 %v243
      %713 = vmatpush.msra.mxu0 %v242
      %714 = vmatmul.f32.gmra.mxu0 %v696
      %v715 = vpop.f32.mrf.mxu0
      %v716 = vadd.f32 0.0, %v715
      %717 = vdwg.mxu0
      %719 = vrot.lane.b32.xlu0 %v716, 127
      %v720 = vpop.permute.xlu0 %719
      %722 = vrot.lane.b32.xlu0 %v716, 1
      %v723 = vpop.permute.xlu0 %722
      %725 = vrot.lane.b32.xlu0 %v716, 3
      %v726 = vpop.permute.xlu0 %725
      %v728 = vsel %vm284, %v720, %v723
      %v729 = vsel %vm286, %v728, %v726
      %730 = vrot.lane.b32.xlu0 %v294, 32
      %v731 = vpop.permute.xlu0 %730
      %v732 = vsel %vm250, %v731, 0
      %734 = vmatpush.msra.mxu0 0.0
      %735 = vmatpush.msra.mxu0 0.0
      %736 = vmatpush.msra.mxu0 0.0
      %737 = vmatpush.msra.mxu0 0.0
      %738 = vmatpush.msra.mxu0 0.0
      %739 = vmatpush.msra.mxu0 0.0
      %740 = vmatpush.msra.mxu0 0.0
      %741 = vmatpush.msra.mxu0 0.0
      %742 = vmatpush.msra.mxu0 0.0
      %743 = vmatpush.msra.mxu0 0.0
      %744 = vmatpush.msra.mxu0 0.0
      %745 = vmatpush.msra.mxu0 0.0
      %746 = vmatpush.msra.mxu0 0.0
      %747 = vmatpush.msra.mxu0 0.0
      %748 = vmatpush.msra.mxu0 %v243
      %749 = vmatpush.msra.mxu0 %v242
      %750 = vmatmul.f32.gmra.mxu0 %v732
      %v751 = vpop.f32.mrf.mxu0
      %v752 = vadd.f32 0.0, %v751
      %753 = vdwg.mxu0
      %755 = vrot.lane.b32.xlu0 %v752, 127
      %v756 = vpop.permute.xlu0 %755
      %758 = vrot.lane.b32.xlu0 %v752, 1
      %v759 = vpop.permute.xlu0 %758
      %761 = vrot.lane.b32.xlu0 %v752, 3
      %v762 = vpop.permute.xlu0 %761
      %v764 = vsel %vm284, %v756, %v759
      %v765 = vsel %vm286, %v764, %v762
      %766 = vrot.lane.b32.xlu0 %v334, 32
      %v767 = vpop.permute.xlu0 %766
      %v768 = vsel %vm250, %v767, 0
      %770 = vmatpush.msra.mxu0 0.0
      %771 = vmatpush.msra.mxu0 0.0
      %772 = vmatpush.msra.mxu0 0.0
      %773 = vmatpush.msra.mxu0 0.0
      %774 = vmatpush.msra.mxu0 0.0
      %775 = vmatpush.msra.mxu0 0.0
      %776 = vmatpush.msra.mxu0 0.0
      %777 = vmatpush.msra.mxu0 0.0
      %778 = vmatpush.msra.mxu0 0.0
      %779 = vmatpush.msra.mxu0 0.0
      %780 = vmatpush.msra.mxu0 0.0
      %781 = vmatpush.msra.mxu0 0.0
      %782 = vmatpush.msra.mxu0 0.0
      %783 = vmatpush.msra.mxu0 0.0
      %784 = vmatpush.msra.mxu0 %v243
      %785 = vmatpush.msra.mxu0 %v242
      %786 = vmatmul.f32.gmra.mxu0 %v768
      %v787 = vpop.f32.mrf.mxu0
      %v788 = vadd.f32 0.0, %v787
      %789 = vdwg.mxu0
      %791 = vrot.lane.b32.xlu0 %v788, 127
      %v792 = vpop.permute.xlu0 %791
      %794 = vrot.lane.b32.xlu0 %v788, 1
      %v795 = vpop.permute.xlu0 %794
      %797 = vrot.lane.b32.xlu0 %v788, 3
      %v798 = vpop.permute.xlu0 %797
      %v800 = vsel %vm284, %v792, %v795
      %v801 = vsel %vm286, %v800, %v798
      %v802 = vmul.f32 %v241, 0.25
      %804 = vrot.lane.b32.xlu0 %v802, 112
      %v805 = vpop.permute.xlu0 %804
      %v807 = vadd.f32 %v288, %v805
      %809 = vrot.lane.b32.xlu0 %v807, 16
      %v810 = vpop.permute.xlu0 %809
      %v811 = vsel %vm250, %v810, 0
      %813 = vmatpush.msra.mxu0 0.0
      %814 = vmatpush.msra.mxu0 0.0
      %815 = vmatpush.msra.mxu0 0.0
      %816 = vmatpush.msra.mxu0 0.0
      %817 = vmatpush.msra.mxu0 0.0
      %818 = vmatpush.msra.mxu0 0.0
      %819 = vmatpush.msra.mxu0 0.0
      %820 = vmatpush.msra.mxu0 0.0
      %821 = vmatpush.msra.mxu0 0.0
      %822 = vmatpush.msra.mxu0 0.0
      %823 = vmatpush.msra.mxu0 0.0
      %824 = vmatpush.msra.mxu0 0.0
      %825 = vmatpush.msra.mxu0 0.0
      %826 = vmatpush.msra.mxu0 0.0
      %827 = vmatpush.msra.mxu0 %v243
      %828 = vmatpush.msra.mxu0 %v242
      %829 = vmatmul.f32.gmra.mxu0 %v811
      %v830 = vpop.f32.mrf.mxu0
      %v831 = vadd.f32 0.0, %v830
      %832 = vdwg.mxu0
      %834 = vrot.lane.b32.xlu0 %v831, 127
      %v835 = vpop.permute.xlu0 %834
      %837 = vrot.lane.b32.xlu0 %v831, 1
      %v838 = vpop.permute.xlu0 %837
      %840 = vrot.lane.b32.xlu0 %v831, 3
      %v841 = vpop.permute.xlu0 %840
      %v843 = vsel %vm284, %v835, %v838
      %v844 = vsel %vm286, %v843, %v841
      %v845 = vmul.f32 %v241, 0.75
      %847 = vrot.lane.b32.xlu0 %v845, 112
      %v848 = vpop.permute.xlu0 %847
      %v850 = vadd.f32 %v289, %v848
      %852 = vrot.lane.b32.xlu0 %v850, 16
      %v853 = vpop.permute.xlu0 %852
      %v854 = vsel %vm250, %v853, 0
      %856 = vmatpush.msra.mxu0 0.0
      %857 = vmatpush.msra.mxu0 0.0
      %858 = vmatpush.msra.mxu0 0.0
      %859 = vmatpush.msra.mxu0 0.0
      %860 = vmatpush.msra.mxu0 0.0
      %861 = vmatpush.msra.mxu0 0.0
      %862 = vmatpush.msra.mxu0 0.0
      %863 = vmatpush.msra.mxu0 0.0
      %864 = vmatpush.msra.mxu0 0.0
      %865 = vmatpush.msra.mxu0 0.0
      %866 = vmatpush.msra.mxu0 0.0
      %867 = vmatpush.msra.mxu0 0.0
      %868 = vmatpush.msra.mxu0 0.0
      %869 = vmatpush.msra.mxu0 0.0
      %870 = vmatpush.msra.mxu0 %v243
      %871 = vmatpush.msra.mxu0 %v242
      %872 = vmatmul.f32.gmra.mxu0 %v854
      %v873 = vpop.f32.mrf.mxu0
      %v874 = vadd.f32 0.0, %v873
      %875 = vdwg.mxu0
      %877 = vrot.lane.b32.xlu0 %v874, 127
      %v878 = vpop.permute.xlu0 %877
      %880 = vrot.lane.b32.xlu0 %v874, 1
      %v881 = vpop.permute.xlu0 %880
      %883 = vrot.lane.b32.xlu0 %v874, 3
      %v884 = vpop.permute.xlu0 %883
      %v886 = vsel %vm284, %v878, %v881
      %v887 = vsel %vm286, %v886, %v884
      %v888 = vadd.f32 %v845, %v805
      %v890 = vsel %vm250, %v888, 0
      %892 = vmatpush.msra.mxu0 0.0
      %893 = vmatpush.msra.mxu0 0.0
      %894 = vmatpush.msra.mxu0 0.0
      %895 = vmatpush.msra.mxu0 0.0
      %896 = vmatpush.msra.mxu0 0.0
      %897 = vmatpush.msra.mxu0 0.0
      %898 = vmatpush.msra.mxu0 0.0
      %899 = vmatpush.msra.mxu0 0.0
      %900 = vmatpush.msra.mxu0 0.0
      %901 = vmatpush.msra.mxu0 0.0
      %902 = vmatpush.msra.mxu0 0.0
      %903 = vmatpush.msra.mxu0 0.0
      %904 = vmatpush.msra.mxu0 0.0
      %905 = vmatpush.msra.mxu0 0.0
      %906 = vmatpush.msra.mxu0 %v243
      %907 = vmatpush.msra.mxu0 %v242
      %908 = vmatmul.f32.gmra.mxu0 %v890
      %v909 = vpop.f32.mrf.mxu0
      %v910 = vadd.f32 0.0, %v909
      %911 = vdwg.mxu0
      %913 = vrot.lane.b32.xlu0 %v910, 127
      %v914 = vpop.permute.xlu0 %913
      %916 = vrot.lane.b32.xlu0 %v910, 1
      %v917 = vpop.permute.xlu0 %916
      %919 = vrot.lane.b32.xlu0 %v910, 3
      %v920 = vpop.permute.xlu0 %919
      %v922 = vsel %vm284, %v914, %v917
      %v923 = vsel %vm286, %v922, %v920
      %v924 = vadd.f32 %v802, %v848
      %v926 = vsel %vm250, %v924, 0
      %928 = vmatpush.msra.mxu0 0.0
      %929 = vmatpush.msra.mxu0 0.0
      %930 = vmatpush.msra.mxu0 0.0
      %931 = vmatpush.msra.mxu0 0.0
      %932 = vmatpush.msra.mxu0 0.0
      %933 = vmatpush.msra.mxu0 0.0
      %934 = vmatpush.msra.mxu0 0.0
      %935 = vmatpush.msra.mxu0 0.0
      %936 = vmatpush.msra.mxu0 0.0
      %937 = vmatpush.msra.mxu0 0.0
      %938 = vmatpush.msra.mxu0 0.0
      %939 = vmatpush.msra.mxu0 0.0
      %940 = vmatpush.msra.mxu0 0.0
      %941 = vmatpush.msra.mxu0 0.0
      %942 = vmatpush.msra.mxu0 %v243
      %943 = vmatpush.msra.mxu0 %v242
      %944 = vmatmul.f32.gmra.mxu0 %v926
      %v945 = vpop.f32.mrf.mxu0
      %v946 = vadd.f32 0.0, %v945
      %947 = vdwg.mxu0
      %949 = vrot.lane.b32.xlu0 %v946, 127
      %v950 = vpop.permute.xlu0 %949
      %952 = vrot.lane.b32.xlu0 %v946, 1
      %v953 = vpop.permute.xlu0 %952
      %955 = vrot.lane.b32.xlu0 %v946, 3
      %v956 = vpop.permute.xlu0 %955
      %v958 = vsel %vm284, %v950, %v953
      %v959 = vsel %vm286, %v958, %v956
      %960 = vrot.lane.b32.xlu0 %v888, 112
      %v961 = vpop.permute.xlu0 %960
      %v962 = vsel %vm250, %v961, 0
      %964 = vmatpush.msra.mxu0 0.0
      %965 = vmatpush.msra.mxu0 0.0
      %966 = vmatpush.msra.mxu0 0.0
      %967 = vmatpush.msra.mxu0 0.0
      %968 = vmatpush.msra.mxu0 0.0
      %969 = vmatpush.msra.mxu0 0.0
      %970 = vmatpush.msra.mxu0 0.0
      %971 = vmatpush.msra.mxu0 0.0
      %972 = vmatpush.msra.mxu0 0.0
      %973 = vmatpush.msra.mxu0 0.0
      %974 = vmatpush.msra.mxu0 0.0
      %975 = vmatpush.msra.mxu0 0.0
      %976 = vmatpush.msra.mxu0 0.0
      %977 = vmatpush.msra.mxu0 0.0
      %978 = vmatpush.msra.mxu0 %v243
      %979 = vmatpush.msra.mxu0 %v242
      %980 = vmatmul.f32.gmra.mxu0 %v962
      %v981 = vpop.f32.mrf.mxu0
      %v982 = vadd.f32 0.0, %v981
      %983 = vdwg.mxu0
      %985 = vrot.lane.b32.xlu0 %v982, 127
      %v986 = vpop.permute.xlu0 %985
      %988 = vrot.lane.b32.xlu0 %v982, 1
      %v989 = vpop.permute.xlu0 %988
      %991 = vrot.lane.b32.xlu0 %v982, 3
      %v992 = vpop.permute.xlu0 %991
      %v994 = vsel %vm284, %v986, %v989
      %v995 = vsel %vm286, %v994, %v992
      %996 = vrot.lane.b32.xlu0 %v924, 112
      %v997 = vpop.permute.xlu0 %996
      %v998 = vsel %vm250, %v997, 0
      %1000 = vmatpush.msra.mxu0 0.0
      %1001 = vmatpush.msra.mxu0 0.0
      %1002 = vmatpush.msra.mxu0 0.0
      %1003 = vmatpush.msra.mxu0 0.0
      %1004 = vmatpush.msra.mxu0 0.0
      %1005 = vmatpush.msra.mxu0 0.0
      %1006 = vmatpush.msra.mxu0 0.0
      %1007 = vmatpush.msra.mxu0 0.0
      %1008 = vmatpush.msra.mxu0 0.0
      %1009 = vmatpush.msra.mxu0 0.0
      %1010 = vmatpush.msra.mxu0 0.0
      %1011 = vmatpush.msra.mxu0 0.0
      %1012 = vmatpush.msra.mxu0 0.0
      %1013 = vmatpush.msra.mxu0 0.0
      %1014 = vmatpush.msra.mxu0 %v243
      %1015 = vmatpush.msra.mxu0 %v242
      %1016 = vmatmul.f32.gmra.mxu0 %v998
      %v1017 = vpop.f32.mrf.mxu0
      %v1018 = vadd.f32 0.0, %v1017
      %1019 = vdwg.mxu0
      %1021 = vrot.lane.b32.xlu0 %v1018, 127
      %v1022 = vpop.permute.xlu0 %1021
      %1024 = vrot.lane.b32.xlu0 %v1018, 1
      %v1025 = vpop.permute.xlu0 %1024
      %1027 = vrot.lane.b32.xlu0 %v1018, 3
      %v1028 = vpop.permute.xlu0 %1027
      %v1030 = vsel %vm284, %v1022, %v1025
      %v1031 = vsel %vm286, %v1030, %v1028
      %1032 = vrot.lane.b32.xlu0 %v888, 96
      %v1033 = vpop.permute.xlu0 %1032
      %v1034 = vsel %vm250, %v1033, 0
      %1036 = vmatpush.msra.mxu0 0.0
      %1037 = vmatpush.msra.mxu0 0.0
      %1038 = vmatpush.msra.mxu0 0.0
      %1039 = vmatpush.msra.mxu0 0.0
      %1040 = vmatpush.msra.mxu0 0.0
      %1041 = vmatpush.msra.mxu0 0.0
      %1042 = vmatpush.msra.mxu0 0.0
      %1043 = vmatpush.msra.mxu0 0.0
      %1044 = vmatpush.msra.mxu0 0.0
      %1045 = vmatpush.msra.mxu0 0.0
      %1046 = vmatpush.msra.mxu0 0.0
      %1047 = vmatpush.msra.mxu0 0.0
      %1048 = vmatpush.msra.mxu0 0.0
      %1049 = vmatpush.msra.mxu0 0.0
      %1050 = vmatpush.msra.mxu0 %v243
      %1051 = vmatpush.msra.mxu0 %v242
      %1052 = vmatmul.f32.gmra.mxu0 %v1034
      %v1053 = vpop.f32.mrf.mxu0
      %v1054 = vadd.f32 0.0, %v1053
      %1055 = vdwg.mxu0
      %1057 = vrot.lane.b32.xlu0 %v1054, 127
      %v1058 = vpop.permute.xlu0 %1057
      %1060 = vrot.lane.b32.xlu0 %v1054, 1
      %v1061 = vpop.permute.xlu0 %1060
      %1063 = vrot.lane.b32.xlu0 %v1054, 3
      %v1064 = vpop.permute.xlu0 %1063
      %v1066 = vsel %vm284, %v1058, %v1061
      %v1067 = vsel %vm286, %v1066, %v1064
      %1068 = vrot.lane.b32.xlu0 %v924, 96
      %v1069 = vpop.permute.xlu0 %1068
      %v1070 = vsel %vm250, %v1069, 0
      %1072 = vmatpush.msra.mxu0 0.0
      %1073 = vmatpush.msra.mxu0 0.0
      %1074 = vmatpush.msra.mxu0 0.0
      %1075 = vmatpush.msra.mxu0 0.0
      %1076 = vmatpush.msra.mxu0 0.0
      %1077 = vmatpush.msra.mxu0 0.0
      %1078 = vmatpush.msra.mxu0 0.0
      %1079 = vmatpush.msra.mxu0 0.0
      %1080 = vmatpush.msra.mxu0 0.0
      %1081 = vmatpush.msra.mxu0 0.0
      %1082 = vmatpush.msra.mxu0 0.0
      %1083 = vmatpush.msra.mxu0 0.0
      %1084 = vmatpush.msra.mxu0 0.0
      %1085 = vmatpush.msra.mxu0 0.0
      %1086 = vmatpush.msra.mxu0 %v243
      %1087 = vmatpush.msra.mxu0 %v242
      %1088 = vmatmul.f32.gmra.mxu0 %v1070
      %v1089 = vpop.f32.mrf.mxu0
      %v1090 = vadd.f32 0.0, %v1089
      %1091 = vdwg.mxu0
      %1093 = vrot.lane.b32.xlu0 %v1090, 127
      %v1094 = vpop.permute.xlu0 %1093
      %1096 = vrot.lane.b32.xlu0 %v1090, 1
      %v1097 = vpop.permute.xlu0 %1096
      %1099 = vrot.lane.b32.xlu0 %v1090, 3
      %v1100 = vpop.permute.xlu0 %1099
      %v1102 = vsel %vm284, %v1094, %v1097
      %v1103 = vsel %vm286, %v1102, %v1100
      %1104 = vrot.lane.b32.xlu0 %v888, 80
      %v1105 = vpop.permute.xlu0 %1104
      %v1106 = vsel %vm250, %v1105, 0
      %1108 = vmatpush.msra.mxu0 0.0
      %1109 = vmatpush.msra.mxu0 0.0
      %1110 = vmatpush.msra.mxu0 0.0
      %1111 = vmatpush.msra.mxu0 0.0
      %1112 = vmatpush.msra.mxu0 0.0
      %1113 = vmatpush.msra.mxu0 0.0
      %1114 = vmatpush.msra.mxu0 0.0
      %1115 = vmatpush.msra.mxu0 0.0
      %1116 = vmatpush.msra.mxu0 0.0
      %1117 = vmatpush.msra.mxu0 0.0
      %1118 = vmatpush.msra.mxu0 0.0
      %1119 = vmatpush.msra.mxu0 0.0
      %1120 = vmatpush.msra.mxu0 0.0
      %1121 = vmatpush.msra.mxu0 0.0
      %1122 = vmatpush.msra.mxu0 %v243
      %1123 = vmatpush.msra.mxu0 %v242
      %1124 = vmatmul.f32.gmra.mxu0 %v1106
      %v1125 = vpop.f32.mrf.mxu0
      %v1126 = vadd.f32 0.0, %v1125
      %1127 = vdwg.mxu0
      %1129 = vrot.lane.b32.xlu0 %v1126, 127
      %v1130 = vpop.permute.xlu0 %1129
      %1132 = vrot.lane.b32.xlu0 %v1126, 1
      %v1133 = vpop.permute.xlu0 %1132
      %1135 = vrot.lane.b32.xlu0 %v1126, 3
      %v1136 = vpop.permute.xlu0 %1135
      %v1138 = vsel %vm284, %v1130, %v1133
      %v1139 = vsel %vm286, %v1138, %v1136
      %1140 = vrot.lane.b32.xlu0 %v924, 80
      %v1141 = vpop.permute.xlu0 %1140
      %v1142 = vsel %vm250, %v1141, 0
      %1144 = vmatpush.msra.mxu0 0.0
      %1145 = vmatpush.msra.mxu0 0.0
      %1146 = vmatpush.msra.mxu0 0.0
      %1147 = vmatpush.msra.mxu0 0.0
      %1148 = vmatpush.msra.mxu0 0.0
      %1149 = vmatpush.msra.mxu0 0.0
      %1150 = vmatpush.msra.mxu0 0.0
      %1151 = vmatpush.msra.mxu0 0.0
      %1152 = vmatpush.msra.mxu0 0.0
      %1153 = vmatpush.msra.mxu0 0.0
      %1154 = vmatpush.msra.mxu0 0.0
      %1155 = vmatpush.msra.mxu0 0.0
      %1156 = vmatpush.msra.mxu0 0.0
      %1157 = vmatpush.msra.mxu0 0.0
      %1158 = vmatpush.msra.mxu0 %v243
      %1159 = vmatpush.msra.mxu0 %v242
      %1160 = vmatmul.f32.gmra.mxu0 %v1142
      %v1161 = vpop.f32.mrf.mxu0
      %v1162 = vadd.f32 0.0, %v1161
      %1163 = vdwg.mxu0
      %1165 = vrot.lane.b32.xlu0 %v1162, 127
      %v1166 = vpop.permute.xlu0 %1165
      %1168 = vrot.lane.b32.xlu0 %v1162, 1
      %v1169 = vpop.permute.xlu0 %1168
      %1171 = vrot.lane.b32.xlu0 %v1162, 3
      %v1172 = vpop.permute.xlu0 %1171
      %v1174 = vsel %vm284, %v1166, %v1169
      %v1175 = vsel %vm286, %v1174, %v1172
      %1176 = vrot.lane.b32.xlu0 %v888, 64
      %v1177 = vpop.permute.xlu0 %1176
      %v1178 = vsel %vm250, %v1177, 0
      %1180 = vmatpush.msra.mxu0 0.0
      %1181 = vmatpush.msra.mxu0 0.0
      %1182 = vmatpush.msra.mxu0 0.0
      %1183 = vmatpush.msra.mxu0 0.0
      %1184 = vmatpush.msra.mxu0 0.0
      %1185 = vmatpush.msra.mxu0 0.0
      %1186 = vmatpush.msra.mxu0 0.0
      %1187 = vmatpush.msra.mxu0 0.0
      %1188 = vmatpush.msra.mxu0 0.0
      %1189 = vmatpush.msra.mxu0 0.0
      %1190 = vmatpush.msra.mxu0 0.0
      %1191 = vmatpush.msra.mxu0 0.0
      %1192 = vmatpush.msra.mxu0 0.0
      %1193 = vmatpush.msra.mxu0 0.0
      %1194 = vmatpush.msra.mxu0 %v243
      %1195 = vmatpush.msra.mxu0 %v242
      %1196 = vmatmul.f32.gmra.mxu0 %v1178
      %v1197 = vpop.f32.mrf.mxu0
      %v1198 = vadd.f32 0.0, %v1197
      %1199 = vdwg.mxu0
      %1201 = vrot.lane.b32.xlu0 %v1198, 127
      %v1202 = vpop.permute.xlu0 %1201
      %1204 = vrot.lane.b32.xlu0 %v1198, 1
      %v1205 = vpop.permute.xlu0 %1204
      %1207 = vrot.lane.b32.xlu0 %v1198, 3
      %v1208 = vpop.permute.xlu0 %1207
      %v1210 = vsel %vm284, %v1202, %v1205
      %v1211 = vsel %vm286, %v1210, %v1208
      %1212 = vrot.lane.b32.xlu0 %v924, 64
      %v1213 = vpop.permute.xlu0 %1212
      %v1214 = vsel %vm250, %v1213, 0
      %1216 = vmatpush.msra.mxu0 0.0
      %1217 = vmatpush.msra.mxu0 0.0
      %1218 = vmatpush.msra.mxu0 0.0
      %1219 = vmatpush.msra.mxu0 0.0
      %1220 = vmatpush.msra.mxu0 0.0
      %1221 = vmatpush.msra.mxu0 0.0
      %1222 = vmatpush.msra.mxu0 0.0
      %1223 = vmatpush.msra.mxu0 0.0
      %1224 = vmatpush.msra.mxu0 0.0
      %1225 = vmatpush.msra.mxu0 0.0
      %1226 = vmatpush.msra.mxu0 0.0
      %1227 = vmatpush.msra.mxu0 0.0
      %1228 = vmatpush.msra.mxu0 0.0
      %1229 = vmatpush.msra.mxu0 0.0
      %1230 = vmatpush.msra.mxu0 %v243
      %1231 = vmatpush.msra.mxu0 %v242
      %1232 = vmatmul.f32.gmra.mxu0 %v1214
      %v1233 = vpop.f32.mrf.mxu0
      %v1234 = vadd.f32 0.0, %v1233
      %1235 = vdwg.mxu0
      %1237 = vrot.lane.b32.xlu0 %v1234, 127
      %v1238 = vpop.permute.xlu0 %1237
      %1240 = vrot.lane.b32.xlu0 %v1234, 1
      %v1241 = vpop.permute.xlu0 %1240
      %1243 = vrot.lane.b32.xlu0 %v1234, 3
      %v1244 = vpop.permute.xlu0 %1243
      %v1246 = vsel %vm284, %v1238, %v1241
      %v1247 = vsel %vm286, %v1246, %v1244
      %1248 = vrot.lane.b32.xlu0 %v888, 48
      %v1249 = vpop.permute.xlu0 %1248
      %v1250 = vsel %vm250, %v1249, 0
      %1252 = vmatpush.msra.mxu0 0.0
      %1253 = vmatpush.msra.mxu0 0.0
      %1254 = vmatpush.msra.mxu0 0.0
      %1255 = vmatpush.msra.mxu0 0.0
      %1256 = vmatpush.msra.mxu0 0.0
      %1257 = vmatpush.msra.mxu0 0.0
      %1258 = vmatpush.msra.mxu0 0.0
      %1259 = vmatpush.msra.mxu0 0.0
      %1260 = vmatpush.msra.mxu0 0.0
      %1261 = vmatpush.msra.mxu0 0.0
      %1262 = vmatpush.msra.mxu0 0.0
      %1263 = vmatpush.msra.mxu0 0.0
      %1264 = vmatpush.msra.mxu0 0.0
      %1265 = vmatpush.msra.mxu0 0.0
      %1266 = vmatpush.msra.mxu0 %v243
      %1267 = vmatpush.msra.mxu0 %v242
      %1268 = vmatmul.f32.gmra.mxu0 %v1250
      %v1269 = vpop.f32.mrf.mxu0
      %v1270 = vadd.f32 0.0, %v1269
      %1271 = vdwg.mxu0
      %1273 = vrot.lane.b32.xlu0 %v1270, 127
      %v1274 = vpop.permute.xlu0 %1273
      %1276 = vrot.lane.b32.xlu0 %v1270, 1
      %v1277 = vpop.permute.xlu0 %1276
      %1279 = vrot.lane.b32.xlu0 %v1270, 3
      %v1280 = vpop.permute.xlu0 %1279
      %v1282 = vsel %vm284, %v1274, %v1277
      %v1283 = vsel %vm286, %v1282, %v1280
      %1284 = vrot.lane.b32.xlu0 %v924, 48
      %v1285 = vpop.permute.xlu0 %1284
      %v1286 = vsel %vm250, %v1285, 0
      %1288 = vmatpush.msra.mxu0 0.0
      %1289 = vmatpush.msra.mxu0 0.0
      %1290 = vmatpush.msra.mxu0 0.0
      %1291 = vmatpush.msra.mxu0 0.0
      %1292 = vmatpush.msra.mxu0 0.0
      %1293 = vmatpush.msra.mxu0 0.0
      %1294 = vmatpush.msra.mxu0 0.0
      %1295 = vmatpush.msra.mxu0 0.0
      %1296 = vmatpush.msra.mxu0 0.0
      %1297 = vmatpush.msra.mxu0 0.0
      %1298 = vmatpush.msra.mxu0 0.0
      %1299 = vmatpush.msra.mxu0 0.0
      %1300 = vmatpush.msra.mxu0 0.0
      %1301 = vmatpush.msra.mxu0 0.0
      %1302 = vmatpush.msra.mxu0 %v243
      %1303 = vmatpush.msra.mxu0 %v242
      %1304 = vmatmul.f32.gmra.mxu0 %v1286
      %v1305 = vpop.f32.mrf.mxu0
      %v1306 = vadd.f32 0.0, %v1305
      %1307 = vdwg.mxu0
      %1309 = vrot.lane.b32.xlu0 %v1306, 127
      %v1310 = vpop.permute.xlu0 %1309
      %1312 = vrot.lane.b32.xlu0 %v1306, 1
      %v1313 = vpop.permute.xlu0 %1312
      %1315 = vrot.lane.b32.xlu0 %v1306, 3
      %v1316 = vpop.permute.xlu0 %1315
      %v1318 = vsel %vm284, %v1310, %v1313
      %v1319 = vsel %vm286, %v1318, %v1316
      %1320 = vrot.lane.b32.xlu0 %v888, 32
      %v1321 = vpop.permute.xlu0 %1320
      %v1322 = vsel %vm250, %v1321, 0
      %1324 = vmatpush.msra.mxu0 0.0
      %1325 = vmatpush.msra.mxu0 0.0
      %1326 = vmatpush.msra.mxu0 0.0
      %1327 = vmatpush.msra.mxu0 0.0
      %1328 = vmatpush.msra.mxu0 0.0
      %1329 = vmatpush.msra.mxu0 0.0
      %1330 = vmatpush.msra.mxu0 0.0
      %1331 = vmatpush.msra.mxu0 0.0
      %1332 = vmatpush.msra.mxu0 0.0
      %1333 = vmatpush.msra.mxu0 0.0
      %1334 = vmatpush.msra.mxu0 0.0
      %1335 = vmatpush.msra.mxu0 0.0
      %1336 = vmatpush.msra.mxu0 0.0
      %1337 = vmatpush.msra.mxu0 0.0
      %1338 = vmatpush.msra.mxu0 %v243
      %1339 = vmatpush.msra.mxu0 %v242
      %1340 = vmatmul.f32.gmra.mxu0 %v1322
      %v1341 = vpop.f32.mrf.mxu0
      %v1342 = vadd.f32 0.0, %v1341
      %1343 = vdwg.mxu0
      %1345 = vrot.lane.b32.xlu0 %v1342, 127
      %v1346 = vpop.permute.xlu0 %1345
      %1348 = vrot.lane.b32.xlu0 %v1342, 1
      %v1349 = vpop.permute.xlu0 %1348
      %1351 = vrot.lane.b32.xlu0 %v1342, 3
      %v1352 = vpop.permute.xlu0 %1351
      %v1354 = vsel %vm284, %v1346, %v1349
      %v1355 = vsel %vm286, %v1354, %v1352
      %1356 = vrot.lane.b32.xlu0 %v924, 32
      %v1357 = vpop.permute.xlu0 %1356
      %v1358 = vsel %vm250, %v1357, 0
      %1360 = vmatpush.msra.mxu0 0.0
      %1361 = vmatpush.msra.mxu0 0.0
      %1362 = vmatpush.msra.mxu0 0.0
      %1363 = vmatpush.msra.mxu0 0.0
      %1364 = vmatpush.msra.mxu0 0.0
      %1365 = vmatpush.msra.mxu0 0.0
      %1366 = vmatpush.msra.mxu0 0.0
      %1367 = vmatpush.msra.mxu0 0.0
      %1368 = vmatpush.msra.mxu0 0.0
      %1369 = vmatpush.msra.mxu0 0.0
      %1370 = vmatpush.msra.mxu0 0.0
      %1371 = vmatpush.msra.mxu0 0.0
      %1372 = vmatpush.msra.mxu0 0.0
      %1373 = vmatpush.msra.mxu0 0.0
      %1374 = vmatpush.msra.mxu0 %v243
      %1375 = vmatpush.msra.mxu0 %v242
      %1376 = vmatmul.f32.gmra.mxu0 %v1358
      %v1377 = vpop.f32.mrf.mxu0
      %v1378 = vadd.f32 0.0, %v1377
      %1379 = vdwg.mxu0
      %1381 = vrot.lane.b32.xlu0 %v1378, 127
      %v1382 = vpop.permute.xlu0 %1381
      %1384 = vrot.lane.b32.xlu0 %v1378, 1
      %v1385 = vpop.permute.xlu0 %1384
      %1387 = vrot.lane.b32.xlu0 %v1378, 3
      %v1388 = vpop.permute.xlu0 %1387
      %v1390 = vsel %vm284, %v1382, %v1385
      %v1391 = vsel %vm286, %v1390, %v1388
      %v1392 = vadd.f32 %v845, %v802
      %1394 = vrot.lane.b32.xlu0 %v1392, 16
      %v1395 = vpop.permute.xlu0 %1394
      %v1396 = vsel %vm250, %v1395, 0
      %1398 = vmatpush.msra.mxu0 0.0
      %1399 = vmatpush.msra.mxu0 0.0
      %1400 = vmatpush.msra.mxu0 0.0
      %1401 = vmatpush.msra.mxu0 0.0
      %1402 = vmatpush.msra.mxu0 0.0
      %1403 = vmatpush.msra.mxu0 0.0
      %1404 = vmatpush.msra.mxu0 0.0
      %1405 = vmatpush.msra.mxu0 0.0
      %1406 = vmatpush.msra.mxu0 0.0
      %1407 = vmatpush.msra.mxu0 0.0
      %1408 = vmatpush.msra.mxu0 0.0
      %1409 = vmatpush.msra.mxu0 0.0
      %1410 = vmatpush.msra.mxu0 0.0
      %1411 = vmatpush.msra.mxu0 0.0
      %1412 = vmatpush.msra.mxu0 %v243
      %1413 = vmatpush.msra.mxu0 %v242
      %1414 = vmatmul.f32.gmra.mxu0 %v1396
      %v1415 = vpop.f32.mrf.mxu0
      %v1416 = vadd.f32 0.0, %v1415
      %1417 = vdwg.mxu0
      %1419 = vrot.lane.b32.xlu0 %v1416, 127
      %v1420 = vpop.permute.xlu0 %1419
      %1422 = vrot.lane.b32.xlu0 %v1416, 1
      %v1423 = vpop.permute.xlu0 %1422
      %1425 = vrot.lane.b32.xlu0 %v1416, 3
      %v1426 = vpop.permute.xlu0 %1425
      %v1428 = vsel %vm284, %v1420, %v1423
      %v1429 = vsel %vm286, %v1428, %v1426
      %1431 = vrot.lane.b32.xlu0 %v287, 34
      %v1432 = vpop.permute.xlu0 %1431
      %1435 = vrot.lane.b32.xlu0 %v329, 68
      %v1436 = vpop.permute.xlu0 %1435
      %1439 = vrot.lane.b32.xlu0 %v369, 102
      %v1440 = vpop.permute.xlu0 %1439
      %1443 = vrot.lane.b32.xlu0 %v405, 8
      %v1444 = vpop.permute.xlu0 %1443
      %1447 = vrot.lane.b32.xlu0 %v441, 42
      %v1448 = vpop.permute.xlu0 %1447
      %1451 = vrot.lane.b32.xlu0 %v477, 76
      %v1452 = vpop.permute.xlu0 %1451
      %1455 = vrot.lane.b32.xlu0 %v513, 110
      %v1456 = vpop.permute.xlu0 %1455
      %1459 = vrot.lane.b32.xlu0 %v549, 16
      %v1460 = vpop.permute.xlu0 %1459
      %1463 = vrot.lane.b32.xlu0 %v585, 50
      %v1464 = vpop.permute.xlu0 %1463
      %1467 = vrot.lane.b32.xlu0 %v621, 84
      %v1468 = vpop.permute.xlu0 %1467
      %1471 = vrot.lane.b32.xlu0 %v657, 118
      %v1472 = vpop.permute.xlu0 %1471
      %1475 = vrot.lane.b32.xlu0 %v693, 24
      %v1476 = vpop.permute.xlu0 %1475
      %1479 = vrot.lane.b32.xlu0 %v729, 58
      %v1480 = vpop.permute.xlu0 %1479
      %1483 = vrot.lane.b32.xlu0 %v765, 92
      %v1484 = vpop.permute.xlu0 %1483
      %1487 = vrot.lane.b32.xlu0 %v801, 126
      %v1488 = vpop.permute.xlu0 %1487
      %vm1490 = vcmask 277504
      %v1491 = vsel %vm1490, %v329, %v1432
      %vm1492 = vcmask 556032
      %v1493 = vsel %vm1492, %v1491, %v1436
      %vm1494 = vcmask 834560
      %v1495 = vsel %vm1494, %v1493, %v1440
      %vm1496 = vcmask 64512
      %v1497 = vsel %vm1496, %v1440, %v1444
      %vm1498 = vcmask 343040
      %v1499 = vsel %vm1498, %v1497, %v1448
      %vm1500 = vcmask 621568
      %v1501 = vsel %vm1500, %v1499, %v1452
      %vm1502 = vcmask 900096
      %v1503 = vsel %vm1502, %v1501, %v1456
      %v1504 = vsel %vm250, %v1456, %v1460
      %vm1505 = vcmask 408576
      %v1506 = vsel %vm1505, %v1504, %v1464
      %vm1507 = vcmask 687104
      %v1508 = vsel %vm1507, %v1506, %v1468
      %vm1509 = vcmask 965632
      %v1510 = vsel %vm1509, %v1508, %v1472
      %vm1511 = vcmask 195584
      %v1512 = vsel %vm1511, %v1472, %v1476
      %vm1513 = vcmask 474112
      %v1514 = vsel %vm1513, %v1512, %v1480
      %vm1515 = vcmask 752640
      %v1516 = vsel %vm1515, %v1514, %v1484
      %vm1517 = vcmask 1031168
      %v1518 = vsel %vm1517, %v1516, %v1488
      %1520 = vrot.lane.b32.xlu0 %v887, 34
      %v1521 = vpop.permute.xlu0 %1520
      %1524 = vrot.lane.b32.xlu0 %v923, 68
      %v1525 = vpop.permute.xlu0 %1524
      %1528 = vrot.lane.b32.xlu0 %v959, 102
      %v1529 = vpop.permute.xlu0 %1528
      %1532 = vrot.lane.b32.xlu0 %v995, 8
      %v1533 = vpop.permute.xlu0 %1532
      %1536 = vrot.lane.b32.xlu0 %v1031, 42
      %v1537 = vpop.permute.xlu0 %1536
      %1540 = vrot.lane.b32.xlu0 %v1067, 76
      %v1541 = vpop.permute.xlu0 %1540
      %1544 = vrot.lane.b32.xlu0 %v1103, 110
      %v1545 = vpop.permute.xlu0 %1544
      %1548 = vrot.lane.b32.xlu0 %v1139, 16
      %v1549 = vpop.permute.xlu0 %1548
      %1552 = vrot.lane.b32.xlu0 %v1175, 50
      %v1553 = vpop.permute.xlu0 %1552
      %1556 = vrot.lane.b32.xlu0 %v1211, 84
      %v1557 = vpop.permute.xlu0 %1556
      %1560 = vrot.lane.b32.xlu0 %v1247, 118
      %v1561 = vpop.permute.xlu0 %1560
      %1564 = vrot.lane.b32.xlu0 %v1283, 24
      %v1565 = vpop.permute.xlu0 %1564
      %1568 = vrot.lane.b32.xlu0 %v1319, 58
      %v1569 = vpop.permute.xlu0 %1568
      %1572 = vrot.lane.b32.xlu0 %v1355, 92
      %v1573 = vpop.permute.xlu0 %1572
      %1576 = vrot.lane.b32.xlu0 %v1391, 126
      %v1577 = vpop.permute.xlu0 %1576
      %v1579 = vsel %vm1490, %v844, %v1521
      %v1580 = vsel %vm1492, %v1579, %v1525
      %v1581 = vsel %vm1494, %v1580, %v1529
      %v1582 = vsel %vm1496, %v1529, %v1533
      %v1583 = vsel %vm1498, %v1582, %v1537
      %v1584 = vsel %vm1500, %v1583, %v1541
      %v1585 = vsel %vm1502, %v1584, %v1545
      %v1586 = vsel %vm250, %v1545, %v1549
      %v1587 = vsel %vm1505, %v1586, %v1553
      %v1588 = vsel %vm1507, %v1587, %v1557
      %v1589 = vsel %vm1509, %v1588, %v1561
      %v1590 = vsel %vm1511, %v1561, %v1565
      %v1591 = vsel %vm1513, %v1590, %v1569
      %v1592 = vsel %vm1515, %v1591, %v1573
      %v1593 = vsel %vm1517, %v1592, %v1577
      %1594 = vrot.lane.b32.xlu0 %v1391, 34
      %v1595 = vpop.permute.xlu0 %1594
      %v1597 = vsel %vm1490, %v1429, %v1595
      %1602 = vrot.lane.b32.xlu0 %v1581, 32
      %v1603 = vpop.permute.xlu0 %1602
      %1604 = vrot.lane.b32.xlu0 %v1585, 32
      %v1605 = vpop.permute.xlu0 %1604
      %1606 = vrot.lane.b32.xlu0 %v1589, 32
      %v1607 = vpop.permute.xlu0 %1606
      %1608 = vrot.lane.b32.xlu0 %v1593, 32
      %v1609 = vpop.permute.xlu0 %1608
      %1610 = vrot.lane.b32.xlu0 %v1577, 32
      %v1611 = vpop.permute.xlu0 %1610
      %vm1612 = vcmask 261120
      %v1613 = vsel %vm1612, %v1603, %v1605
      %v1614 = vsel %vm1612, %v1605, %v1607
      %v1615 = vsel %vm1612, %v1607, %v1609
      %v1616 = vsel %vm1612, %v1609, %v1611
      %1623 = vrot.lane.b32.xlu0 %v1597, 64
      %v1624 = vpop.permute.xlu0 %1623
      %v1626 = vsel %vm1612, %v1488, %v1603
      %vm1627 = vcmask 523264
      %v1628 = vsel %vm1627, %v1616, %v1624
      %v1629 = vpack.c.bf16 %v1503, %v1495
      %v1630 = vpack.c.bf16 %v1518, %v1510
      %v1631 = vpack.c.bf16 %v1613, %v1626
      %v1632 = vpack.c.bf16 %v1615, %v1614
      %v1633 = vpack.c.bf16 %v1624, %v1628
      %v1639 = vunpack.c.l.b16 %v1629
      %v1640 = vunpack.c.h.b16 %v1629
      %v1641 = vunpack.c.l.b16 %v1630
      %v1642 = vunpack.c.h.b16 %v1630
      %v1643 = vunpack.c.l.b16 %v1631
      %v1644 = vunpack.c.h.b16 %v1631
      %v1645 = vunpack.c.l.b16 %v1632
      %v1646 = vunpack.c.h.b16 %v1632
      %v1647 = vunpack.c.l.b16 %v1633
      %v1648 = vunpack.c.h.b16 %v1633
      %v1649 = vpack.c.b16 %v1639, %v1639
      %v1650 = vpack.c.b16 %v1640, %v1640
      %v1651 = vpack.c.b16 %v1641, %v1641
      %v1652 = vpack.c.b16 %v1642, %v1642
      %v1653 = vpack.c.b16 %v1643, %v1643
      %v1654 = vpack.c.b16 %v1644, %v1644
      %v1655 = vpack.c.b16 %v1645, %v1645
      %v1656 = vpack.c.b16 %v1646, %v1646
      %v1657 = vpack.c.b16 %v1647, %v1647
      %v1658 = vpack.c.b16 %v1648, %v1648
      %v1661 = vsel %vm205, %v1658, 0
      %v1662 = vld [vmem:[%s3] sm:$0xf]
      %s1663 = scalar_lea.vmem %s3, 4
      %v1664 = vld [vmem:[%s1663] sm:$0xf]
      %1666 = vrot.lane.b32.xlu0 %v1649, 127
      %v1667 = vpop.permute.xlu0 %1666
      %1668 = vrot.lane.b32.xlu0 %v1650, 127
      %v1669 = vpop.permute.xlu0 %1668
      %1670 = vrot.lane.b32.xlu0 %v1651, 127
      %v1671 = vpop.permute.xlu0 %1670
      %1672 = vrot.lane.b32.xlu0 %v1652, 127
      %v1673 = vpop.permute.xlu0 %1672
      %1674 = vrot.lane.b32.xlu0 %v1653, 127
      %v1675 = vpop.permute.xlu0 %1674
      %1676 = vrot.lane.b32.xlu0 %v1654, 127
      %v1677 = vpop.permute.xlu0 %1676
      %1678 = vrot.lane.b32.xlu0 %v1655, 127
      %v1679 = vpop.permute.xlu0 %1678
      %1680 = vrot.lane.b32.xlu0 %v1656, 127
      %v1681 = vpop.permute.xlu0 %1680
      %1682 = vrot.lane.b32.xlu0 %v1657, 127
      %v1683 = vpop.permute.xlu0 %1682
      %1684 = vrot.lane.b32.xlu0 %v1661, 127
      %v1685 = vpop.permute.xlu0 %1684
      %vm1686 = vcmask 1039360
      %v1687 = vsel %vm1686, %v1667, %v1669
      %v1688 = vsel %vm1686, %v1669, %v1671
      %v1689 = vsel %vm1686, %v1671, %v1673
      %v1690 = vsel %vm1686, %v1673, %v1675
      %v1691 = vsel %vm1686, %v1675, %v1677
      %v1692 = vsel %vm1686, %v1677, %v1679
      %v1693 = vsel %vm1686, %v1679, %v1681
      %v1694 = vsel %vm1686, %v1681, %v1683
      %v1695 = vsel %vm1686, %v1683, %v1685
      %v1697 = vsel %vm1496, %v1664, 0
      %vm1699 = vcmask 1043456
      %v1701 = vsel %vm1699, %v1687, 0
      %v1704 = vsel %vm1699, %v1688, 0
      %v1707 = vsel %vm1699, %v1689, 0
      %v1710 = vsel %vm1699, %v1690, 0
      %v1713 = vsel %vm1699, %v1691, 0
      %v1716 = vsel %vm1699, %v1692, 0
      %v1719 = vsel %vm1699, %v1693, 0
      %v1722 = vsel %vm1699, %v1694, 0
      %v1725 = vsel %vm1699, %v1695, 0
      %1727 = vmatpush.bf16.msra.mxu0 0
      %1728 = vmatpush.bf16.msra.mxu0 0
      %1729 = vmatpush.bf16.msra.mxu0 0
      %1730 = vmatpush.bf16.msra.mxu0 0
      %1731 = vmatpush.bf16.msra.mxu0 0
      %1732 = vmatpush.bf16.msra.mxu0 0
      %1733 = vmatpush.bf16.msra.mxu0 0
      %1734 = vmatpush.bf16.msra.mxu0 %v1701
      %1735 = vmatmul.bf16.gmra.mxu0 %v1697
      %v1736 = vpop.f32.mrf.mxu0
      %v1737 = vadd.f32 0.0, %v1736
      %v1738 = vpop.f32.mrf.mxu0
      %1739 = vdwg.mxu0
      %1740 = vmatpush.bf16.msra.mxu0 0
      %1741 = vmatpush.bf16.msra.mxu0 0
      %1742 = vmatpush.bf16.msra.mxu0 0
      %1743 = vmatpush.bf16.msra.mxu0 0
      %1744 = vmatpush.bf16.msra.mxu0 0
      %1745 = vmatpush.bf16.msra.mxu0 0
      %1746 = vmatpush.bf16.msra.mxu0 0
      %1747 = vmatpush.bf16.msra.mxu0 %v1704
      %1748 = vmatmul.bf16.gmra.mxu0 %v1697
      %v1749 = vpop.f32.mrf.mxu0
      %v1750 = vadd.f32 0.0, %v1749
      %v1751 = vpop.f32.mrf.mxu0
      %1752 = vdwg.mxu0
      %1753 = vmatpush.bf16.msra.mxu0 0
      %1754 = vmatpush.bf16.msra.mxu0 0
      %1755 = vmatpush.bf16.msra.mxu0 0
      %1756 = vmatpush.bf16.msra.mxu0 0
      %1757 = vmatpush.bf16.msra.mxu0 0
      %1758 = vmatpush.bf16.msra.mxu0 0
      %1759 = vmatpush.bf16.msra.mxu0 0
      %1760 = vmatpush.bf16.msra.mxu0 %v1707
      %1761 = vmatmul.bf16.gmra.mxu0 %v1697
      %v1762 = vpop.f32.mrf.mxu0
      %v1763 = vadd.f32 0.0, %v1762
      %v1764 = vpop.f32.mrf.mxu0
      %1765 = vdwg.mxu0
      %1766 = vmatpush.bf16.msra.mxu0 0
      %1767 = vmatpush.bf16.msra.mxu0 0
      %1768 = vmatpush.bf16.msra.mxu0 0
      %1769 = vmatpush.bf16.msra.mxu0 0
      %1770 = vmatpush.bf16.msra.mxu0 0
      %1771 = vmatpush.bf16.msra.mxu0 0
      %1772 = vmatpush.bf16.msra.mxu0 0
      %1773 = vmatpush.bf16.msra.mxu0 %v1710
      %1774 = vmatmul.bf16.gmra.mxu0 %v1697
      %v1775 = vpop.f32.mrf.mxu0
      %v1776 = vadd.f32 0.0, %v1775
      %v1777 = vpop.f32.mrf.mxu0
      %1778 = vdwg.mxu0
      %1779 = vmatpush.bf16.msra.mxu0 0
      %1780 = vmatpush.bf16.msra.mxu0 0
      %1781 = vmatpush.bf16.msra.mxu0 0
      %1782 = vmatpush.bf16.msra.mxu0 0
      %1783 = vmatpush.bf16.msra.mxu0 0
      %1784 = vmatpush.bf16.msra.mxu0 0
      %1785 = vmatpush.bf16.msra.mxu0 0
      %1786 = vmatpush.bf16.msra.mxu0 %v1713
      %1787 = vmatmul.bf16.gmra.mxu0 %v1697
      %v1788 = vpop.f32.mrf.mxu0
      %v1789 = vadd.f32 0.0, %v1788
      %v1790 = vpop.f32.mrf.mxu0
      %1791 = vdwg.mxu0
      %1792 = vmatpush.bf16.msra.mxu0 0
      %1793 = vmatpush.bf16.msra.mxu0 0
      %1794 = vmatpush.bf16.msra.mxu0 0
      %1795 = vmatpush.bf16.msra.mxu0 0
      %1796 = vmatpush.bf16.msra.mxu0 0
      %1797 = vmatpush.bf16.msra.mxu0 0
      %1798 = vmatpush.bf16.msra.mxu0 0
      %1799 = vmatpush.bf16.msra.mxu0 %v1716
      %1800 = vmatmul.bf16.gmra.mxu0 %v1697
      %v1801 = vpop.f32.mrf.mxu0
      %v1802 = vadd.f32 0.0, %v1801
      %v1803 = vpop.f32.mrf.mxu0
      %1804 = vdwg.mxu0
      %1805 = vmatpush.bf16.msra.mxu0 0
      %1806 = vmatpush.bf16.msra.mxu0 0
      %1807 = vmatpush.bf16.msra.mxu0 0
      %1808 = vmatpush.bf16.msra.mxu0 0
      %1809 = vmatpush.bf16.msra.mxu0 0
      %1810 = vmatpush.bf16.msra.mxu0 0
      %1811 = vmatpush.bf16.msra.mxu0 0
      %1812 = vmatpush.bf16.msra.mxu0 %v1719
      %1813 = vmatmul.bf16.gmra.mxu0 %v1697
      %v1814 = vpop.f32.mrf.mxu0
      %v1815 = vadd.f32 0.0, %v1814
      %v1816 = vpop.f32.mrf.mxu0
      %1817 = vdwg.mxu0
      %1818 = vmatpush.bf16.msra.mxu0 0
      %1819 = vmatpush.bf16.msra.mxu0 0
      %1820 = vmatpush.bf16.msra.mxu0 0
      %1821 = vmatpush.bf16.msra.mxu0 0
      %1822 = vmatpush.bf16.msra.mxu0 0
      %1823 = vmatpush.bf16.msra.mxu0 0
      %1824 = vmatpush.bf16.msra.mxu0 0
      %1825 = vmatpush.bf16.msra.mxu0 %v1722
      %1826 = vmatmul.bf16.gmra.mxu0 %v1697
      %v1827 = vpop.f32.mrf.mxu0
      %v1828 = vadd.f32 0.0, %v1827
      %v1829 = vpop.f32.mrf.mxu0
      %1830 = vdwg.mxu0
      %1831 = vmatpush.bf16.msra.mxu0 0
      %1832 = vmatpush.bf16.msra.mxu0 0
      %1833 = vmatpush.bf16.msra.mxu0 0
      %1834 = vmatpush.bf16.msra.mxu0 0
      %1835 = vmatpush.bf16.msra.mxu0 0
      %1836 = vmatpush.bf16.msra.mxu0 0
      %1837 = vmatpush.bf16.msra.mxu0 0
      %1838 = vmatpush.bf16.msra.mxu0 %v1725
      %1839 = vmatmul.bf16.gmra.mxu0 %v1697
      %v1840 = vpop.f32.mrf.mxu0
      %v1841 = vadd.f32 0.0, %v1840
      %v1842 = vpop.f32.mrf.mxu0
      %1843 = vdwg.mxu0
      %v1845 = vsel %vm1496, %v1662, 0
      %v1848 = vsel %vm1699, %v1649, 0
      %v1851 = vsel %vm1699, %v1650, 0
      %v1854 = vsel %vm1699, %v1651, 0
      %v1857 = vsel %vm1699, %v1652, 0
      %v1860 = vsel %vm1699, %v1653, 0
      %v1863 = vsel %vm1699, %v1654, 0
      %v1866 = vsel %vm1699, %v1655, 0
      %v1869 = vsel %vm1699, %v1656, 0
      %v1872 = vsel %vm1699, %v1657, 0
      %1874 = vmatpush.bf16.msra.mxu0 0
      %1875 = vmatpush.bf16.msra.mxu0 0
      %1876 = vmatpush.bf16.msra.mxu0 0
      %1877 = vmatpush.bf16.msra.mxu0 0
      %1878 = vmatpush.bf16.msra.mxu0 0
      %1879 = vmatpush.bf16.msra.mxu0 0
      %1880 = vmatpush.bf16.msra.mxu0 0
      %1881 = vmatpush.bf16.msra.mxu0 %v1848
      %1882 = vmatmul.bf16.gmra.mxu0 %v1845
      %v1883 = vpop.f32.mrf.mxu0
      %v1884 = vadd.f32 %v1737, %v1883
      %v1885 = vpop.f32.mrf.mxu0
      %1886 = vdwg.mxu0
      %1887 = vmatpush.bf16.msra.mxu0 0
      %1888 = vmatpush.bf16.msra.mxu0 0
      %1889 = vmatpush.bf16.msra.mxu0 0
      %1890 = vmatpush.bf16.msra.mxu0 0
      %1891 = vmatpush.bf16.msra.mxu0 0
      %1892 = vmatpush.bf16.msra.mxu0 0
      %1893 = vmatpush.bf16.msra.mxu0 0
      %1894 = vmatpush.bf16.msra.mxu0 %v1851
      %1895 = vmatmul.bf16.gmra.mxu0 %v1845
      %v1896 = vpop.f32.mrf.mxu0
      %v1897 = vadd.f32 %v1750, %v1896
      %v1898 = vpop.f32.mrf.mxu0
      %1899 = vdwg.mxu0
      %1900 = vmatpush.bf16.msra.mxu0 0
      %1901 = vmatpush.bf16.msra.mxu0 0
      %1902 = vmatpush.bf16.msra.mxu0 0
      %1903 = vmatpush.bf16.msra.mxu0 0
      %1904 = vmatpush.bf16.msra.mxu0 0
      %1905 = vmatpush.bf16.msra.mxu0 0
      %1906 = vmatpush.bf16.msra.mxu0 0
      %1907 = vmatpush.bf16.msra.mxu0 %v1854
      %1908 = vmatmul.bf16.gmra.mxu0 %v1845
      %v1909 = vpop.f32.mrf.mxu0
      %v1910 = vadd.f32 %v1763, %v1909
      %v1911 = vpop.f32.mrf.mxu0
      %1912 = vdwg.mxu0
      %1913 = vmatpush.bf16.msra.mxu0 0
      %1914 = vmatpush.bf16.msra.mxu0 0
      %1915 = vmatpush.bf16.msra.mxu0 0
      %1916 = vmatpush.bf16.msra.mxu0 0
      %1917 = vmatpush.bf16.msra.mxu0 0
      %1918 = vmatpush.bf16.msra.mxu0 0
      %1919 = vmatpush.bf16.msra.mxu0 0
      %1920 = vmatpush.bf16.msra.mxu0 %v1857
      %1921 = vmatmul.bf16.gmra.mxu0 %v1845
      %v1922 = vpop.f32.mrf.mxu0
      %v1923 = vadd.f32 %v1776, %v1922
      %v1924 = vpop.f32.mrf.mxu0
      %1925 = vdwg.mxu0
      %1926 = vmatpush.bf16.msra.mxu0 0
      %1927 = vmatpush.bf16.msra.mxu0 0
      %1928 = vmatpush.bf16.msra.mxu0 0
      %1929 = vmatpush.bf16.msra.mxu0 0
      %1930 = vmatpush.bf16.msra.mxu0 0
      %1931 = vmatpush.bf16.msra.mxu0 0
      %1932 = vmatpush.bf16.msra.mxu0 0
      %1933 = vmatpush.bf16.msra.mxu0 %v1860
      %1934 = vmatmul.bf16.gmra.mxu0 %v1845
      %v1935 = vpop.f32.mrf.mxu0
      %v1936 = vadd.f32 %v1789, %v1935
      %v1937 = vpop.f32.mrf.mxu0
      %1938 = vdwg.mxu0
      %1939 = vmatpush.bf16.msra.mxu0 0
      %1940 = vmatpush.bf16.msra.mxu0 0
      %1941 = vmatpush.bf16.msra.mxu0 0
      %1942 = vmatpush.bf16.msra.mxu0 0
      %1943 = vmatpush.bf16.msra.mxu0 0
      %1944 = vmatpush.bf16.msra.mxu0 0
      %1945 = vmatpush.bf16.msra.mxu0 0
      %1946 = vmatpush.bf16.msra.mxu0 %v1863
      %1947 = vmatmul.bf16.gmra.mxu0 %v1845
      %v1948 = vpop.f32.mrf.mxu0
      %v1949 = vadd.f32 %v1802, %v1948
      %v1950 = vpop.f32.mrf.mxu0
      %1951 = vdwg.mxu0
      %1952 = vmatpush.bf16.msra.mxu0 0
      %1953 = vmatpush.bf16.msra.mxu0 0
      %1954 = vmatpush.bf16.msra.mxu0 0
      %1955 = vmatpush.bf16.msra.mxu0 0
      %1956 = vmatpush.bf16.msra.mxu0 0
      %1957 = vmatpush.bf16.msra.mxu0 0
      %1958 = vmatpush.bf16.msra.mxu0 0
      %1959 = vmatpush.bf16.msra.mxu0 %v1866
      %1960 = vmatmul.bf16.gmra.mxu0 %v1845
      %v1961 = vpop.f32.mrf.mxu0
      %v1962 = vadd.f32 %v1815, %v1961
      %v1963 = vpop.f32.mrf.mxu0
      %1964 = vdwg.mxu0
      %1965 = vmatpush.bf16.msra.mxu0 0
      %1966 = vmatpush.bf16.msra.mxu0 0
      %1967 = vmatpush.bf16.msra.mxu0 0
      %1968 = vmatpush.bf16.msra.mxu0 0
      %1969 = vmatpush.bf16.msra.mxu0 0
      %1970 = vmatpush.bf16.msra.mxu0 0
      %1971 = vmatpush.bf16.msra.mxu0 0
      %1972 = vmatpush.bf16.msra.mxu0 %v1869
      %1973 = vmatmul.bf16.gmra.mxu0 %v1845
      %v1974 = vpop.f32.mrf.mxu0
      %v1975 = vadd.f32 %v1828, %v1974
      %v1976 = vpop.f32.mrf.mxu0
      %1977 = vdwg.mxu0
      %1978 = vmatpush.bf16.msra.mxu0 0
      %1979 = vmatpush.bf16.msra.mxu0 0
      %1980 = vmatpush.bf16.msra.mxu0 0
      %1981 = vmatpush.bf16.msra.mxu0 0
      %1982 = vmatpush.bf16.msra.mxu0 0
      %1983 = vmatpush.bf16.msra.mxu0 0
      %1984 = vmatpush.bf16.msra.mxu0 0
      %1985 = vmatpush.bf16.msra.mxu0 %v1872
      %1986 = vmatmul.bf16.gmra.mxu0 %v1845
      %v1987 = vpop.f32.mrf.mxu0
      %v1988 = vadd.f32 %v1841, %v1987
      %v1989 = vpop.f32.mrf.mxu0
      %1990 = vdwg.mxu0
      %s1991 = scalar_lea.vmem %s3, 8
      %v1992 = vld [vmem:[%s1991] sm:$0xf]
      %1993 = vrot.lane.b32.xlu0 %v1649, 126
      %v1994 = vpop.permute.xlu0 %1993
      %1995 = vrot.lane.b32.xlu0 %v1650, 126
      %v1996 = vpop.permute.xlu0 %1995
      %1997 = vrot.lane.b32.xlu0 %v1651, 126
      %v1998 = vpop.permute.xlu0 %1997
      %1999 = vrot.lane.b32.xlu0 %v1652, 126
      %v2000 = vpop.permute.xlu0 %1999
      %2001 = vrot.lane.b32.xlu0 %v1653, 126
      %v2002 = vpop.permute.xlu0 %2001
      %2003 = vrot.lane.b32.xlu0 %v1654, 126
      %v2004 = vpop.permute.xlu0 %2003
      %2005 = vrot.lane.b32.xlu0 %v1655, 126
      %v2006 = vpop.permute.xlu0 %2005
      %2007 = vrot.lane.b32.xlu0 %v1656, 126
      %v2008 = vpop.permute.xlu0 %2007
      %2009 = vrot.lane.b32.xlu0 %v1657, 126
      %v2010 = vpop.permute.xlu0 %2009
      %2011 = vrot.lane.b32.xlu0 %v1661, 126
      %v2012 = vpop.permute.xlu0 %2011
      %vm2013 = vcmask 1031168
      %v2014 = vsel %vm2013, %v1994, %v1996
      %v2015 = vsel %vm2013, %v1996, %v1998
      %v2016 = vsel %vm2013, %v1998, %v2000
      %v2017 = vsel %vm2013, %v2000, %v2002
      %v2018 = vsel %vm2013, %v2002, %v2004
      %v2019 = vsel %vm2013, %v2004, %v2006
      %v2020 = vsel %vm2013, %v2006, %v2008
      %v2021 = vsel %vm2013, %v2008, %v2010
      %v2022 = vsel %vm2013, %v2010, %v2012
      %v2024 = vsel %vm1496, %v1992, 0
      %v2027 = vsel %vm1699, %v2014, 0
      %v2030 = vsel %vm1699, %v2015, 0
      %v2033 = vsel %vm1699, %v2016, 0
      %v2036 = vsel %vm1699, %v2017, 0
      %v2039 = vsel %vm1699, %v2018, 0
      %v2042 = vsel %vm1699, %v2019, 0
      %v2045 = vsel %vm1699, %v2020, 0
      %v2048 = vsel %vm1699, %v2021, 0
      %v2051 = vsel %vm1699, %v2022, 0
      %2053 = vmatpush.bf16.msra.mxu0 0
      %2054 = vmatpush.bf16.msra.mxu0 0
      %2055 = vmatpush.bf16.msra.mxu0 0
      %2056 = vmatpush.bf16.msra.mxu0 0
      %2057 = vmatpush.bf16.msra.mxu0 0
      %2058 = vmatpush.bf16.msra.mxu0 0
      %2059 = vmatpush.bf16.msra.mxu0 0
      %2060 = vmatpush.bf16.msra.mxu0 %v2027
      %2061 = vmatmul.bf16.gmra.mxu0 %v2024
      %v2062 = vpop.f32.mrf.mxu0
      %v2063 = vadd.f32 0.0, %v2062
      %v2064 = vpop.f32.mrf.mxu0
      %2065 = vdwg.mxu0
      %2066 = vmatpush.bf16.msra.mxu0 0
      %2067 = vmatpush.bf16.msra.mxu0 0
      %2068 = vmatpush.bf16.msra.mxu0 0
      %2069 = vmatpush.bf16.msra.mxu0 0
      %2070 = vmatpush.bf16.msra.mxu0 0
      %2071 = vmatpush.bf16.msra.mxu0 0
      %2072 = vmatpush.bf16.msra.mxu0 0
      %2073 = vmatpush.bf16.msra.mxu0 %v2030
      %2074 = vmatmul.bf16.gmra.mxu0 %v2024
      %v2075 = vpop.f32.mrf.mxu0
      %v2076 = vadd.f32 0.0, %v2075
      %v2077 = vpop.f32.mrf.mxu0
      %2078 = vdwg.mxu0
      %2079 = vmatpush.bf16.msra.mxu0 0
      %2080 = vmatpush.bf16.msra.mxu0 0
      %2081 = vmatpush.bf16.msra.mxu0 0
      %2082 = vmatpush.bf16.msra.mxu0 0
      %2083 = vmatpush.bf16.msra.mxu0 0
      %2084 = vmatpush.bf16.msra.mxu0 0
      %2085 = vmatpush.bf16.msra.mxu0 0
      %2086 = vmatpush.bf16.msra.mxu0 %v2033
      %2087 = vmatmul.bf16.gmra.mxu0 %v2024
      %v2088 = vpop.f32.mrf.mxu0
      %v2089 = vadd.f32 0.0, %v2088
      %v2090 = vpop.f32.mrf.mxu0
      %2091 = vdwg.mxu0
      %2092 = vmatpush.bf16.msra.mxu0 0
      %2093 = vmatpush.bf16.msra.mxu0 0
      %2094 = vmatpush.bf16.msra.mxu0 0
      %2095 = vmatpush.bf16.msra.mxu0 0
      %2096 = vmatpush.bf16.msra.mxu0 0
      %2097 = vmatpush.bf16.msra.mxu0 0
      %2098 = vmatpush.bf16.msra.mxu0 0
      %2099 = vmatpush.bf16.msra.mxu0 %v2036
      %2100 = vmatmul.bf16.gmra.mxu0 %v2024
      %v2101 = vpop.f32.mrf.mxu0
      %v2102 = vadd.f32 0.0, %v2101
      %v2103 = vpop.f32.mrf.mxu0
      %2104 = vdwg.mxu0
      %2105 = vmatpush.bf16.msra.mxu0 0
      %2106 = vmatpush.bf16.msra.mxu0 0
      %2107 = vmatpush.bf16.msra.mxu0 0
      %2108 = vmatpush.bf16.msra.mxu0 0
      %2109 = vmatpush.bf16.msra.mxu0 0
      %2110 = vmatpush.bf16.msra.mxu0 0
      %2111 = vmatpush.bf16.msra.mxu0 0
      %2112 = vmatpush.bf16.msra.mxu0 %v2039
      %2113 = vmatmul.bf16.gmra.mxu0 %v2024
      %v2114 = vpop.f32.mrf.mxu0
      %v2115 = vadd.f32 0.0, %v2114
      %v2116 = vpop.f32.mrf.mxu0
      %2117 = vdwg.mxu0
      %2118 = vmatpush.bf16.msra.mxu0 0
      %2119 = vmatpush.bf16.msra.mxu0 0
      %2120 = vmatpush.bf16.msra.mxu0 0
      %2121 = vmatpush.bf16.msra.mxu0 0
      %2122 = vmatpush.bf16.msra.mxu0 0
      %2123 = vmatpush.bf16.msra.mxu0 0
      %2124 = vmatpush.bf16.msra.mxu0 0
      %2125 = vmatpush.bf16.msra.mxu0 %v2042
      %2126 = vmatmul.bf16.gmra.mxu0 %v2024
      %v2127 = vpop.f32.mrf.mxu0
      %v2128 = vadd.f32 0.0, %v2127
      %v2129 = vpop.f32.mrf.mxu0
      %2130 = vdwg.mxu0
      %2131 = vmatpush.bf16.msra.mxu0 0
      %2132 = vmatpush.bf16.msra.mxu0 0
      %2133 = vmatpush.bf16.msra.mxu0 0
      %2134 = vmatpush.bf16.msra.mxu0 0
      %2135 = vmatpush.bf16.msra.mxu0 0
      %2136 = vmatpush.bf16.msra.mxu0 0
      %2137 = vmatpush.bf16.msra.mxu0 0
      %2138 = vmatpush.bf16.msra.mxu0 %v2045
      %2139 = vmatmul.bf16.gmra.mxu0 %v2024
      %v2140 = vpop.f32.mrf.mxu0
      %v2141 = vadd.f32 0.0, %v2140
      %v2142 = vpop.f32.mrf.mxu0
      %2143 = vdwg.mxu0
      %2144 = vmatpush.bf16.msra.mxu0 0
      %2145 = vmatpush.bf16.msra.mxu0 0
      %2146 = vmatpush.bf16.msra.mxu0 0
      %2147 = vmatpush.bf16.msra.mxu0 0
      %2148 = vmatpush.bf16.msra.mxu0 0
      %2149 = vmatpush.bf16.msra.mxu0 0
      %2150 = vmatpush.bf16.msra.mxu0 0
      %2151 = vmatpush.bf16.msra.mxu0 %v2048
      %2152 = vmatmul.bf16.gmra.mxu0 %v2024
      %v2153 = vpop.f32.mrf.mxu0
      %v2154 = vadd.f32 0.0, %v2153
      %v2155 = vpop.f32.mrf.mxu0
      %2156 = vdwg.mxu0
      %2157 = vmatpush.bf16.msra.mxu0 0
      %2158 = vmatpush.bf16.msra.mxu0 0
      %2159 = vmatpush.bf16.msra.mxu0 0
      %2160 = vmatpush.bf16.msra.mxu0 0
      %2161 = vmatpush.bf16.msra.mxu0 0
      %2162 = vmatpush.bf16.msra.mxu0 0
      %2163 = vmatpush.bf16.msra.mxu0 0
      %2164 = vmatpush.bf16.msra.mxu0 %v2051
      %2165 = vmatmul.bf16.gmra.mxu0 %v2024
      %v2166 = vpop.f32.mrf.mxu0
      %v2167 = vadd.f32 0.0, %v2166
      %v2168 = vpop.f32.mrf.mxu0
      %2169 = vdwg.mxu0
      %v2170 = vadd.f32 %v1884, %v2063
      %v2171 = vadd.f32 %v1897, %v2076
      %v2172 = vadd.f32 %v1910, %v2089
      %v2173 = vadd.f32 %v1923, %v2102
      %v2174 = vadd.f32 %v1936, %v2115
      %v2175 = vadd.f32 %v1949, %v2128
      %v2176 = vadd.f32 %v1962, %v2141
      %v2177 = vadd.f32 %v1975, %v2154
      %v2178 = vadd.f32 %v1988, %v2167
      %s2179 = scalar_lea.vmem %s3, 12
      %v2180 = vld [vmem:[%s2179] sm:$0xf]
      %2181 = vrot.lane.b32.xlu0 %v1649, 94
      %v2182 = vpop.permute.xlu0 %2181
      %2183 = vrot.lane.b32.xlu0 %v1650, 94
      %v2184 = vpop.permute.xlu0 %2183
      %2185 = vrot.lane.b32.xlu0 %v1651, 94
      %v2186 = vpop.permute.xlu0 %2185
      %2187 = vrot.lane.b32.xlu0 %v1652, 94
      %v2188 = vpop.permute.xlu0 %2187
      %2189 = vrot.lane.b32.xlu0 %v1653, 94
      %v2190 = vpop.permute.xlu0 %2189
      %2191 = vrot.lane.b32.xlu0 %v1654, 94
      %v2192 = vpop.permute.xlu0 %2191
      %2193 = vrot.lane.b32.xlu0 %v1655, 94
      %v2194 = vpop.permute.xlu0 %2193
      %2195 = vrot.lane.b32.xlu0 %v1656, 94
      %v2196 = vpop.permute.xlu0 %2195
      %2197 = vrot.lane.b32.xlu0 %v1657, 94
      %v2198 = vpop.permute.xlu0 %2197
      %2199 = vrot.lane.b32.xlu0 %v1661, 94
      %v2200 = vpop.permute.xlu0 %2199
      %vm2201 = vcmask 769024
      %v2202 = vsel %vm2201, %v2182, %v2184
      %v2203 = vsel %vm2201, %v2184, %v2186
      %v2204 = vsel %vm2201, %v2186, %v2188
      %v2205 = vsel %vm2201, %v2188, %v2190
      %v2206 = vsel %vm2201, %v2190, %v2192
      %v2207 = vsel %vm2201, %v2192, %v2194
      %v2208 = vsel %vm2201, %v2194, %v2196
      %v2209 = vsel %vm2201, %v2196, %v2198
      %v2210 = vsel %vm2201, %v2198, %v2200
      %v2212 = vsel %vm1496, %v2180, 0
      %v2215 = vsel %vm1699, %v2202, 0
      %v2218 = vsel %vm1699, %v2203, 0
      %v2221 = vsel %vm1699, %v2204, 0
      %v2224 = vsel %vm1699, %v2205, 0
      %v2227 = vsel %vm1699, %v2206, 0
      %v2230 = vsel %vm1699, %v2207, 0
      %v2233 = vsel %vm1699, %v2208, 0
      %v2236 = vsel %vm1699, %v2209, 0
      %v2239 = vsel %vm1699, %v2210, 0
      %2241 = vmatpush.bf16.msra.mxu0 0
      %2242 = vmatpush.bf16.msra.mxu0 0
      %2243 = vmatpush.bf16.msra.mxu0 0
      %2244 = vmatpush.bf16.msra.mxu0 0
      %2245 = vmatpush.bf16.msra.mxu0 0
      %2246 = vmatpush.bf16.msra.mxu0 0
      %2247 = vmatpush.bf16.msra.mxu0 0
      %2248 = vmatpush.bf16.msra.mxu0 %v2215
      %2249 = vmatmul.bf16.gmra.mxu0 %v2212
      %v2250 = vpop.f32.mrf.mxu0
      %v2251 = vadd.f32 0.0, %v2250
      %v2252 = vpop.f32.mrf.mxu0
      %2253 = vdwg.mxu0
      %2254 = vmatpush.bf16.msra.mxu0 0
      %2255 = vmatpush.bf16.msra.mxu0 0
      %2256 = vmatpush.bf16.msra.mxu0 0
      %2257 = vmatpush.bf16.msra.mxu0 0
      %2258 = vmatpush.bf16.msra.mxu0 0
      %2259 = vmatpush.bf16.msra.mxu0 0
      %2260 = vmatpush.bf16.msra.mxu0 0
      %2261 = vmatpush.bf16.msra.mxu0 %v2218
      %2262 = vmatmul.bf16.gmra.mxu0 %v2212
      %v2263 = vpop.f32.mrf.mxu0
      %v2264 = vadd.f32 0.0, %v2263
      %v2265 = vpop.f32.mrf.mxu0
      %2266 = vdwg.mxu0
      %2267 = vmatpush.bf16.msra.mxu0 0
      %2268 = vmatpush.bf16.msra.mxu0 0
      %2269 = vmatpush.bf16.msra.mxu0 0
      %2270 = vmatpush.bf16.msra.mxu0 0
      %2271 = vmatpush.bf16.msra.mxu0 0
      %2272 = vmatpush.bf16.msra.mxu0 0
      %2273 = vmatpush.bf16.msra.mxu0 0
      %2274 = vmatpush.bf16.msra.mxu0 %v2221
      %2275 = vmatmul.bf16.gmra.mxu0 %v2212
      %v2276 = vpop.f32.mrf.mxu0
      %v2277 = vadd.f32 0.0, %v2276
      %v2278 = vpop.f32.mrf.mxu0
      %2279 = vdwg.mxu0
      %2280 = vmatpush.bf16.msra.mxu0 0
      %2281 = vmatpush.bf16.msra.mxu0 0
      %2282 = vmatpush.bf16.msra.mxu0 0
      %2283 = vmatpush.bf16.msra.mxu0 0
      %2284 = vmatpush.bf16.msra.mxu0 0
      %2285 = vmatpush.bf16.msra.mxu0 0
      %2286 = vmatpush.bf16.msra.mxu0 0
      %2287 = vmatpush.bf16.msra.mxu0 %v2224
      %2288 = vmatmul.bf16.gmra.mxu0 %v2212
      %v2289 = vpop.f32.mrf.mxu0
      %v2290 = vadd.f32 0.0, %v2289
      %v2291 = vpop.f32.mrf.mxu0
      %2292 = vdwg.mxu0
      %2293 = vmatpush.bf16.msra.mxu0 0
      %2294 = vmatpush.bf16.msra.mxu0 0
      %2295 = vmatpush.bf16.msra.mxu0 0
      %2296 = vmatpush.bf16.msra.mxu0 0
      %2297 = vmatpush.bf16.msra.mxu0 0
      %2298 = vmatpush.bf16.msra.mxu0 0
      %2299 = vmatpush.bf16.msra.mxu0 0
      %2300 = vmatpush.bf16.msra.mxu0 %v2227
      %2301 = vmatmul.bf16.gmra.mxu0 %v2212
      %v2302 = vpop.f32.mrf.mxu0
      %v2303 = vadd.f32 0.0, %v2302
      %v2304 = vpop.f32.mrf.mxu0
      %2305 = vdwg.mxu0
      %2306 = vmatpush.bf16.msra.mxu0 0
      %2307 = vmatpush.bf16.msra.mxu0 0
      %2308 = vmatpush.bf16.msra.mxu0 0
      %2309 = vmatpush.bf16.msra.mxu0 0
      %2310 = vmatpush.bf16.msra.mxu0 0
      %2311 = vmatpush.bf16.msra.mxu0 0
      %2312 = vmatpush.bf16.msra.mxu0 0
      %2313 = vmatpush.bf16.msra.mxu0 %v2230
      %2314 = vmatmul.bf16.gmra.mxu0 %v2212
      %v2315 = vpop.f32.mrf.mxu0
      %v2316 = vadd.f32 0.0, %v2315
      %v2317 = vpop.f32.mrf.mxu0
      %2318 = vdwg.mxu0
      %2319 = vmatpush.bf16.msra.mxu0 0
      %2320 = vmatpush.bf16.msra.mxu0 0
      %2321 = vmatpush.bf16.msra.mxu0 0
      %2322 = vmatpush.bf16.msra.mxu0 0
      %2323 = vmatpush.bf16.msra.mxu0 0
      %2324 = vmatpush.bf16.msra.mxu0 0
      %2325 = vmatpush.bf16.msra.mxu0 0
      %2326 = vmatpush.bf16.msra.mxu0 %v2233
      %2327 = vmatmul.bf16.gmra.mxu0 %v2212
      %v2328 = vpop.f32.mrf.mxu0
      %v2329 = vadd.f32 0.0, %v2328
      %v2330 = vpop.f32.mrf.mxu0
      %2331 = vdwg.mxu0
      %2332 = vmatpush.bf16.msra.mxu0 0
      %2333 = vmatpush.bf16.msra.mxu0 0
      %2334 = vmatpush.bf16.msra.mxu0 0
      %2335 = vmatpush.bf16.msra.mxu0 0
      %2336 = vmatpush.bf16.msra.mxu0 0
      %2337 = vmatpush.bf16.msra.mxu0 0
      %2338 = vmatpush.bf16.msra.mxu0 0
      %2339 = vmatpush.bf16.msra.mxu0 %v2236
      %2340 = vmatmul.bf16.gmra.mxu0 %v2212
      %v2341 = vpop.f32.mrf.mxu0
      %v2342 = vadd.f32 0.0, %v2341
      %v2343 = vpop.f32.mrf.mxu0
      %2344 = vdwg.mxu0
      %2345 = vmatpush.bf16.msra.mxu0 0
      %2346 = vmatpush.bf16.msra.mxu0 0
      %2347 = vmatpush.bf16.msra.mxu0 0
      %2348 = vmatpush.bf16.msra.mxu0 0
      %2349 = vmatpush.bf16.msra.mxu0 0
      %2350 = vmatpush.bf16.msra.mxu0 0
      %2351 = vmatpush.bf16.msra.mxu0 0
      %2352 = vmatpush.bf16.msra.mxu0 %v2239
      %2353 = vmatmul.bf16.gmra.mxu0 %v2212
      %v2354 = vpop.f32.mrf.mxu0
      %v2355 = vadd.f32 0.0, %v2354
      %v2356 = vpop.f32.mrf.mxu0
      %2357 = vdwg.mxu0
      %v2358 = vadd.f32 %v2170, %v2251
      %v2359 = vadd.f32 %v2171, %v2264
      %v2360 = vadd.f32 %v2172, %v2277
      %v2361 = vadd.f32 %v2173, %v2290
      %v2362 = vadd.f32 %v2174, %v2303
      %v2363 = vadd.f32 %v2175, %v2316
      %v2364 = vadd.f32 %v2176, %v2329
      %v2365 = vadd.f32 %v2177, %v2342
      %v2366 = vadd.f32 %v2178, %v2355
      %s2367 = scalar_lea.vmem %s3, 16
      %v2368 = vld [vmem:[%s2367] sm:$0xf]
      %2369 = vrot.lane.b32.xlu0 %v1649, 93
      %v2370 = vpop.permute.xlu0 %2369
      %2371 = vrot.lane.b32.xlu0 %v1650, 93
      %v2372 = vpop.permute.xlu0 %2371
      %2373 = vrot.lane.b32.xlu0 %v1651, 93
      %v2374 = vpop.permute.xlu0 %2373
      %2375 = vrot.lane.b32.xlu0 %v1652, 93
      %v2376 = vpop.permute.xlu0 %2375
      %2377 = vrot.lane.b32.xlu0 %v1653, 93
      %v2378 = vpop.permute.xlu0 %2377
      %2379 = vrot.lane.b32.xlu0 %v1654, 93
      %v2380 = vpop.permute.xlu0 %2379
      %2381 = vrot.lane.b32.xlu0 %v1655, 93
      %v2382 = vpop.permute.xlu0 %2381
      %2383 = vrot.lane.b32.xlu0 %v1656, 93
      %v2384 = vpop.permute.xlu0 %2383
      %2385 = vrot.lane.b32.xlu0 %v1657, 93
      %v2386 = vpop.permute.xlu0 %2385
      %2387 = vrot.lane.b32.xlu0 %v1661, 93
      %v2388 = vpop.permute.xlu0 %2387
      %vm2389 = vcmask 760832
      %v2390 = vsel %vm2389, %v2370, %v2372
      %v2391 = vsel %vm2389, %v2372, %v2374
      %v2392 = vsel %vm2389, %v2374, %v2376
      %v2393 = vsel %vm2389, %v2376, %v2378
      %v2394 = vsel %vm2389, %v2378, %v2380
      %v2395 = vsel %vm2389, %v2380, %v2382
      %v2396 = vsel %vm2389, %v2382, %v2384
      %v2397 = vsel %vm2389, %v2384, %v2386
      %v2398 = vsel %vm2389, %v2386, %v2388
      %v2400 = vsel %vm1496, %v2368, 0
      %v2403 = vsel %vm1699, %v2390, 0
      %v2406 = vsel %vm1699, %v2391, 0
      %v2409 = vsel %vm1699, %v2392, 0
      %v2412 = vsel %vm1699, %v2393, 0
      %v2415 = vsel %vm1699, %v2394, 0
      %v2418 = vsel %vm1699, %v2395, 0
      %v2421 = vsel %vm1699, %v2396, 0
      %v2424 = vsel %vm1699, %v2397, 0
      %v2427 = vsel %vm1699, %v2398, 0
      %2429 = vmatpush.bf16.msra.mxu0 0
      %2430 = vmatpush.bf16.msra.mxu0 0
      %2431 = vmatpush.bf16.msra.mxu0 0
      %2432 = vmatpush.bf16.msra.mxu0 0
      %2433 = vmatpush.bf16.msra.mxu0 0
      %2434 = vmatpush.bf16.msra.mxu0 0
      %2435 = vmatpush.bf16.msra.mxu0 0
      %2436 = vmatpush.bf16.msra.mxu0 %v2403
      %2437 = vmatmul.bf16.gmra.mxu0 %v2400
      %v2438 = vpop.f32.mrf.mxu0
      %v2439 = vadd.f32 0.0, %v2438
      %v2440 = vpop.f32.mrf.mxu0
      %2441 = vdwg.mxu0
      %2442 = vmatpush.bf16.msra.mxu0 0
      %2443 = vmatpush.bf16.msra.mxu0 0
      %2444 = vmatpush.bf16.msra.mxu0 0
      %2445 = vmatpush.bf16.msra.mxu0 0
      %2446 = vmatpush.bf16.msra.mxu0 0
      %2447 = vmatpush.bf16.msra.mxu0 0
      %2448 = vmatpush.bf16.msra.mxu0 0
      %2449 = vmatpush.bf16.msra.mxu0 %v2406
      %2450 = vmatmul.bf16.gmra.mxu0 %v2400
      %v2451 = vpop.f32.mrf.mxu0
      %v2452 = vadd.f32 0.0, %v2451
      %v2453 = vpop.f32.mrf.mxu0
      %2454 = vdwg.mxu0
      %2455 = vmatpush.bf16.msra.mxu0 0
      %2456 = vmatpush.bf16.msra.mxu0 0
      %2457 = vmatpush.bf16.msra.mxu0 0
      %2458 = vmatpush.bf16.msra.mxu0 0
      %2459 = vmatpush.bf16.msra.mxu0 0
      %2460 = vmatpush.bf16.msra.mxu0 0
      %2461 = vmatpush.bf16.msra.mxu0 0
      %2462 = vmatpush.bf16.msra.mxu0 %v2409
      %2463 = vmatmul.bf16.gmra.mxu0 %v2400
      %v2464 = vpop.f32.mrf.mxu0
      %v2465 = vadd.f32 0.0, %v2464
      %v2466 = vpop.f32.mrf.mxu0
      %2467 = vdwg.mxu0
      %2468 = vmatpush.bf16.msra.mxu0 0
      %2469 = vmatpush.bf16.msra.mxu0 0
      %2470 = vmatpush.bf16.msra.mxu0 0
      %2471 = vmatpush.bf16.msra.mxu0 0
      %2472 = vmatpush.bf16.msra.mxu0 0
      %2473 = vmatpush.bf16.msra.mxu0 0
      %2474 = vmatpush.bf16.msra.mxu0 0
      %2475 = vmatpush.bf16.msra.mxu0 %v2412
      %2476 = vmatmul.bf16.gmra.mxu0 %v2400
      %v2477 = vpop.f32.mrf.mxu0
      %v2478 = vadd.f32 0.0, %v2477
      %v2479 = vpop.f32.mrf.mxu0
      %2480 = vdwg.mxu0
      %2481 = vmatpush.bf16.msra.mxu0 0
      %2482 = vmatpush.bf16.msra.mxu0 0
      %2483 = vmatpush.bf16.msra.mxu0 0
      %2484 = vmatpush.bf16.msra.mxu0 0
      %2485 = vmatpush.bf16.msra.mxu0 0
      %2486 = vmatpush.bf16.msra.mxu0 0
      %2487 = vmatpush.bf16.msra.mxu0 0
      %2488 = vmatpush.bf16.msra.mxu0 %v2415
      %2489 = vmatmul.bf16.gmra.mxu0 %v2400
      %v2490 = vpop.f32.mrf.mxu0
      %v2491 = vadd.f32 0.0, %v2490
      %v2492 = vpop.f32.mrf.mxu0
      %2493 = vdwg.mxu0
      %2494 = vmatpush.bf16.msra.mxu0 0
      %2495 = vmatpush.bf16.msra.mxu0 0
      %2496 = vmatpush.bf16.msra.mxu0 0
      %2497 = vmatpush.bf16.msra.mxu0 0
      %2498 = vmatpush.bf16.msra.mxu0 0
      %2499 = vmatpush.bf16.msra.mxu0 0
      %2500 = vmatpush.bf16.msra.mxu0 0
      %2501 = vmatpush.bf16.msra.mxu0 %v2418
      %2502 = vmatmul.bf16.gmra.mxu0 %v2400
      %v2503 = vpop.f32.mrf.mxu0
      %v2504 = vadd.f32 0.0, %v2503
      %v2505 = vpop.f32.mrf.mxu0
      %2506 = vdwg.mxu0
      %2507 = vmatpush.bf16.msra.mxu0 0
      %2508 = vmatpush.bf16.msra.mxu0 0
      %2509 = vmatpush.bf16.msra.mxu0 0
      %2510 = vmatpush.bf16.msra.mxu0 0
      %2511 = vmatpush.bf16.msra.mxu0 0
      %2512 = vmatpush.bf16.msra.mxu0 0
      %2513 = vmatpush.bf16.msra.mxu0 0
      %2514 = vmatpush.bf16.msra.mxu0 %v2421
      %2515 = vmatmul.bf16.gmra.mxu0 %v2400
      %v2516 = vpop.f32.mrf.mxu0
      %v2517 = vadd.f32 0.0, %v2516
      %v2518 = vpop.f32.mrf.mxu0
      %2519 = vdwg.mxu0
      %2520 = vmatpush.bf16.msra.mxu0 0
      %2521 = vmatpush.bf16.msra.mxu0 0
      %2522 = vmatpush.bf16.msra.mxu0 0
      %2523 = vmatpush.bf16.msra.mxu0 0
      %2524 = vmatpush.bf16.msra.mxu0 0
      %2525 = vmatpush.bf16.msra.mxu0 0
      %2526 = vmatpush.bf16.msra.mxu0 0
      %2527 = vmatpush.bf16.msra.mxu0 %v2424
      %2528 = vmatmul.bf16.gmra.mxu0 %v2400
      %v2529 = vpop.f32.mrf.mxu0
      %v2530 = vadd.f32 0.0, %v2529
      %v2531 = vpop.f32.mrf.mxu0
      %2532 = vdwg.mxu0
      %2533 = vmatpush.bf16.msra.mxu0 0
      %2534 = vmatpush.bf16.msra.mxu0 0
      %2535 = vmatpush.bf16.msra.mxu0 0
      %2536 = vmatpush.bf16.msra.mxu0 0
      %2537 = vmatpush.bf16.msra.mxu0 0
      %2538 = vmatpush.bf16.msra.mxu0 0
      %2539 = vmatpush.bf16.msra.mxu0 0
      %2540 = vmatpush.bf16.msra.mxu0 %v2427
      %2541 = vmatmul.bf16.gmra.mxu0 %v2400
      %v2542 = vpop.f32.mrf.mxu0
      %v2543 = vadd.f32 0.0, %v2542
      %v2544 = vpop.f32.mrf.mxu0
      %2545 = vdwg.mxu0
      %v2546 = vadd.f32 %v2358, %v2439
      %v2547 = vadd.f32 %v2359, %v2452
      %v2548 = vadd.f32 %v2360, %v2465
      %v2549 = vadd.f32 %v2361, %v2478
      %v2550 = vadd.f32 %v2362, %v2491
      %v2551 = vadd.f32 %v2363, %v2504
      %v2552 = vadd.f32 %v2364, %v2517
      %v2553 = vadd.f32 %v2365, %v2530
      %v2554 = vadd.f32 %v2366, %v2543
      %s2555 = scalar_lea.vmem %s3, 20
      %v2556 = vld [vmem:[%s2555] sm:$0xf]
      %2557 = vrot.lane.b32.xlu0 %v1649, 92
      %v2558 = vpop.permute.xlu0 %2557
      %2559 = vrot.lane.b32.xlu0 %v1650, 92
      %v2560 = vpop.permute.xlu0 %2559
      %2561 = vrot.lane.b32.xlu0 %v1651, 92
      %v2562 = vpop.permute.xlu0 %2561
      %2563 = vrot.lane.b32.xlu0 %v1652, 92
      %v2564 = vpop.permute.xlu0 %2563
      %2565 = vrot.lane.b32.xlu0 %v1653, 92
      %v2566 = vpop.permute.xlu0 %2565
      %2567 = vrot.lane.b32.xlu0 %v1654, 92
      %v2568 = vpop.permute.xlu0 %2567
      %2569 = vrot.lane.b32.xlu0 %v1655, 92
      %v2570 = vpop.permute.xlu0 %2569
      %2571 = vrot.lane.b32.xlu0 %v1656, 92
      %v2572 = vpop.permute.xlu0 %2571
      %2573 = vrot.lane.b32.xlu0 %v1657, 92
      %v2574 = vpop.permute.xlu0 %2573
      %2575 = vrot.lane.b32.xlu0 %v1661, 92
      %v2576 = vpop.permute.xlu0 %2575
      %vm2577 = vcmask 752640
      %v2578 = vsel %vm2577, %v2558, %v2560
      %v2579 = vsel %vm2577, %v2560, %v2562
      %v2580 = vsel %vm2577, %v2562, %v2564
      %v2581 = vsel %vm2577, %v2564, %v2566
      %v2582 = vsel %vm2577, %v2566, %v2568
      %v2583 = vsel %vm2577, %v2568, %v2570
      %v2584 = vsel %vm2577, %v2570, %v2572
      %v2585 = vsel %vm2577, %v2572, %v2574
      %v2586 = vsel %vm2577, %v2574, %v2576
      %v2588 = vsel %vm1496, %v2556, 0
      %v2591 = vsel %vm1699, %v2578, 0
      %v2594 = vsel %vm1699, %v2579, 0
      %v2597 = vsel %vm1699, %v2580, 0
      %v2600 = vsel %vm1699, %v2581, 0
      %v2603 = vsel %vm1699, %v2582, 0
      %v2606 = vsel %vm1699, %v2583, 0
      %v2609 = vsel %vm1699, %v2584, 0
      %v2612 = vsel %vm1699, %v2585, 0
      %v2615 = vsel %vm1699, %v2586, 0
      %2617 = vmatpush.bf16.msra.mxu0 0
      %2618 = vmatpush.bf16.msra.mxu0 0
      %2619 = vmatpush.bf16.msra.mxu0 0
      %2620 = vmatpush.bf16.msra.mxu0 0
      %2621 = vmatpush.bf16.msra.mxu0 0
      %2622 = vmatpush.bf16.msra.mxu0 0
      %2623 = vmatpush.bf16.msra.mxu0 0
      %2624 = vmatpush.bf16.msra.mxu0 %v2591
      %2625 = vmatmul.bf16.gmra.mxu0 %v2588
      %v2626 = vpop.f32.mrf.mxu0
      %v2627 = vadd.f32 0.0, %v2626
      %v2628 = vpop.f32.mrf.mxu0
      %2629 = vdwg.mxu0
      %2630 = vmatpush.bf16.msra.mxu0 0
      %2631 = vmatpush.bf16.msra.mxu0 0
      %2632 = vmatpush.bf16.msra.mxu0 0
      %2633 = vmatpush.bf16.msra.mxu0 0
      %2634 = vmatpush.bf16.msra.mxu0 0
      %2635 = vmatpush.bf16.msra.mxu0 0
      %2636 = vmatpush.bf16.msra.mxu0 0
      %2637 = vmatpush.bf16.msra.mxu0 %v2594
      %2638 = vmatmul.bf16.gmra.mxu0 %v2588
      %v2639 = vpop.f32.mrf.mxu0
      %v2640 = vadd.f32 0.0, %v2639
      %v2641 = vpop.f32.mrf.mxu0
      %2642 = vdwg.mxu0
      %2643 = vmatpush.bf16.msra.mxu0 0
      %2644 = vmatpush.bf16.msra.mxu0 0
      %2645 = vmatpush.bf16.msra.mxu0 0
      %2646 = vmatpush.bf16.msra.mxu0 0
      %2647 = vmatpush.bf16.msra.mxu0 0
      %2648 = vmatpush.bf16.msra.mxu0 0
      %2649 = vmatpush.bf16.msra.mxu0 0
      %2650 = vmatpush.bf16.msra.mxu0 %v2597
      %2651 = vmatmul.bf16.gmra.mxu0 %v2588
      %v2652 = vpop.f32.mrf.mxu0
      %v2653 = vadd.f32 0.0, %v2652
      %v2654 = vpop.f32.mrf.mxu0
      %2655 = vdwg.mxu0
      %2656 = vmatpush.bf16.msra.mxu0 0
      %2657 = vmatpush.bf16.msra.mxu0 0
      %2658 = vmatpush.bf16.msra.mxu0 0
      %2659 = vmatpush.bf16.msra.mxu0 0
      %2660 = vmatpush.bf16.msra.mxu0 0
      %2661 = vmatpush.bf16.msra.mxu0 0
      %2662 = vmatpush.bf16.msra.mxu0 0
      %2663 = vmatpush.bf16.msra.mxu0 %v2600
      %2664 = vmatmul.bf16.gmra.mxu0 %v2588
      %v2665 = vpop.f32.mrf.mxu0
      %v2666 = vadd.f32 0.0, %v2665
      %v2667 = vpop.f32.mrf.mxu0
      %2668 = vdwg.mxu0
      %2669 = vmatpush.bf16.msra.mxu0 0
      %2670 = vmatpush.bf16.msra.mxu0 0
      %2671 = vmatpush.bf16.msra.mxu0 0
      %2672 = vmatpush.bf16.msra.mxu0 0
      %2673 = vmatpush.bf16.msra.mxu0 0
      %2674 = vmatpush.bf16.msra.mxu0 0
      %2675 = vmatpush.bf16.msra.mxu0 0
      %2676 = vmatpush.bf16.msra.mxu0 %v2603
      %2677 = vmatmul.bf16.gmra.mxu0 %v2588
      %v2678 = vpop.f32.mrf.mxu0
      %v2679 = vadd.f32 0.0, %v2678
      %v2680 = vpop.f32.mrf.mxu0
      %2681 = vdwg.mxu0
      %2682 = vmatpush.bf16.msra.mxu0 0
      %2683 = vmatpush.bf16.msra.mxu0 0
      %2684 = vmatpush.bf16.msra.mxu0 0
      %2685 = vmatpush.bf16.msra.mxu0 0
      %2686 = vmatpush.bf16.msra.mxu0 0
      %2687 = vmatpush.bf16.msra.mxu0 0
      %2688 = vmatpush.bf16.msra.mxu0 0
      %2689 = vmatpush.bf16.msra.mxu0 %v2606
      %2690 = vmatmul.bf16.gmra.mxu0 %v2588
      %v2691 = vpop.f32.mrf.mxu0
      %v2692 = vadd.f32 0.0, %v2691
      %v2693 = vpop.f32.mrf.mxu0
      %2694 = vdwg.mxu0
      %2695 = vmatpush.bf16.msra.mxu0 0
      %2696 = vmatpush.bf16.msra.mxu0 0
      %2697 = vmatpush.bf16.msra.mxu0 0
      %2698 = vmatpush.bf16.msra.mxu0 0
      %2699 = vmatpush.bf16.msra.mxu0 0
      %2700 = vmatpush.bf16.msra.mxu0 0
      %2701 = vmatpush.bf16.msra.mxu0 0
      %2702 = vmatpush.bf16.msra.mxu0 %v2609
      %2703 = vmatmul.bf16.gmra.mxu0 %v2588
      %v2704 = vpop.f32.mrf.mxu0
      %v2705 = vadd.f32 0.0, %v2704
      %v2706 = vpop.f32.mrf.mxu0
      %2707 = vdwg.mxu0
      %2708 = vmatpush.bf16.msra.mxu0 0
      %2709 = vmatpush.bf16.msra.mxu0 0
      %2710 = vmatpush.bf16.msra.mxu0 0
      %2711 = vmatpush.bf16.msra.mxu0 0
      %2712 = vmatpush.bf16.msra.mxu0 0
      %2713 = vmatpush.bf16.msra.mxu0 0
      %2714 = vmatpush.bf16.msra.mxu0 0
      %2715 = vmatpush.bf16.msra.mxu0 %v2612
      %2716 = vmatmul.bf16.gmra.mxu0 %v2588
      %v2717 = vpop.f32.mrf.mxu0
      %v2718 = vadd.f32 0.0, %v2717
      %v2719 = vpop.f32.mrf.mxu0
      %2720 = vdwg.mxu0
      %2721 = vmatpush.bf16.msra.mxu0 0
      %2722 = vmatpush.bf16.msra.mxu0 0
      %2723 = vmatpush.bf16.msra.mxu0 0
      %2724 = vmatpush.bf16.msra.mxu0 0
      %2725 = vmatpush.bf16.msra.mxu0 0
      %2726 = vmatpush.bf16.msra.mxu0 0
      %2727 = vmatpush.bf16.msra.mxu0 0
      %2728 = vmatpush.bf16.msra.mxu0 %v2615
      %2729 = vmatmul.bf16.gmra.mxu0 %v2588
      %v2730 = vpop.f32.mrf.mxu0
      %v2731 = vadd.f32 0.0, %v2730
      %v2732 = vpop.f32.mrf.mxu0
      %2733 = vdwg.mxu0
      %v2734 = vadd.f32 %v2546, %v2627
      %v2735 = vadd.f32 %v2547, %v2640
      %v2736 = vadd.f32 %v2548, %v2653
      %v2737 = vadd.f32 %v2549, %v2666
      %v2738 = vadd.f32 %v2550, %v2679
      %v2739 = vadd.f32 %v2551, %v2692
      %v2740 = vadd.f32 %v2552, %v2705
      %v2741 = vadd.f32 %v2553, %v2718
      %v2742 = vadd.f32 %v2554, %v2731
      %s2743 = scalar_lea.vmem %s3, 24
      %v2744 = vld [vmem:[%s2743] sm:$0xf]
      %2745 = vrot.lane.b32.xlu0 %v1649, 60
      %v2746 = vpop.permute.xlu0 %2745
      %2747 = vrot.lane.b32.xlu0 %v1650, 60
      %v2748 = vpop.permute.xlu0 %2747
      %2749 = vrot.lane.b32.xlu0 %v1651, 60
      %v2750 = vpop.permute.xlu0 %2749
      %2751 = vrot.lane.b32.xlu0 %v1652, 60
      %v2752 = vpop.permute.xlu0 %2751
      %2753 = vrot.lane.b32.xlu0 %v1653, 60
      %v2754 = vpop.permute.xlu0 %2753
      %2755 = vrot.lane.b32.xlu0 %v1654, 60
      %v2756 = vpop.permute.xlu0 %2755
      %2757 = vrot.lane.b32.xlu0 %v1655, 60
      %v2758 = vpop.permute.xlu0 %2757
      %2759 = vrot.lane.b32.xlu0 %v1656, 60
      %v2760 = vpop.permute.xlu0 %2759
      %2761 = vrot.lane.b32.xlu0 %v1657, 60
      %v2762 = vpop.permute.xlu0 %2761
      %2763 = vrot.lane.b32.xlu0 %v1661, 60
      %v2764 = vpop.permute.xlu0 %2763
      %vm2765 = vcmask 490496
      %v2766 = vsel %vm2765, %v2746, %v2748
      %v2767 = vsel %vm2765, %v2748, %v2750
      %v2768 = vsel %vm2765, %v2750, %v2752
      %v2769 = vsel %vm2765, %v2752, %v2754
      %v2770 = vsel %vm2765, %v2754, %v2756
      %v2771 = vsel %vm2765, %v2756, %v2758
      %v2772 = vsel %vm2765, %v2758, %v2760
      %v2773 = vsel %vm2765, %v2760, %v2762
      %v2774 = vsel %vm2765, %v2762, %v2764
      %v2776 = vsel %vm1496, %v2744, 0
      %v2779 = vsel %vm1699, %v2766, 0
      %v2782 = vsel %vm1699, %v2767, 0
      %v2785 = vsel %vm1699, %v2768, 0
      %v2788 = vsel %vm1699, %v2769, 0
      %v2791 = vsel %vm1699, %v2770, 0
      %v2794 = vsel %vm1699, %v2771, 0
      %v2797 = vsel %vm1699, %v2772, 0
      %v2800 = vsel %vm1699, %v2773, 0
      %v2803 = vsel %vm1699, %v2774, 0
      %2805 = vmatpush.bf16.msra.mxu0 0
      %2806 = vmatpush.bf16.msra.mxu0 0
      %2807 = vmatpush.bf16.msra.mxu0 0
      %2808 = vmatpush.bf16.msra.mxu0 0
      %2809 = vmatpush.bf16.msra.mxu0 0
      %2810 = vmatpush.bf16.msra.mxu0 0
      %2811 = vmatpush.bf16.msra.mxu0 0
      %2812 = vmatpush.bf16.msra.mxu0 %v2779
      %2813 = vmatmul.bf16.gmra.mxu0 %v2776
      %v2814 = vpop.f32.mrf.mxu0
      %v2815 = vadd.f32 0.0, %v2814
      %v2816 = vpop.f32.mrf.mxu0
      %2817 = vdwg.mxu0
      %2818 = vmatpush.bf16.msra.mxu0 0
      %2819 = vmatpush.bf16.msra.mxu0 0
      %2820 = vmatpush.bf16.msra.mxu0 0
      %2821 = vmatpush.bf16.msra.mxu0 0
      %2822 = vmatpush.bf16.msra.mxu0 0
      %2823 = vmatpush.bf16.msra.mxu0 0
      %2824 = vmatpush.bf16.msra.mxu0 0
      %2825 = vmatpush.bf16.msra.mxu0 %v2782
      %2826 = vmatmul.bf16.gmra.mxu0 %v2776
      %v2827 = vpop.f32.mrf.mxu0
      %v2828 = vadd.f32 0.0, %v2827
      %v2829 = vpop.f32.mrf.mxu0
      %2830 = vdwg.mxu0
      %2831 = vmatpush.bf16.msra.mxu0 0
      %2832 = vmatpush.bf16.msra.mxu0 0
      %2833 = vmatpush.bf16.msra.mxu0 0
      %2834 = vmatpush.bf16.msra.mxu0 0
      %2835 = vmatpush.bf16.msra.mxu0 0
      %2836 = vmatpush.bf16.msra.mxu0 0
      %2837 = vmatpush.bf16.msra.mxu0 0
      %2838 = vmatpush.bf16.msra.mxu0 %v2785
      %2839 = vmatmul.bf16.gmra.mxu0 %v2776
      %v2840 = vpop.f32.mrf.mxu0
      %v2841 = vadd.f32 0.0, %v2840
      %v2842 = vpop.f32.mrf.mxu0
      %2843 = vdwg.mxu0
      %2844 = vmatpush.bf16.msra.mxu0 0
      %2845 = vmatpush.bf16.msra.mxu0 0
      %2846 = vmatpush.bf16.msra.mxu0 0
      %2847 = vmatpush.bf16.msra.mxu0 0
      %2848 = vmatpush.bf16.msra.mxu0 0
      %2849 = vmatpush.bf16.msra.mxu0 0
      %2850 = vmatpush.bf16.msra.mxu0 0
      %2851 = vmatpush.bf16.msra.mxu0 %v2788
      %2852 = vmatmul.bf16.gmra.mxu0 %v2776
      %v2853 = vpop.f32.mrf.mxu0
      %v2854 = vadd.f32 0.0, %v2853
      %v2855 = vpop.f32.mrf.mxu0
      %2856 = vdwg.mxu0
      %2857 = vmatpush.bf16.msra.mxu0 0
      %2858 = vmatpush.bf16.msra.mxu0 0
      %2859 = vmatpush.bf16.msra.mxu0 0
      %2860 = vmatpush.bf16.msra.mxu0 0
      %2861 = vmatpush.bf16.msra.mxu0 0
      %2862 = vmatpush.bf16.msra.mxu0 0
      %2863 = vmatpush.bf16.msra.mxu0 0
      %2864 = vmatpush.bf16.msra.mxu0 %v2791
      %2865 = vmatmul.bf16.gmra.mxu0 %v2776
      %v2866 = vpop.f32.mrf.mxu0
      %v2867 = vadd.f32 0.0, %v2866
      %v2868 = vpop.f32.mrf.mxu0
      %2869 = vdwg.mxu0
      %2870 = vmatpush.bf16.msra.mxu0 0
      %2871 = vmatpush.bf16.msra.mxu0 0
      %2872 = vmatpush.bf16.msra.mxu0 0
      %2873 = vmatpush.bf16.msra.mxu0 0
      %2874 = vmatpush.bf16.msra.mxu0 0
      %2875 = vmatpush.bf16.msra.mxu0 0
      %2876 = vmatpush.bf16.msra.mxu0 0
      %2877 = vmatpush.bf16.msra.mxu0 %v2794
      %2878 = vmatmul.bf16.gmra.mxu0 %v2776
      %v2879 = vpop.f32.mrf.mxu0
      %v2880 = vadd.f32 0.0, %v2879
      %v2881 = vpop.f32.mrf.mxu0
      %2882 = vdwg.mxu0
      %2883 = vmatpush.bf16.msra.mxu0 0
      %2884 = vmatpush.bf16.msra.mxu0 0
      %2885 = vmatpush.bf16.msra.mxu0 0
      %2886 = vmatpush.bf16.msra.mxu0 0
      %2887 = vmatpush.bf16.msra.mxu0 0
      %2888 = vmatpush.bf16.msra.mxu0 0
      %2889 = vmatpush.bf16.msra.mxu0 0
      %2890 = vmatpush.bf16.msra.mxu0 %v2797
      %2891 = vmatmul.bf16.gmra.mxu0 %v2776
      %v2892 = vpop.f32.mrf.mxu0
      %v2893 = vadd.f32 0.0, %v2892
      %v2894 = vpop.f32.mrf.mxu0
      %2895 = vdwg.mxu0
      %2896 = vmatpush.bf16.msra.mxu0 0
      %2897 = vmatpush.bf16.msra.mxu0 0
      %2898 = vmatpush.bf16.msra.mxu0 0
      %2899 = vmatpush.bf16.msra.mxu0 0
      %2900 = vmatpush.bf16.msra.mxu0 0
      %2901 = vmatpush.bf16.msra.mxu0 0
      %2902 = vmatpush.bf16.msra.mxu0 0
      %2903 = vmatpush.bf16.msra.mxu0 %v2800
      %2904 = vmatmul.bf16.gmra.mxu0 %v2776
      %v2905 = vpop.f32.mrf.mxu0
      %v2906 = vadd.f32 0.0, %v2905
      %v2907 = vpop.f32.mrf.mxu0
      %2908 = vdwg.mxu0
      %2909 = vmatpush.bf16.msra.mxu0 0
      %2910 = vmatpush.bf16.msra.mxu0 0
      %2911 = vmatpush.bf16.msra.mxu0 0
      %2912 = vmatpush.bf16.msra.mxu0 0
      %2913 = vmatpush.bf16.msra.mxu0 0
      %2914 = vmatpush.bf16.msra.mxu0 0
      %2915 = vmatpush.bf16.msra.mxu0 0
      %2916 = vmatpush.bf16.msra.mxu0 %v2803
      %2917 = vmatmul.bf16.gmra.mxu0 %v2776
      %v2918 = vpop.f32.mrf.mxu0
      %v2919 = vadd.f32 0.0, %v2918
      %v2920 = vpop.f32.mrf.mxu0
      %2921 = vdwg.mxu0
      %v2922 = vadd.f32 %v2734, %v2815
      %v2923 = vadd.f32 %v2735, %v2828
      %v2924 = vadd.f32 %v2736, %v2841
      %v2925 = vadd.f32 %v2737, %v2854
      %v2926 = vadd.f32 %v2738, %v2867
      %v2927 = vadd.f32 %v2739, %v2880
      %v2928 = vadd.f32 %v2740, %v2893
      %v2929 = vadd.f32 %v2741, %v2906
      %v2930 = vadd.f32 %v2742, %v2919
      %s2931 = scalar_lea.vmem %s3, 28
      %v2932 = vld [vmem:[%s2931] sm:$0xf]
      %2933 = vrot.lane.b32.xlu0 %v1649, 59
      %v2934 = vpop.permute.xlu0 %2933
      %2935 = vrot.lane.b32.xlu0 %v1650, 59
      %v2936 = vpop.permute.xlu0 %2935
      %2937 = vrot.lane.b32.xlu0 %v1651, 59
      %v2938 = vpop.permute.xlu0 %2937
      %2939 = vrot.lane.b32.xlu0 %v1652, 59
      %v2940 = vpop.permute.xlu0 %2939
      %2941 = vrot.lane.b32.xlu0 %v1653, 59
      %v2942 = vpop.permute.xlu0 %2941
      %2943 = vrot.lane.b32.xlu0 %v1654, 59
      %v2944 = vpop.permute.xlu0 %2943
      %2945 = vrot.lane.b32.xlu0 %v1655, 59
      %v2946 = vpop.permute.xlu0 %2945
      %2947 = vrot.lane.b32.xlu0 %v1656, 59
      %v2948 = vpop.permute.xlu0 %2947
      %2949 = vrot.lane.b32.xlu0 %v1657, 59
      %v2950 = vpop.permute.xlu0 %2949
      %2951 = vrot.lane.b32.xlu0 %v1661, 59
      %v2952 = vpop.permute.xlu0 %2951
      %vm2953 = vcmask 482304
      %v2954 = vsel %vm2953, %v2934, %v2936
      %v2955 = vsel %vm2953, %v2936, %v2938
      %v2956 = vsel %vm2953, %v2938, %v2940
      %v2957 = vsel %vm2953, %v2940, %v2942
      %v2958 = vsel %vm2953, %v2942, %v2944
      %v2959 = vsel %vm2953, %v2944, %v2946
      %v2960 = vsel %vm2953, %v2946, %v2948
      %v2961 = vsel %vm2953, %v2948, %v2950
      %v2962 = vsel %vm2953, %v2950, %v2952
      %v2964 = vsel %vm1496, %v2932, 0
      %v2967 = vsel %vm1699, %v2954, 0
      %v2970 = vsel %vm1699, %v2955, 0
      %v2973 = vsel %vm1699, %v2956, 0
      %v2976 = vsel %vm1699, %v2957, 0
      %v2979 = vsel %vm1699, %v2958, 0
      %v2982 = vsel %vm1699, %v2959, 0
      %v2985 = vsel %vm1699, %v2960, 0
      %v2988 = vsel %vm1699, %v2961, 0
      %v2991 = vsel %vm1699, %v2962, 0
      %2993 = vmatpush.bf16.msra.mxu0 0
      %2994 = vmatpush.bf16.msra.mxu0 0
      %2995 = vmatpush.bf16.msra.mxu0 0
      %2996 = vmatpush.bf16.msra.mxu0 0
      %2997 = vmatpush.bf16.msra.mxu0 0
      %2998 = vmatpush.bf16.msra.mxu0 0
      %2999 = vmatpush.bf16.msra.mxu0 0
      %3000 = vmatpush.bf16.msra.mxu0 %v2967
      %3001 = vmatmul.bf16.gmra.mxu0 %v2964
      %v3002 = vpop.f32.mrf.mxu0
      %v3003 = vadd.f32 0.0, %v3002
      %v3004 = vpop.f32.mrf.mxu0
      %3005 = vdwg.mxu0
      %3006 = vmatpush.bf16.msra.mxu0 0
      %3007 = vmatpush.bf16.msra.mxu0 0
      %3008 = vmatpush.bf16.msra.mxu0 0
      %3009 = vmatpush.bf16.msra.mxu0 0
      %3010 = vmatpush.bf16.msra.mxu0 0
      %3011 = vmatpush.bf16.msra.mxu0 0
      %3012 = vmatpush.bf16.msra.mxu0 0
      %3013 = vmatpush.bf16.msra.mxu0 %v2970
      %3014 = vmatmul.bf16.gmra.mxu0 %v2964
      %v3015 = vpop.f32.mrf.mxu0
      %v3016 = vadd.f32 0.0, %v3015
      %v3017 = vpop.f32.mrf.mxu0
      %3018 = vdwg.mxu0
      %3019 = vmatpush.bf16.msra.mxu0 0
      %3020 = vmatpush.bf16.msra.mxu0 0
      %3021 = vmatpush.bf16.msra.mxu0 0
      %3022 = vmatpush.bf16.msra.mxu0 0
      %3023 = vmatpush.bf16.msra.mxu0 0
      %3024 = vmatpush.bf16.msra.mxu0 0
      %3025 = vmatpush.bf16.msra.mxu0 0
      %3026 = vmatpush.bf16.msra.mxu0 %v2973
      %3027 = vmatmul.bf16.gmra.mxu0 %v2964
      %v3028 = vpop.f32.mrf.mxu0
      %v3029 = vadd.f32 0.0, %v3028
      %v3030 = vpop.f32.mrf.mxu0
      %3031 = vdwg.mxu0
      %3032 = vmatpush.bf16.msra.mxu0 0
      %3033 = vmatpush.bf16.msra.mxu0 0
      %3034 = vmatpush.bf16.msra.mxu0 0
      %3035 = vmatpush.bf16.msra.mxu0 0
      %3036 = vmatpush.bf16.msra.mxu0 0
      %3037 = vmatpush.bf16.msra.mxu0 0
      %3038 = vmatpush.bf16.msra.mxu0 0
      %3039 = vmatpush.bf16.msra.mxu0 %v2976
      %3040 = vmatmul.bf16.gmra.mxu0 %v2964
      %v3041 = vpop.f32.mrf.mxu0
      %v3042 = vadd.f32 0.0, %v3041
      %v3043 = vpop.f32.mrf.mxu0
      %3044 = vdwg.mxu0
      %3045 = vmatpush.bf16.msra.mxu0 0
      %3046 = vmatpush.bf16.msra.mxu0 0
      %3047 = vmatpush.bf16.msra.mxu0 0
      %3048 = vmatpush.bf16.msra.mxu0 0
      %3049 = vmatpush.bf16.msra.mxu0 0
      %3050 = vmatpush.bf16.msra.mxu0 0
      %3051 = vmatpush.bf16.msra.mxu0 0
      %3052 = vmatpush.bf16.msra.mxu0 %v2979
      %3053 = vmatmul.bf16.gmra.mxu0 %v2964
      %v3054 = vpop.f32.mrf.mxu0
      %v3055 = vadd.f32 0.0, %v3054
      %v3056 = vpop.f32.mrf.mxu0
      %3057 = vdwg.mxu0
      %3058 = vmatpush.bf16.msra.mxu0 0
      %3059 = vmatpush.bf16.msra.mxu0 0
      %3060 = vmatpush.bf16.msra.mxu0 0
      %3061 = vmatpush.bf16.msra.mxu0 0
      %3062 = vmatpush.bf16.msra.mxu0 0
      %3063 = vmatpush.bf16.msra.mxu0 0
      %3064 = vmatpush.bf16.msra.mxu0 0
      %3065 = vmatpush.bf16.msra.mxu0 %v2982
      %3066 = vmatmul.bf16.gmra.mxu0 %v2964
      %v3067 = vpop.f32.mrf.mxu0
      %v3068 = vadd.f32 0.0, %v3067
      %v3069 = vpop.f32.mrf.mxu0
      %3070 = vdwg.mxu0
      %3071 = vmatpush.bf16.msra.mxu0 0
      %3072 = vmatpush.bf16.msra.mxu0 0
      %3073 = vmatpush.bf16.msra.mxu0 0
      %3074 = vmatpush.bf16.msra.mxu0 0
      %3075 = vmatpush.bf16.msra.mxu0 0
      %3076 = vmatpush.bf16.msra.mxu0 0
      %3077 = vmatpush.bf16.msra.mxu0 0
      %3078 = vmatpush.bf16.msra.mxu0 %v2985
      %3079 = vmatmul.bf16.gmra.mxu0 %v2964
      %v3080 = vpop.f32.mrf.mxu0
      %v3081 = vadd.f32 0.0, %v3080
      %v3082 = vpop.f32.mrf.mxu0
      %3083 = vdwg.mxu0
      %3084 = vmatpush.bf16.msra.mxu0 0
      %3085 = vmatpush.bf16.msra.mxu0 0
      %3086 = vmatpush.bf16.msra.mxu0 0
      %3087 = vmatpush.bf16.msra.mxu0 0
      %3088 = vmatpush.bf16.msra.mxu0 0
      %3089 = vmatpush.bf16.msra.mxu0 0
      %3090 = vmatpush.bf16.msra.mxu0 0
      %3091 = vmatpush.bf16.msra.mxu0 %v2988
      %3092 = vmatmul.bf16.gmra.mxu0 %v2964
      %v3093 = vpop.f32.mrf.mxu0
      %v3094 = vadd.f32 0.0, %v3093
      %v3095 = vpop.f32.mrf.mxu0
      %3096 = vdwg.mxu0
      %3097 = vmatpush.bf16.msra.mxu0 0
      %3098 = vmatpush.bf16.msra.mxu0 0
      %3099 = vmatpush.bf16.msra.mxu0 0
      %3100 = vmatpush.bf16.msra.mxu0 0
      %3101 = vmatpush.bf16.msra.mxu0 0
      %3102 = vmatpush.bf16.msra.mxu0 0
      %3103 = vmatpush.bf16.msra.mxu0 0
      %3104 = vmatpush.bf16.msra.mxu0 %v2991
      %3105 = vmatmul.bf16.gmra.mxu0 %v2964
      %v3106 = vpop.f32.mrf.mxu0
      %v3107 = vadd.f32 0.0, %v3106
      %v3108 = vpop.f32.mrf.mxu0
      %3109 = vdwg.mxu0
      %v3110 = vadd.f32 %v2922, %v3003
      %v3111 = vadd.f32 %v2923, %v3016
      %v3112 = vadd.f32 %v2924, %v3029
      %v3113 = vadd.f32 %v2925, %v3042
      %v3114 = vadd.f32 %v2926, %v3055
      %v3115 = vadd.f32 %v2927, %v3068
      %v3116 = vadd.f32 %v2928, %v3081
      %v3117 = vadd.f32 %v2929, %v3094
      %v3118 = vadd.f32 %v2930, %v3107
      %s3119 = scalar_lea.vmem %s3, 32
      %v3120 = vld [vmem:[%s3119] sm:$0xf]
      %3121 = vrot.lane.b32.xlu0 %v1649, 58
      %v3122 = vpop.permute.xlu0 %3121
      %3123 = vrot.lane.b32.xlu0 %v1650, 58
      %v3124 = vpop.permute.xlu0 %3123
      %3125 = vrot.lane.b32.xlu0 %v1651, 58
      %v3126 = vpop.permute.xlu0 %3125
      %3127 = vrot.lane.b32.xlu0 %v1652, 58
      %v3128 = vpop.permute.xlu0 %3127
      %3129 = vrot.lane.b32.xlu0 %v1653, 58
      %v3130 = vpop.permute.xlu0 %3129
      %3131 = vrot.lane.b32.xlu0 %v1654, 58
      %v3132 = vpop.permute.xlu0 %3131
      %3133 = vrot.lane.b32.xlu0 %v1655, 58
      %v3134 = vpop.permute.xlu0 %3133
      %3135 = vrot.lane.b32.xlu0 %v1656, 58
      %v3136 = vpop.permute.xlu0 %3135
      %3137 = vrot.lane.b32.xlu0 %v1657, 58
      %v3138 = vpop.permute.xlu0 %3137
      %3139 = vrot.lane.b32.xlu0 %v1661, 58
      %v3140 = vpop.permute.xlu0 %3139
      %vm3141 = vcmask 474112
      %v3142 = vsel %vm3141, %v3122, %v3124
      %v3143 = vsel %vm3141, %v3124, %v3126
      %v3144 = vsel %vm3141, %v3126, %v3128
      %v3145 = vsel %vm3141, %v3128, %v3130
      %v3146 = vsel %vm3141, %v3130, %v3132
      %v3147 = vsel %vm3141, %v3132, %v3134
      %v3148 = vsel %vm3141, %v3134, %v3136
      %v3149 = vsel %vm3141, %v3136, %v3138
      %v3150 = vsel %vm3141, %v3138, %v3140
      %v3152 = vsel %vm1496, %v3120, 0
      %v3155 = vsel %vm1699, %v3142, 0
      %v3158 = vsel %vm1699, %v3143, 0
      %v3161 = vsel %vm1699, %v3144, 0
      %v3164 = vsel %vm1699, %v3145, 0
      %v3167 = vsel %vm1699, %v3146, 0
      %v3170 = vsel %vm1699, %v3147, 0
      %v3173 = vsel %vm1699, %v3148, 0
      %v3176 = vsel %vm1699, %v3149, 0
      %v3179 = vsel %vm1699, %v3150, 0
      %3181 = vmatpush.bf16.msra.mxu0 0
      %3182 = vmatpush.bf16.msra.mxu0 0
      %3183 = vmatpush.bf16.msra.mxu0 0
      %3184 = vmatpush.bf16.msra.mxu0 0
      %3185 = vmatpush.bf16.msra.mxu0 0
      %3186 = vmatpush.bf16.msra.mxu0 0
      %3187 = vmatpush.bf16.msra.mxu0 0
      %3188 = vmatpush.bf16.msra.mxu0 %v3155
      %3189 = vmatmul.bf16.gmra.mxu0 %v3152
      %v3190 = vpop.f32.mrf.mxu0
      %v3191 = vadd.f32 0.0, %v3190
      %v3192 = vpop.f32.mrf.mxu0
      %3193 = vdwg.mxu0
      %3194 = vmatpush.bf16.msra.mxu0 0
      %3195 = vmatpush.bf16.msra.mxu0 0
      %3196 = vmatpush.bf16.msra.mxu0 0
      %3197 = vmatpush.bf16.msra.mxu0 0
      %3198 = vmatpush.bf16.msra.mxu0 0
      %3199 = vmatpush.bf16.msra.mxu0 0
      %3200 = vmatpush.bf16.msra.mxu0 0
      %3201 = vmatpush.bf16.msra.mxu0 %v3158
      %3202 = vmatmul.bf16.gmra.mxu0 %v3152
      %v3203 = vpop.f32.mrf.mxu0
      %v3204 = vadd.f32 0.0, %v3203
      %v3205 = vpop.f32.mrf.mxu0
      %3206 = vdwg.mxu0
      %3207 = vmatpush.bf16.msra.mxu0 0
      %3208 = vmatpush.bf16.msra.mxu0 0
      %3209 = vmatpush.bf16.msra.mxu0 0
      %3210 = vmatpush.bf16.msra.mxu0 0
      %3211 = vmatpush.bf16.msra.mxu0 0
      %3212 = vmatpush.bf16.msra.mxu0 0
      %3213 = vmatpush.bf16.msra.mxu0 0
      %3214 = vmatpush.bf16.msra.mxu0 %v3161
      %3215 = vmatmul.bf16.gmra.mxu0 %v3152
      %v3216 = vpop.f32.mrf.mxu0
      %v3217 = vadd.f32 0.0, %v3216
      %v3218 = vpop.f32.mrf.mxu0
      %3219 = vdwg.mxu0
      %3220 = vmatpush.bf16.msra.mxu0 0
      %3221 = vmatpush.bf16.msra.mxu0 0
      %3222 = vmatpush.bf16.msra.mxu0 0
      %3223 = vmatpush.bf16.msra.mxu0 0
      %3224 = vmatpush.bf16.msra.mxu0 0
      %3225 = vmatpush.bf16.msra.mxu0 0
      %3226 = vmatpush.bf16.msra.mxu0 0
      %3227 = vmatpush.bf16.msra.mxu0 %v3164
      %3228 = vmatmul.bf16.gmra.mxu0 %v3152
      %v3229 = vpop.f32.mrf.mxu0
      %v3230 = vadd.f32 0.0, %v3229
      %v3231 = vpop.f32.mrf.mxu0
      %3232 = vdwg.mxu0
      %3233 = vmatpush.bf16.msra.mxu0 0
      %3234 = vmatpush.bf16.msra.mxu0 0
      %3235 = vmatpush.bf16.msra.mxu0 0
      %3236 = vmatpush.bf16.msra.mxu0 0
      %3237 = vmatpush.bf16.msra.mxu0 0
      %3238 = vmatpush.bf16.msra.mxu0 0
      %3239 = vmatpush.bf16.msra.mxu0 0
      %3240 = vmatpush.bf16.msra.mxu0 %v3167
      %3241 = vmatmul.bf16.gmra.mxu0 %v3152
      %v3242 = vpop.f32.mrf.mxu0
      %v3243 = vadd.f32 0.0, %v3242
      %v3244 = vpop.f32.mrf.mxu0
      %3245 = vdwg.mxu0
      %3246 = vmatpush.bf16.msra.mxu0 0
      %3247 = vmatpush.bf16.msra.mxu0 0
      %3248 = vmatpush.bf16.msra.mxu0 0
      %3249 = vmatpush.bf16.msra.mxu0 0
      %3250 = vmatpush.bf16.msra.mxu0 0
      %3251 = vmatpush.bf16.msra.mxu0 0
      %3252 = vmatpush.bf16.msra.mxu0 0
      %3253 = vmatpush.bf16.msra.mxu0 %v3170
      %3254 = vmatmul.bf16.gmra.mxu0 %v3152
      %v3255 = vpop.f32.mrf.mxu0
      %v3256 = vadd.f32 0.0, %v3255
      %v3257 = vpop.f32.mrf.mxu0
      %3258 = vdwg.mxu0
      %3259 = vmatpush.bf16.msra.mxu0 0
      %3260 = vmatpush.bf16.msra.mxu0 0
      %3261 = vmatpush.bf16.msra.mxu0 0
      %3262 = vmatpush.bf16.msra.mxu0 0
      %3263 = vmatpush.bf16.msra.mxu0 0
      %3264 = vmatpush.bf16.msra.mxu0 0
      %3265 = vmatpush.bf16.msra.mxu0 0
      %3266 = vmatpush.bf16.msra.mxu0 %v3173
      %3267 = vmatmul.bf16.gmra.mxu0 %v3152
      %v3268 = vpop.f32.mrf.mxu0
      %v3269 = vadd.f32 0.0, %v3268
      %v3270 = vpop.f32.mrf.mxu0
      %3271 = vdwg.mxu0
      %3272 = vmatpush.bf16.msra.mxu0 0
      %3273 = vmatpush.bf16.msra.mxu0 0
      %3274 = vmatpush.bf16.msra.mxu0 0
      %3275 = vmatpush.bf16.msra.mxu0 0
      %3276 = vmatpush.bf16.msra.mxu0 0
      %3277 = vmatpush.bf16.msra.mxu0 0
      %3278 = vmatpush.bf16.msra.mxu0 0
      %3279 = vmatpush.bf16.msra.mxu0 %v3176
      %3280 = vmatmul.bf16.gmra.mxu0 %v3152
      %v3281 = vpop.f32.mrf.mxu0
      %v3282 = vadd.f32 0.0, %v3281
      %v3283 = vpop.f32.mrf.mxu0
      %3284 = vdwg.mxu0
      %3285 = vmatpush.bf16.msra.mxu0 0
      %3286 = vmatpush.bf16.msra.mxu0 0
      %3287 = vmatpush.bf16.msra.mxu0 0
      %3288 = vmatpush.bf16.msra.mxu0 0
      %3289 = vmatpush.bf16.msra.mxu0 0
      %3290 = vmatpush.bf16.msra.mxu0 0
      %3291 = vmatpush.bf16.msra.mxu0 0
      %3292 = vmatpush.bf16.msra.mxu0 %v3179
      %3293 = vmatmul.bf16.gmra.mxu0 %v3152
      %v3294 = vpop.f32.mrf.mxu0
      %v3295 = vadd.f32 0.0, %v3294
      %v3296 = vpop.f32.mrf.mxu0
      %3297 = vdwg.mxu0
      %v3298 = vadd.f32 %v3110, %v3191
      %v3299 = vadd.f32 %v3111, %v3204
      %v3300 = vadd.f32 %v3112, %v3217
      %v3301 = vadd.f32 %v3113, %v3230
      %v3302 = vadd.f32 %v3114, %v3243
      %v3303 = vadd.f32 %v3115, %v3256
      %v3304 = vadd.f32 %v3116, %v3269
      %v3305 = vadd.f32 %v3117, %v3282
      %v3306 = vadd.f32 %v3118, %v3295
      %3308 = vrot.lane.b32.xlu0 %v3298, 126
      %v3309 = vpop.permute.xlu0 %3308
      %3311 = vrot.lane.b32.xlu0 %v3298, 124
      %v3312 = vpop.permute.xlu0 %3311
      %3315 = vrot.lane.b32.xlu0 %v3298, 122
      %v3316 = vpop.permute.xlu0 %3315
      %3317 = vrot.lane.b32.xlu0 %v3299, 122
      %v3318 = vpop.permute.xlu0 %3317
      %vm3319 = vcmask 998400
      %v3320 = vsel %vm3319, %v3316, %v3318
      %3322 = vrot.lane.b32.xlu0 %v3299, 120
      %v3323 = vpop.permute.xlu0 %3322
      %3325 = vrot.lane.b32.xlu0 %v3299, 118
      %v3326 = vpop.permute.xlu0 %3325
      %3328 = vrot.lane.b32.xlu0 %v3299, 116
      %v3329 = vpop.permute.xlu0 %3328
      %3332 = vrot.lane.b32.xlu0 %v3299, 114
      %v3333 = vpop.permute.xlu0 %3332
      %3334 = vrot.lane.b32.xlu0 %v3300, 114
      %v3335 = vpop.permute.xlu0 %3334
      %vm3336 = vcmask 932864
      %v3337 = vsel %vm3336, %v3333, %v3335
      %3339 = vrot.lane.b32.xlu0 %v3300, 112
      %v3340 = vpop.permute.xlu0 %3339
      %3342 = vrot.lane.b32.xlu0 %v3300, 110
      %v3343 = vpop.permute.xlu0 %3342
      %3345 = vrot.lane.b32.xlu0 %v3300, 108
      %v3346 = vpop.permute.xlu0 %3345
      %3349 = vrot.lane.b32.xlu0 %v3300, 106
      %v3350 = vpop.permute.xlu0 %3349
      %3351 = vrot.lane.b32.xlu0 %v3301, 106
      %v3352 = vpop.permute.xlu0 %3351
      %vm3353 = vcmask 867328
      %v3354 = vsel %vm3353, %v3350, %v3352
      %3356 = vrot.lane.b32.xlu0 %v3301, 104
      %v3357 = vpop.permute.xlu0 %3356
      %3359 = vrot.lane.b32.xlu0 %v3301, 102
      %v3360 = vpop.permute.xlu0 %3359
      %3362 = vrot.lane.b32.xlu0 %v3301, 100
      %v3363 = vpop.permute.xlu0 %3362
      %3366 = vrot.lane.b32.xlu0 %v3301, 98
      %v3367 = vpop.permute.xlu0 %3366
      %3368 = vrot.lane.b32.xlu0 %v3302, 98
      %v3369 = vpop.permute.xlu0 %3368
      %vm3370 = vcmask 801792
      %v3371 = vsel %vm3370, %v3367, %v3369
      %v3373 = vsel %vm1612, %v3298, %v3309
      %v3374 = vsel %vm1627, %v3373, %v3312
      %vm3375 = vcmask 785408
      %v3376 = vsel %vm3375, %v3374, %v3320
      %v3377 = vsel %vm1612, %v3323, %v3326
      %v3378 = vsel %vm1627, %v3377, %v3329
      %v3379 = vsel %vm3375, %v3378, %v3337
      %v3380 = vsel %vm1612, %v3340, %v3343
      %v3381 = vsel %vm1627, %v3380, %v3346
      %v3382 = vsel %vm3375, %v3381, %v3354
      %v3383 = vsel %vm1612, %v3357, %v3360
      %v3384 = vsel %vm1627, %v3383, %v3363
      %v3385 = vsel %vm3375, %v3384, %v3371
      %3386 = vrot.lane.b32.xlu0 %v3302, 96
      %v3387 = vpop.permute.xlu0 %3386
      %3389 = vrot.lane.b32.xlu0 %v3302, 94
      %v3390 = vpop.permute.xlu0 %3389
      %3393 = vrot.lane.b32.xlu0 %v3302, 92
      %v3394 = vpop.permute.xlu0 %3393
      %3395 = vrot.lane.b32.xlu0 %v3303, 92
      %v3396 = vpop.permute.xlu0 %3395
      %v3397 = vsel %vm1515, %v3394, %v3396
      %3399 = vrot.lane.b32.xlu0 %v3303, 90
      %v3400 = vpop.permute.xlu0 %3399
      %3402 = vrot.lane.b32.xlu0 %v3303, 88
      %v3403 = vpop.permute.xlu0 %3402
      %3405 = vrot.lane.b32.xlu0 %v3303, 86
      %v3406 = vpop.permute.xlu0 %3405
      %3409 = vrot.lane.b32.xlu0 %v3303, 84
      %v3410 = vpop.permute.xlu0 %3409
      %3411 = vrot.lane.b32.xlu0 %v3304, 84
      %v3412 = vpop.permute.xlu0 %3411
      %v3413 = vsel %vm1507, %v3410, %v3412
      %3415 = vrot.lane.b32.xlu0 %v3304, 82
      %v3416 = vpop.permute.xlu0 %3415
      %3418 = vrot.lane.b32.xlu0 %v3304, 80
      %v3419 = vpop.permute.xlu0 %3418
      %3421 = vrot.lane.b32.xlu0 %v3304, 78
      %v3422 = vpop.permute.xlu0 %3421
      %3425 = vrot.lane.b32.xlu0 %v3304, 76
      %v3426 = vpop.permute.xlu0 %3425
      %3427 = vrot.lane.b32.xlu0 %v3305, 76
      %v3428 = vpop.permute.xlu0 %3427
      %v3429 = vsel %vm1500, %v3426, %v3428
      %3431 = vrot.lane.b32.xlu0 %v3305, 74
      %v3432 = vpop.permute.xlu0 %3431
      %3434 = vrot.lane.b32.xlu0 %v3305, 72
      %v3435 = vpop.permute.xlu0 %3434
      %3437 = vrot.lane.b32.xlu0 %v3305, 70
      %v3438 = vpop.permute.xlu0 %3437
      %3441 = vrot.lane.b32.xlu0 %v3305, 68
      %v3442 = vpop.permute.xlu0 %3441
      %3443 = vrot.lane.b32.xlu0 %v3306, 68
      %v3444 = vpop.permute.xlu0 %3443
      %v3445 = vsel %vm1492, %v3442, %v3444
      %3447 = vrot.lane.b32.xlu0 %v3306, 66
      %v3448 = vpop.permute.xlu0 %3447
      %v3450 = vsel %vm1612, %v3387, %v3390
      %v3451 = vsel %vm1627, %v3450, %v3397
      %v3452 = vsel %vm3375, %v3451, %v3400
      %v3453 = vsel %vm1612, %v3403, %v3406
      %v3454 = vsel %vm1627, %v3453, %v3413
      %v3455 = vsel %vm3375, %v3454, %v3416
      %v3456 = vsel %vm1612, %v3419, %v3422
      %v3457 = vsel %vm1627, %v3456, %v3429
      %v3458 = vsel %vm3375, %v3457, %v3432
      %v3459 = vsel %vm1612, %v3435, %v3438
      %v3460 = vsel %vm1627, %v3459, %v3445
      %v3461 = vsel %vm3375, %v3460, %v3448
      %3462 = vst [vmem:[%s197] sm:$0xff] %v3376
      %3463 = vst [vmem:[%s197 + $0x8] sm:$0xff] %v3379
      %3464 = vst [vmem:[%s197 + $0x10] sm:$0xff] %v3382
      %3465 = vst [vmem:[%s197 + $0x18] sm:$0xff] %v3385
      %3466 = vst [vmem:[%s197 + $0x20] sm:$0xff] %v3452
      %3467 = vst [vmem:[%s197 + $0x28] sm:$0xff] %v3455
      %3468 = vst [vmem:[%s197 + $0x30] sm:$0xff] %v3458
      %3469 = vst [vmem:[%s197 + $0x38] sm:$0xff] %v3461
      %p3470 = scmp.lt.s32.totalorder %s15, 1
      %s3471 = scalar_select %p3470, %s15, 1
      %s3472 = smul.addr %s3471, 8
      %s3473 = smul.addr %s3472, 8
      %s3474 = scalar_lea.vmem %s4, %s3473
      // Predicated region
      $region37: #{basic_block_side_conv.5} parent=35 // pred_check
        %p3475 = pneg %p122
      $region38: #{basic_block_side_conv.5} parent=35 // pred_check_branch
        %3477 = sbr.rel (%p3475) target = $region40
      $region39: #{basic_block_side_conv.5} parent=35 // pred_region
        _
      $region40: #{basic_block_side_conv.5} parent=35 // pred_fallthru
        _
    $region36: #{basic_block_side_conv.5} parent=5 // pred_fallthru
      _
    %p3478 = scmp.le.s32.totalorder 2, %s10
    // Predicated region
    $region41: #{basic_block_side_conv.5} parent=5 // pred_check
      %p3479 = pneg %p3478
    $region42: #{basic_block_side_conv.5} parent=5 // pred_check_branch
      %3481 = sbr.rel (%p3479) target = $region44
    $region43: #{basic_block_side_conv.5} parent=5 // pred_region
      %s3482 = ssub.s32 %s10, 2
      // Predicated region
      $region45: #{basic_block_side_conv.5} parent=43 // pred_check
        %p3483 = pneg %p128
      $region46: #{basic_block_side_conv.5} parent=43 // pred_check_branch
        %3485 = sbr.rel (%p3483) target = $region48
      $region47: #{basic_block_side_conv.5} parent=43 // pred_region
        %p3486 = scmp.lt.s32.totalorder %s16, 1
        %s3487 = scalar_select %p3486, %s16, 1
        %s3488 = smul.addr %s3487, 8
        %s3489 = smul.addr %s3488, 8
        %s3490 = scalar_lea.vmem %s4, %s3489
      $region48: #{basic_block_side_conv.5} parent=43 // pred_fallthru
        _
    $region44: #{basic_block_side_conv.5} parent=5 // pred_fallthru
      _
  $region6: #{basic_block_side_conv.5} parent=0 // loop_footer
    %s14 = sadd.s32 1, %s10
  $region7: #{basic_block_side_conv.5} parent=0 // loop_footer_branch
    %9 = sbr.rel target = $region3
  $region8: #{basic_block_side_conv.5} parent=0 // loop_exit
    _

</llo_original>
